<compile_context>
chip_gen: v5e
topology: v5e:2x2
jax: 0.10.0
libtpu: 0.0.40
codegen_flags: <defaults>
</compile_context>

<pallas_src>
import jax
import jax.numpy as jnp
from jax.experimental import pallas as pl
from jax.experimental.pallas import tpu as pltpu

EPS = 1e-5
LANE = 128
VMEM_LIMIT = 48 * 1024 * 1024


# ------------------------------- Pallas kernels ------------------------------ #

def _conv3x3_stats_kernel(xs_ref, w_ref, y_ref, stats_ref):
    """3x3 conv for one row tile via 9 shifted MXU matmuls + BN partial stats.

    xs_ref   : (3, 1, TH, W+2, Cp) bf16  row-shifted, reflection-padded input
    w_ref    : (9, Cp, Cp)         bf16  tap-major weights, (cin, cout) per tap
    y_ref    : (TH*W, Cp)          f32   raw conv output tile (pre-BN)
    stats_ref: (1, 2, Cp)          f32   per-tile [sum ; sum of squares]
    """
    th = xs_ref.shape[2]
    wp2 = xs_ref.shape[3]
    cp = xs_ref.shape[4]
    w_out = wp2 - 2
    tm = th * w_out

    acc = jnp.zeros((tm, cp), jnp.float32)
    for dy in range(3):
        x_d = xs_ref[dy, 0]                                    # (TH, W+2, Cp) bf16
        for dx in range(3):
            patch = x_d[:, dx:dx + w_out, :].reshape(tm, cp)   # (TH*W, Cp) bf16
            acc = acc + jnp.dot(patch, w_ref[dy * 3 + dx],
                                preferred_element_type=jnp.float32)

    y_ref[...] = acc
    ssum = jnp.sum(acc, axis=0, keepdims=True)                 # (1, Cp)
    ssq = jnp.sum(acc * acc, axis=0, keepdims=True)            # (1, Cp)
    stats_ref[...] = jnp.concatenate([ssum, ssq], axis=0)[None]


def _bn_elu_kernel(y_ref, scale_ref, shift_ref, o_ref):
    """o = ELU(scale * y + shift): folded training-mode BN + ELU(alpha=1)."""
    z = y_ref[...].astype(jnp.float32) * scale_ref[...] + shift_ref[...]
    o_ref[...] = jnp.where(z > 0.0, z,
                           jnp.exp(jnp.minimum(z, 0.0)) - 1.0).astype(o_ref.dtype)


def _bn_residual_kernel(y_ref, scale_ref, shift_ref, x_ref, o_ref):
    """o = x + scale * y + shift: folded training-mode BN + residual add."""
    z = y_ref[...].astype(jnp.float32) * scale_ref[...] + shift_ref[...]
    o_ref[...] = (x_ref[...] + z).astype(o_ref.dtype)


# ----------------------------- tiling / glue helpers -------------------------- #

def _round_up(x, m):
    return (x + m - 1) // m * m


def _largest_divisor(n, limit, multiple_of=1):
    best = None
    for d in range(1, n + 1):
        if n % d == 0 and d <= limit and d % multiple_of == 0:
            best = d
    return best


def _pick_tile_h(h, w, max_rows=2048):
    """Largest row-tile with TILE_H*W <= max_rows rows, keeping >=2 tiles per image."""
    limit = min(h, max(1, max_rows // max(w, 1)))
    if h >= 2:
        limit = min(limit, max(1, h // 2))
    for d in range(limit, 0, -1):
        if h % d == 0 and (d * w) % 8 == 0:
            return d
    for d in range(limit, 0, -1):
        if h % d == 0:
            return d
    return 1


def _pick_tile_m(m, target=1024):
    d = _largest_divisor(m, min(m, target), multiple_of=8)
    return d if d is not None else m


def _pad_channels(x, cp):
    c = x.shape[-1]
    if c == cp:
        return x
    return jnp.pad(x, [(0, 0)] * (x.ndim - 1) + [(0, cp - c)])


def _reflect_row_shift_stack(x_nhwc):
    """ReflectionPad2d(1) then stack the 3 row-shifted views.

    (N, H, W, Cp) -> (3, N, H, W+2, Cp), entry [dy, n, h] = x_padded[n, h+dy].
    """
    h = x_nhwc.shape[1]
    xp = jnp.pad(x_nhwc, ((0, 0), (1, 1), (1, 1), (0, 0)), mode="reflect")
    return jnp.stack([xp[:, d:d + h, :, :] for d in range(3)], axis=0)


# ------------------------------ pallas_call wrappers --------------------------- #

def _conv3x3_with_stats(xs, w, tile_h):
    """xs: (3, N, H, W+2, Cp) bf16, w: (9, Cp, Cp) bf16.

    Returns y: (N*H*W, Cp) f32 raw conv output and stats partials (G, 2, Cp) f32.
    """
    _, n, h, wp2, cp = xs.shape
    w_out = wp2 - 2
    t = h // tile_h
    m = n * h * w_out
    tile_m = tile_h * w_out

    y, stats = pl.pallas_call(
        _conv3x3_stats_kernel,
        out_shape=(jax.ShapeDtypeStruct((m, cp), jnp.float32),
                   jax.ShapeDtypeStruct((n * t, 2, cp), jnp.float32)),
        grid=(n, t),
        in_specs=[
            pl.BlockSpec((3, 1, tile_h, wp2, cp), lambda i, j: (0, i, j, 0, 0)),
            pl.BlockSpec((9, cp, cp), lambda i, j: (0, 0, 0)),   # weights resident
        ],
        out_specs=(
            pl.BlockSpec((tile_m, cp), lambda i, j: (i * t + j, 0)),
            pl.BlockSpec((1, 2, cp), lambda i, j: (i * t + j, 0, 0)),
        ),
        compiler_params=pltpu.CompilerParams(
            dimension_semantics=("parallel", "parallel"),
            vmem_limit_bytes=VMEM_LIMIT),
    )(xs, w)
    return y, stats


def _fold_bn(stats, count, gamma, beta):
    """Partial (sum, sumsq) -> per-channel (scale, shift) for training-mode BN."""
    s = jnp.sum(stats, axis=0)                       # (2, Cp)
    mean = s[0] / count
    var = jnp.maximum(s[1] / count - mean * mean, 0.0)   # biased variance
    scale = gamma * jax.lax.rsqrt(var + EPS)
    shift = beta - mean * scale
    return scale[None, :].astype(jnp.float32), shift[None, :].astype(jnp.float32)


def _bn_apply(kernel, y, scale, shift, residual, out_dtype, tile_m):
    m, cp = y.shape
    g = m // tile_m
    row_spec = pl.BlockSpec((tile_m, cp), lambda i: (i, 0))
    vec_spec = pl.BlockSpec((1, cp), lambda i: (0, 0))
    in_specs = [row_spec, vec_spec, vec_spec]
    args = [y, scale, shift]
    if residual is not None:
        in_specs.append(row_spec)
        args.append(residual)
    return pl.pallas_call(
        kernel,
        out_shape=jax.ShapeDtypeStruct((m, cp), out_dtype),
        grid=(g,),
        in_specs=in_specs,
        out_specs=row_spec,
        compiler_params=pltpu.CompilerParams(
            dimension_semantics=("parallel",),
            vmem_limit_bytes=VMEM_LIMIT),
    )(*args)


# ---------------------------------- forward ----------------------------------- #

@jax.jit
def resblock_forward(x_nchw, kparams):
    x = jnp.transpose(x_nchw, (0, 2, 3, 1)).astype(jnp.float32)   # NCHW -> NHWC
    n, h, w, c = x.shape
    cp = kparams["w1"].shape[-1]
    m = n * h * w
    tile_h = _pick_tile_h(h, w)
    tile_m = _pick_tile_m(m)

    xc = _pad_channels(x, cp)                                      # (N,H,W,Cp) f32

    # ---- Stage 1: reflection pad + conv3x3 + BN(train) + ELU ----
    xs = _reflect_row_shift_stack(xc.astype(jnp.bfloat16))         # (3,N,H,W+2,Cp)
    y1, st1 = _conv3x3_with_stats(xs, kparams["w1"], tile_h)
    scale1, shift1 = _fold_bn(st1, m, kparams["g1"], kparams["beta1"])
    h1 = _bn_apply(_bn_elu_kernel, y1, scale1, shift1, None,
                   jnp.bfloat16, tile_m)                           # (M, Cp) bf16

    # ---- Stage 2: reflection pad + conv3x3 + BN(train) + residual ----
    hs = _reflect_row_shift_stack(h1.reshape(n, h, w, cp))         # bf16 already
    y2, st2 = _conv3x3_with_stats(hs, kparams["w2"], tile_h)
    scale2, shift2 = _fold_bn(st2, m, kparams["g2"], kparams["beta2"])
    out = _bn_apply(_bn_residual_kernel, y2, scale2, shift2,
                    xc.reshape(m, cp), jnp.float32, tile_m)        # (M, Cp) f32

    out = out.reshape(n, h, w, cp)[..., :c]
    return jnp.transpose(out, (0, 3, 1, 2))                        # NHWC -> NCHW


# ---------------------------------- parameters --------------------------------- #

def init_torch_params(key, c):
    """Synthetic parameters in PyTorch layouts (Conv2d weight: (Cout, Cin, 3, 3))."""
    k = jax.random.split(key, 8)
    std = (2.0 / (9.0 * c)) ** 0.5
    return dict(
        w1=jax.random.normal(k[0], (c, c, 3, 3), jnp.float32) * std,
        w2=jax.random.normal(k[1], (c, c, 3, 3), jnp.float32) * std,
        b1=0.05 * jax.random.normal(k[2], (c,), jnp.float32),
        b2=0.05 * jax.random.normal(k[3], (c,), jnp.float32),
        g1=1.0 + 0.1 * jax.random.normal(k[4], (c,), jnp.float32),
        g2=1.0 + 0.1 * jax.random.normal(k[5], (c,), jnp.float32),
        beta1=0.1 * jax.random.normal(k[6], (c,), jnp.float32),
        beta2=0.1 * jax.random.normal(k[7], (c,), jnp.float32),
    )


def _convert_conv_weight(w_oihw, cp):
    """PyTorch (Cout, Cin, 3, 3) -> kernel (9, Cp, Cp) bf16, tap-major (dy, dx)."""
    c_out, c_in = w_oihw.shape[0], w_oihw.shape[1]
    wk = jnp.transpose(w_oihw, (2, 3, 1, 0)).reshape(9, c_in, c_out)
    wk = jnp.pad(wk, ((0, 0), (0, cp - c_in), (0, cp - c_out)))
    return wk.astype(jnp.bfloat16)


def _pad_vec(v, cp):
    return jnp.pad(v.astype(jnp.float32), (0, cp - v.shape[0]))


def prepare_kernel_params(p, cp):
    # Conv biases intentionally dropped: a bias before training-mode BatchNorm is
    # exactly cancelled by the mean subtraction (mean/variance are shift-invariant).
    return dict(
        w1=_convert_conv_weight(p["w1"], cp), w2=_convert_conv_weight(p["w2"], cp),
        g1=_pad_vec(p["g1"], cp), beta1=_pad_vec(p["beta1"], cp),
        g2=_pad_vec(p["g2"], cp), beta2=_pad_vec(p["beta2"], cp),
    )


# ------------------------------ pure-JAX reference ----------------------------- #

def _ref_conv3x3(x_nhwc, w_oihw, b):
    n, h, w, c = x_nhwc.shape
    xp = jnp.pad(x_nhwc, ((0, 0), (1, 1), (1, 1), (0, 0)), mode="reflect")
    cols = [xp[:, dy:dy + h, dx:dx + w, :] for dy in range(3) for dx in range(3)]
    patches = jnp.concatenate(cols, axis=-1).reshape(n * h * w, 9 * c)
    wmat = jnp.transpose(w_oihw, (2, 3, 1, 0)).reshape(9 * c, c)
    y = jnp.dot(patches.astype(jnp.bfloat16), wmat.astype(jnp.bfloat16),
                preferred_element_type=jnp.float32) + b
    return y.reshape(n, h, w, c)


def _ref_bn_train(y, gamma, beta):
    mean = jnp.mean(y, axis=(0, 1, 2))
    var = jnp.mean((y - mean) ** 2, axis=(0, 1, 2))          # biased, training mode
    return (y - mean) * jax.lax.rsqrt(var + EPS) * gamma + beta


def resblock_reference(x_nchw, p):
    """Pure-JAX mirror of the PyTorch module (training-mode BN; bf16 matmul inputs
    to match the kernel numerics).  Conv biases are kept (BN cancels them)."""
    x = jnp.transpose(x_nchw, (0, 2, 3, 1)).astype(jnp.float32)
    y = _ref_bn_train(_ref_conv3x3(x, p["w1"], p["b1"]), p["g1"], p["beta1"])
    y = jnp.where(y > 0.0, y, jnp.exp(jnp.minimum(y, 0.0)) - 1.0)   # ELU(alpha=1)
    y = _ref_bn_train(_ref_conv3x3(y, p["w2"], p["b2"]), p["g2"], p["beta2"])
    return jnp.transpose(x + y, (0, 3, 1, 2))


# ------------------------------------ main ------------------------------------- #

if __name__ == "__main__":
    key = jax.random.PRNGKey(0)
    kx, kp = jax.random.split(key)

    N, C, H, W = 2, 4, 16, 16                    # NCHW, matches nn.Conv2d input
    x = jax.random.normal(kx, (N, C, H, W), jnp.float32)
    tparams = init_torch_params(kp, C)

    cp = max(LANE, _round_up(C, LANE))           # lane-dense channel padding
    kparams = prepare_kernel_params(tparams, cp)

    out = jax.block_until_ready(resblock_forward(x, kparams))
    ref = jax.block_until_ready(resblock_reference(x, tparams))

    assert out.shape == (N, C, H, W)
    err = float(jnp.max(jnp.abs(out - ref)))
    assert err < 2e-2, f"mismatch vs pure-JAX reference: max abs err {err}"

    print("KERNEL_OK")
</pallas_src>

<mosaic_0001>
module attributes {stable_mosaic.version = 11 : i64} {
  func.func @_conv3x3_stats_kernel(%arg0: i32, %arg1: i32, %arg2: memref<3x1x8x18x128xbf16, #tpu.memory_space<vmem>>, %arg3: memref<9x128x128xbf16, #tpu.memory_space<vmem>>, %arg4: memref<128x128xf32, #tpu.memory_space<vmem>>, %arg5: memref<1x2x128xf32, #tpu.memory_space<vmem>>) attributes {dimension_semantics = [#tpu.dimension_semantics<parallel>, #tpu.dimension_semantics<parallel>], iteration_bounds = array<i64: 2, 2>, scalar_prefetch = 0 : i64, scratch_operands = 0 : i64, tpu.core_type = #tpu.core_type<tc>, window_params = [{transform_indices = @transform_0, window_bounds = array<i64: 3, 1, 8, 18, 128>}, {pipeline_mode = #tpu.pipeline_mode<synchronous>, transform_indices = @transform_1, window_bounds = array<i64: 9, 128, 128>}, {transform_indices = @transform_2, window_bounds = array<i64: 128, 128>}, {transform_indices = @transform_3, window_bounds = array<i64: 1, 2, 128>}]} {
    %cst = arith.constant 0.000000e+00 : f32
    %0 = vector.broadcast %cst : f32 to vector<128x128xf32>
    %c0 = arith.constant 0 : index
    %c0_0 = arith.constant 0 : index
    %c0_1 = arith.constant 0 : index
    %c0_2 = arith.constant 0 : index
    %c0_3 = arith.constant 0 : index
    %1 = vector.load %arg2[%c0, %c0_0, %c0_1, %c0_2, %c0_3] : memref<3x1x8x18x128xbf16, #tpu.memory_space<vmem>>, vector<1x1x8x18x128xbf16>
    %2 = vector.shape_cast %1 : vector<1x1x8x18x128xbf16> to vector<8x18x128xbf16>
    %3 = vector.extract_strided_slice %2 {offsets = [0, 0, 0], sizes = [8, 16, 128], strides = [1, 1, 1]} : vector<8x18x128xbf16> to vector<8x16x128xbf16>
    %4 = vector.shape_cast %3 : vector<8x16x128xbf16> to vector<128x128xbf16>
    %c0_4 = arith.constant 0 : index
    %c0_5 = arith.constant 0 : index
    %c0_6 = arith.constant 0 : index
    %5 = vector.load %arg3[%c0_4, %c0_5, %c0_6] : memref<9x128x128xbf16, #tpu.memory_space<vmem>>, vector<1x128x128xbf16>
    %6 = vector.shape_cast %5 : vector<1x128x128xbf16> to vector<128x128xbf16>
    %cst_7 = arith.constant dense<0.000000e+00> : vector<128x128xf32>
    %7 = tpu.matmul %4, %6, %cst_7 {dimension_numbers = #tpu.dot_dimension_numbers<[1], [0], [0], [1], [0, 0, 1, 1], [], []>} : vector<128x128xbf16>, vector<128x128xbf16>, vector<128x128xf32> -> vector<128x128xf32>
    %8 = arith.addf %0, %7 : vector<128x128xf32>
    %9 = vector.extract_strided_slice %2 {offsets = [0, 1, 0], sizes = [8, 16, 128], strides = [1, 1, 1]} : vector<8x18x128xbf16> to vector<8x16x128xbf16>
    %10 = vector.shape_cast %9 : vector<8x16x128xbf16> to vector<128x128xbf16>
    %c1 = arith.constant 1 : index
    %c0_8 = arith.constant 0 : index
    %c0_9 = arith.constant 0 : index
    %11 = vector.load %arg3[%c1, %c0_8, %c0_9] : memref<9x128x128xbf16, #tpu.memory_space<vmem>>, vector<1x128x128xbf16>
    %12 = vector.shape_cast %11 : vector<1x128x128xbf16> to vector<128x128xbf16>
    %cst_10 = arith.constant dense<0.000000e+00> : vector<128x128xf32>
    %13 = tpu.matmul %10, %12, %cst_10 {dimension_numbers = #tpu.dot_dimension_numbers<[1], [0], [0], [1], [0, 0, 1, 1], [], []>} : vector<128x128xbf16>, vector<128x128xbf16>, vector<128x128xf32> -> vector<128x128xf32>
    %14 = arith.addf %8, %13 : vector<128x128xf32>
    %15 = vector.extract_strided_slice %2 {offsets = [0, 2, 0], sizes = [8, 16, 128], strides = [1, 1, 1]} : vector<8x18x128xbf16> to vector<8x16x128xbf16>
    %16 = vector.shape_cast %15 : vector<8x16x128xbf16> to vector<128x128xbf16>
    %c2 = arith.constant 2 : index
    %c0_11 = arith.constant 0 : index
    %c0_12 = arith.constant 0 : index
    %17 = vector.load %arg3[%c2, %c0_11, %c0_12] : memref<9x128x128xbf16, #tpu.memory_space<vmem>>, vector<1x128x128xbf16>
    %18 = vector.shape_cast %17 : vector<1x128x128xbf16> to vector<128x128xbf16>
    %cst_13 = arith.constant dense<0.000000e+00> : vector<128x128xf32>
    %19 = tpu.matmul %16, %18, %cst_13 {dimension_numbers = #tpu.dot_dimension_numbers<[1], [0], [0], [1], [0, 0, 1, 1], [], []>} : vector<128x128xbf16>, vector<128x128xbf16>, vector<128x128xf32> -> vector<128x128xf32>
    %20 = arith.addf %14, %19 : vector<128x128xf32>
    %c1_14 = arith.constant 1 : index
    %c0_15 = arith.constant 0 : index
    %c0_16 = arith.constant 0 : index
    %c0_17 = arith.constant 0 : index
    %c0_18 = arith.constant 0 : index
    %21 = vector.load %arg2[%c1_14, %c0_15, %c0_16, %c0_17, %c0_18] : memref<3x1x8x18x128xbf16, #tpu.memory_space<vmem>>, vector<1x1x8x18x128xbf16>
    %22 = vector.shape_cast %21 : vector<1x1x8x18x128xbf16> to vector<8x18x128xbf16>
    %23 = vector.extract_strided_slice %22 {offsets = [0, 0, 0], sizes = [8, 16, 128], strides = [1, 1, 1]} : vector<8x18x128xbf16> to vector<8x16x128xbf16>
    %24 = vector.shape_cast %23 : vector<8x16x128xbf16> to vector<128x128xbf16>
    %c3 = arith.constant 3 : index
    %c0_19 = arith.constant 0 : index
    %c0_20 = arith.constant 0 : index
    %25 = vector.load %arg3[%c3, %c0_19, %c0_20] : memref<9x128x128xbf16, #tpu.memory_space<vmem>>, vector<1x128x128xbf16>
    %26 = vector.shape_cast %25 : vector<1x128x128xbf16> to vector<128x128xbf16>
    %cst_21 = arith.constant dense<0.000000e+00> : vector<128x128xf32>
    %27 = tpu.matmul %24, %26, %cst_21 {dimension_numbers = #tpu.dot_dimension_numbers<[1], [0], [0], [1], [0, 0, 1, 1], [], []>} : vector<128x128xbf16>, vector<128x128xbf16>, vector<128x128xf32> -> vector<128x128xf32>
    %28 = arith.addf %20, %27 : vector<128x128xf32>
    %29 = vector.extract_strided_slice %22 {offsets = [0, 1, 0], sizes = [8, 16, 128], strides = [1, 1, 1]} : vector<8x18x128xbf16> to vector<8x16x128xbf16>
    %30 = vector.shape_cast %29 : vector<8x16x128xbf16> to vector<128x128xbf16>
    %c4 = arith.constant 4 : index
    %c0_22 = arith.constant 0 : index
    %c0_23 = arith.constant 0 : index
    %31 = vector.load %arg3[%c4, %c0_22, %c0_23] : memref<9x128x128xbf16, #tpu.memory_space<vmem>>, vector<1x128x128xbf16>
    %32 = vector.shape_cast %31 : vector<1x128x128xbf16> to vector<128x128xbf16>
    %cst_24 = arith.constant dense<0.000000e+00> : vector<128x128xf32>
    %33 = tpu.matmul %30, %32, %cst_24 {dimension_numbers = #tpu.dot_dimension_numbers<[1], [0], [0], [1], [0, 0, 1, 1], [], []>} : vector<128x128xbf16>, vector<128x128xbf16>, vector<128x128xf32> -> vector<128x128xf32>
    %34 = arith.addf %28, %33 : vector<128x128xf32>
    %35 = vector.extract_strided_slice %22 {offsets = [0, 2, 0], sizes = [8, 16, 128], strides = [1, 1, 1]} : vector<8x18x128xbf16> to vector<8x16x128xbf16>
    %36 = vector.shape_cast %35 : vector<8x16x128xbf16> to vector<128x128xbf16>
    %c5 = arith.constant 5 : index
    %c0_25 = arith.constant 0 : index
    %c0_26 = arith.constant 0 : index
    %37 = vector.load %arg3[%c5, %c0_25, %c0_26] : memref<9x128x128xbf16, #tpu.memory_space<vmem>>, vector<1x128x128xbf16>
    %38 = vector.shape_cast %37 : vector<1x128x128xbf16> to vector<128x128xbf16>
    %cst_27 = arith.constant dense<0.000000e+00> : vector<128x128xf32>
    %39 = tpu.matmul %36, %38, %cst_27 {dimension_numbers = #tpu.dot_dimension_numbers<[1], [0], [0], [1], [0, 0, 1, 1], [], []>} : vector<128x128xbf16>, vector<128x128xbf16>, vector<128x128xf32> -> vector<128x128xf32>
    %40 = arith.addf %34, %39 : vector<128x128xf32>
    %c2_28 = arith.constant 2 : index
    %c0_29 = arith.constant 0 : index
    %c0_30 = arith.constant 0 : index
    %c0_31 = arith.constant 0 : index
    %c0_32 = arith.constant 0 : index
    %41 = vector.load %arg2[%c2_28, %c0_29, %c0_30, %c0_31, %c0_32] : memref<3x1x8x18x128xbf16, #tpu.memory_space<vmem>>, vector<1x1x8x18x128xbf16>
    %42 = vector.shape_cast %41 : vector<1x1x8x18x128xbf16> to vector<8x18x128xbf16>
    %43 = vector.extract_strided_slice %42 {offsets = [0, 0, 0], sizes = [8, 16, 128], strides = [1, 1, 1]} : vector<8x18x128xbf16> to vector<8x16x128xbf16>
    %44 = vector.shape_cast %43 : vector<8x16x128xbf16> to vector<128x128xbf16>
    %c6 = arith.constant 6 : index
    %c0_33 = arith.constant 0 : index
    %c0_34 = arith.constant 0 : index
    %45 = vector.load %arg3[%c6, %c0_33, %c0_34] : memref<9x128x128xbf16, #tpu.memory_space<vmem>>, vector<1x128x128xbf16>
    %46 = vector.shape_cast %45 : vector<1x128x128xbf16> to vector<128x128xbf16>
    %cst_35 = arith.constant dense<0.000000e+00> : vector<128x128xf32>
    %47 = tpu.matmul %44, %46, %cst_35 {dimension_numbers = #tpu.dot_dimension_numbers<[1], [0], [0], [1], [0, 0, 1, 1], [], []>} : vector<128x128xbf16>, vector<128x128xbf16>, vector<128x128xf32> -> vector<128x128xf32>
    %48 = arith.addf %40, %47 : vector<128x128xf32>
    %49 = vector.extract_strided_slice %42 {offsets = [0, 1, 0], sizes = [8, 16, 128], strides = [1, 1, 1]} : vector<8x18x128xbf16> to vector<8x16x128xbf16>
    %50 = vector.shape_cast %49 : vector<8x16x128xbf16> to vector<128x128xbf16>
    %c7 = arith.constant 7 : index
    %c0_36 = arith.constant 0 : index
    %c0_37 = arith.constant 0 : index
    %51 = vector.load %arg3[%c7, %c0_36, %c0_37] : memref<9x128x128xbf16, #tpu.memory_space<vmem>>, vector<1x128x128xbf16>
    %52 = vector.shape_cast %51 : vector<1x128x128xbf16> to vector<128x128xbf16>
    %cst_38 = arith.constant dense<0.000000e+00> : vector<128x128xf32>
    %53 = tpu.matmul %50, %52, %cst_38 {dimension_numbers = #tpu.dot_dimension_numbers<[1], [0], [0], [1], [0, 0, 1, 1], [], []>} : vector<128x128xbf16>, vector<128x128xbf16>, vector<128x128xf32> -> vector<128x128xf32>
    %54 = arith.addf %48, %53 : vector<128x128xf32>
    %55 = vector.extract_strided_slice %42 {offsets = [0, 2, 0], sizes = [8, 16, 128], strides = [1, 1, 1]} : vector<8x18x128xbf16> to vector<8x16x128xbf16>
    %56 = vector.shape_cast %55 : vector<8x16x128xbf16> to vector<128x128xbf16>
    %c8 = arith.constant 8 : index
    %c0_39 = arith.constant 0 : index
    %c0_40 = arith.constant 0 : index
    %57 = vector.load %arg3[%c8, %c0_39, %c0_40] : memref<9x128x128xbf16, #tpu.memory_space<vmem>>, vector<1x128x128xbf16>
    %58 = vector.shape_cast %57 : vector<1x128x128xbf16> to vector<128x128xbf16>
    %cst_41 = arith.constant dense<0.000000e+00> : vector<128x128xf32>
    %59 = tpu.matmul %56, %58, %cst_41 {dimension_numbers = #tpu.dot_dimension_numbers<[1], [0], [0], [1], [0, 0, 1, 1], [], []>} : vector<128x128xbf16>, vector<128x128xbf16>, vector<128x128xf32> -> vector<128x128xf32>
    %60 = arith.addf %54, %59 : vector<128x128xf32>
    %c0_42 = arith.constant 0 : index
    %c0_43 = arith.constant 0 : index
    %61 = vector.load %arg4[%c0_42, %c0_43] : memref<128x128xf32, #tpu.memory_space<vmem>>, vector<128x128xf32>
    tpu.vector_store %arg4[%c0_42, %c0_43], %60 {strides = array<i32>} : memref<128x128xf32, #tpu.memory_space<vmem>>, vector<128x128xf32>,
    %cst_44 = arith.constant dense<0.000000e+00> : vector<128xf32>
    %62 = vector.multi_reduction <add>, %60, %cst_44 [0] : vector<128x128xf32> to vector<128xf32>
    %63 = vector.shape_cast %62 : vector<128xf32> to vector<1x128xf32>
    %64 = arith.mulf %60, %60 : vector<128x128xf32>
    %cst_45 = arith.constant dense<0.000000e+00> : vector<128xf32>
    %65 = vector.multi_reduction <add>, %64, %cst_45 [0] : vector<128x128xf32> to vector<128xf32>
    %66 = vector.shape_cast %65 : vector<128xf32> to vector<1x128xf32>
    %67 = tpu.concatenate %63, %66 in 0 : vector<1x128xf32>, vector<1x128xf32> -> vector<2x128xf32>
    %68 = vector.shape_cast %67 : vector<2x128xf32> to vector<1x2x128xf32>
    %c0_46 = arith.constant 0 : index
    %c0_47 = arith.constant 0 : index
    %c0_48 = arith.constant 0 : index
    %69 = vector.load %arg5[%c0_46, %c0_47, %c0_48] : memref<1x2x128xf32, #tpu.memory_space<vmem>>, vector<1x2x128xf32>
    tpu.vector_store %arg5[%c0_46, %c0_47, %c0_48], %68 {strides = array<i32>} : memref<1x2x128xf32, #tpu.memory_space<vmem>>, vector<1x2x128xf32>,
    return
  }
  func.func @transform_0(%arg0: i32, %arg1: i32) -> (i32, i32, i32, i32, i32) {
    %c0_i32 = arith.constant 0 : i32
    %c0_i32_0 = arith.constant 0 : i32
    %c0_i32_1 = arith.constant 0 : i32
    %c0_i32_2 = arith.constant 0 : i32
    return %c0_i32, %arg0, %arg1, %c0_i32_0, %c0_i32_1 : i32, i32, i32, i32, i32
  }
  func.func @transform_1(%arg0: i32, %arg1: i32) -> (i32, i32, i32) {
    %c0_i32 = arith.constant 0 : i32
    %c0_i32_0 = arith.constant 0 : i32
    %c0_i32_1 = arith.constant 0 : i32
    %c0_i32_2 = arith.constant 0 : i32
    return %c0_i32, %c0_i32_0, %c0_i32_1 : i32, i32, i32
  }
  func.func @transform_2(%arg0: i32, %arg1: i32) -> (i32, i32) {
    %c2_i32 = arith.constant 2 : i32
    %0 = arith.muli %arg0, %c2_i32 : i32
    %1 = arith.addi %0, %arg1 : i32
    %c0_i32 = arith.constant 0 : i32
    %c0_i32_0 = arith.constant 0 : i32
    return %1, %c0_i32 : i32, i32
  }
  func.func @transform_3(%arg0: i32, %arg1: i32) -> (i32, i32, i32) {
    %c2_i32 = arith.constant 2 : i32
    %0 = arith.muli %arg0, %c2_i32 : i32
    %1 = arith.addi %0, %arg1 : i32
    %c0_i32 = arith.constant 0 : i32
    %c0_i32_0 = arith.constant 0 : i32
    %c0_i32_1 = arith.constant 0 : i32
    return %1, %c0_i32, %c0_i32_0 : i32, i32, i32
  }
}

module attributes {stable_mosaic.version = 11 : i64} {
  func.func @_bn_elu_kernel(%arg0: i32, %arg1: memref<512x128xf32, #tpu.memory_space<vmem>>, %arg2: memref<1x128xf32, #tpu.memory_space<vmem>>, %arg3: memref<1x128xf32, #tpu.memory_space<vmem>>, %arg4: memref<512x128xbf16, #tpu.memory_space<vmem>>) attributes {dimension_semantics = [#tpu.dimension_semantics<parallel>], iteration_bounds = array<i64: 1>, scalar_prefetch = 0 : i64, scratch_operands = 0 : i64, tpu.core_type = #tpu.core_type<tc>, window_params = [{transform_indices = @transform_0, window_bounds = array<i64: 512, 128>}, {pipeline_mode = #tpu.pipeline_mode<synchronous>, transform_indices = @transform_1, window_bounds = array<i64: 1, 128>}, {pipeline_mode = #tpu.pipeline_mode<synchronous>, transform_indices = @transform_2, window_bounds = array<i64: 1, 128>}, {transform_indices = @transform_3, window_bounds = array<i64: 512, 128>}]} {
    %c0 = arith.constant 0 : index
    %c0_0 = arith.constant 0 : index
    %0 = vector.load %arg1[%c0, %c0_0] : memref<512x128xf32, #tpu.memory_space<vmem>>, vector<512x128xf32>
    %c0_1 = arith.constant 0 : index
    %c0_2 = arith.constant 0 : index
    %1 = vector.load %arg2[%c0_1, %c0_2] : memref<1x128xf32, #tpu.memory_space<vmem>>, vector<1x128xf32>
    %2 = vector.broadcast %1 : vector<1x128xf32> to vector<512x128xf32>
    %3 = arith.mulf %0, %2 : vector<512x128xf32>
    %c0_3 = arith.constant 0 : index
    %c0_4 = arith.constant 0 : index
    %4 = vector.load %arg3[%c0_3, %c0_4] : memref<1x128xf32, #tpu.memory_space<vmem>>, vector<1x128xf32>
    %5 = vector.broadcast %4 : vector<1x128xf32> to vector<512x128xf32>
    %6 = arith.addf %3, %5 : vector<512x128xf32>
    %cst = arith.constant 0.000000e+00 : f32
    %7 = vector.broadcast %cst : f32 to vector<512x128xf32>
    %8 = arith.cmpf ogt, %6, %7 : vector<512x128xf32>
    %cst_5 = arith.constant 0.000000e+00 : f32
    %9 = vector.broadcast %cst_5 : f32 to vector<512x128xf32>
    %10 = arith.minimumf %6, %9 : vector<512x128xf32>
    %11 = math.exp %10 : vector<512x128xf32>
    %cst_6 = arith.constant 1.000000e+00 : f32
    %12 = vector.broadcast %cst_6 : f32 to vector<512x128xf32>
    %13 = arith.subf %11, %12 : vector<512x128xf32>
    %14 = arith.select %8, %6, %13 : vector<512x128xi1>, vector<512x128xf32>
    %15 = arith.truncf %14 : vector<512x128xf32> to vector<512x128xbf16>
    %c0_7 = arith.constant 0 : index
    %c0_8 = arith.constant 0 : index
    %16 = vector.load %arg4[%c0_7, %c0_8] : memref<512x128xbf16, #tpu.memory_space<vmem>>, vector<512x128xbf16>
    tpu.vector_store %arg4[%c0_7, %c0_8], %15 {strides = array<i32>} : memref<512x128xbf16, #tpu.memory_space<vmem>>, vector<512x128xbf16>,
    return
  }
  func.func @transform_0(%arg0: i32) -> (i32, i32) {
    %c0_i32 = arith.constant 0 : i32
    %c0_i32_0 = arith.constant 0 : i32
    return %arg0, %c0_i32 : i32, i32
  }
  func.func @transform_1(%arg0: i32) -> (i32, i32) {
    %c0_i32 = arith.constant 0 : i32
    %c0_i32_0 = arith.constant 0 : i32
    %c0_i32_1 = arith.constant 0 : i32
    return %c0_i32, %c0_i32_0 : i32, i32
  }
  func.func @transform_2(%arg0: i32) -> (i32, i32) {
    %c0_i32 = arith.constant 0 : i32
    %c0_i32_0 = arith.constant 0 : i32
    %c0_i32_1 = arith.constant 0 : i32
    return %c0_i32, %c0_i32_0 : i32, i32
  }
  func.func @transform_3(%arg0: i32) -> (i32, i32) {
    %c0_i32 = arith.constant 0 : i32
    %c0_i32_0 = arith.constant 0 : i32
    return %arg0, %c0_i32 : i32, i32
  }
}

module attributes {stable_mosaic.version = 11 : i64} {
  func.func @_bn_residual_kernel(%arg0: i32, %arg1: memref<512x128xf32, #tpu.memory_space<vmem>>, %arg2: memref<1x128xf32, #tpu.memory_space<vmem>>, %arg3: memref<1x128xf32, #tpu.memory_space<vmem>>, %arg4: memref<512x128xf32, #tpu.memory_space<vmem>>, %arg5: memref<512x128xf32, #tpu.memory_space<vmem>>) attributes {dimension_semantics = [#tpu.dimension_semantics<parallel>], iteration_bounds = array<i64: 1>, scalar_prefetch = 0 : i64, scratch_operands = 0 : i64, tpu.core_type = #tpu.core_type<tc>, window_params = [{transform_indices = @transform_0, window_bounds = array<i64: 512, 128>}, {pipeline_mode = #tpu.pipeline_mode<synchronous>, transform_indices = @transform_1, window_bounds = array<i64: 1, 128>}, {pipeline_mode = #tpu.pipeline_mode<synchronous>, transform_indices = @transform_2, window_bounds = array<i64: 1, 128>}, {transform_indices = @transform_3, window_bounds = array<i64: 512, 128>}, {transform_indices = @transform_4, window_bounds = array<i64: 512, 128>}]} {
    %c0 = arith.constant 0 : index
    %c0_0 = arith.constant 0 : index
    %0 = vector.load %arg1[%c0, %c0_0] : memref<512x128xf32, #tpu.memory_space<vmem>>, vector<512x128xf32>
    %c0_1 = arith.constant 0 : index
    %c0_2 = arith.constant 0 : index
    %1 = vector.load %arg2[%c0_1, %c0_2] : memref<1x128xf32, #tpu.memory_space<vmem>>, vector<1x128xf32>
    %2 = vector.broadcast %1 : vector<1x128xf32> to vector<512x128xf32>
    %3 = arith.mulf %0, %2 : vector<512x128xf32>
    %c0_3 = arith.constant 0 : index
    %c0_4 = arith.constant 0 : index
    %4 = vector.load %arg3[%c0_3, %c0_4] : memref<1x128xf32, #tpu.memory_space<vmem>>, vector<1x128xf32>
    %5 = vector.broadcast %4 : vector<1x128xf32> to vector<512x128xf32>
    %6 = arith.addf %3, %5 : vector<512x128xf32>
    %c0_5 = arith.constant 0 : index
    %c0_6 = arith.constant 0 : index
    %7 = vector.load %arg4[%c0_5, %c0_6] : memref<512x128xf32, #tpu.memory_space<vmem>>, vector<512x128xf32>
    %8 = arith.addf %7, %6 : vector<512x128xf32>
    %c0_7 = arith.constant 0 : index
    %c0_8 = arith.constant 0 : index
    %9 = vector.load %arg5[%c0_7, %c0_8] : memref<512x128xf32, #tpu.memory_space<vmem>>, vector<512x128xf32>
    tpu.vector_store %arg5[%c0_7, %c0_8], %8 {strides = array<i32>} : memref<512x128xf32, #tpu.memory_space<vmem>>, vector<512x128xf32>,
    return
  }
  func.func @transform_0(%arg0: i32) -> (i32, i32) {
    %c0_i32 = arith.constant 0 : i32
    %c0_i32_0 = arith.constant 0 : i32
    return %arg0, %c0_i32 : i32, i32
  }
  func.func @transform_1(%arg0: i32) -> (i32, i32) {
    %c0_i32 = arith.constant 0 : i32
    %c0_i32_0 = arith.constant 0 : i32
    %c0_i32_1 = arith.constant 0 : i32
    return %c0_i32, %c0_i32_0 : i32, i32
  }
  func.func @transform_2(%arg0: i32) -> (i32, i32) {
    %c0_i32 = arith.constant 0 : i32
    %c0_i32_0 = arith.constant 0 : i32
    %c0_i32_1 = arith.constant 0 : i32
    return %c0_i32, %c0_i32_0 : i32, i32
  }
  func.func @transform_3(%arg0: i32) -> (i32, i32) {
    %c0_i32 = arith.constant 0 : i32
    %c0_i32_0 = arith.constant 0 : i32
    return %arg0, %c0_i32 : i32, i32
  }
  func.func @transform_4(%arg0: i32) -> (i32, i32) {
    %c0_i32 = arith.constant 0 : i32
    %c0_i32_0 = arith.constant 0 : i32
    return %arg0, %c0_i32 : i32, i32
  }
}

</mosaic_0001>

<llo_original>
// kernel: resblock_forward.5
$region0: #{resblock_forward.5}
  #allocation0 [shape = 'u32[]', space=smem, size = 0x4, offset = 0x4, fixed_abs, tag = 'smem constant byte address 0x4 - core index']
  #allocation1 [shape = 'u32[72,128]{1,0:T(1,128)}', space=vmem, size = 0x9000, scoped, tag = 'internal scratch']
  %s0 = inlined_call_operand.vmem [shape: f32[512,128], index: 0, kind: input, shape index: {}]
  %s1 = inlined_call_operand.vmem [shape: f32[1,128], index: 1, kind: input, shape index: {}]
  %s2 = inlined_call_operand.vmem [shape: f32[1,128], index: 2, kind: input, shape index: {}]
  %s3 = inlined_call_operand.vmem [shape: bf16[512,128], index: 3, kind: output, shape index: {}]
  %s4 = sld [smem:[#allocation0]]
  $region22: #{resblock_forward.5} parent=0
    _
  %s6 = ssub.s32 1, %s4
  %s7 = scalar_select 0, %s6, %s4
  // Predicated region
  $region2: #{resblock_forward.5} parent=0 // pred_check
    _
  $region3: #{resblock_forward.5} parent=0 // pred_check_branch
    %9 = sbr.rel (0) target = $region5
  $region4: #{resblock_forward.5} parent=0 // pred_region
    _
  $region5: #{resblock_forward.5} parent=0 // pred_fallthru
    _
  // Predicated region
  $region6: #{resblock_forward.5} parent=0 // pred_check
    _
  $region7: #{resblock_forward.5} parent=0 // pred_check_branch
    %11 = sbr.rel (0) target = $region9
  $region8: #{resblock_forward.5} parent=0 // pred_region
    _
  $region9: #{resblock_forward.5} parent=0 // pred_fallthru
    _
  // Predicated region
  $region10: #{resblock_forward.5} parent=0 // pred_check
    _
  $region11: #{resblock_forward.5} parent=0 // pred_check_branch
    %13 = sbr.rel (0) target = $region13
  $region12: #{resblock_forward.5} parent=0 // pred_region
    _
  $region13: #{resblock_forward.5} parent=0 // pred_fallthru
    _
  %v14 = vld [vmem:[%s0] sm:$0xff]
  %v15 = vld [vmem:[%s0 + $0x8] sm:$0xff]
  %v16 = vld [vmem:[%s0 + $0x10] sm:$0xff]
  %v17 = vld [vmem:[%s0 + $0x18] sm:$0xff]
  %v18 = vld [vmem:[%s0 + $0x20] sm:$0xff]
  %v19 = vld [vmem:[%s0 + $0x28] sm:$0xff]
  %v20 = vld [vmem:[%s0 + $0x30] sm:$0xff]
  %v21 = vld [vmem:[%s0 + $0x38] sm:$0xff]
  %v22 = vld [vmem:[%s0 + $0x40] sm:$0xff]
  %v23 = vld [vmem:[%s0 + $0x48] sm:$0xff]
  %v24 = vld [vmem:[%s0 + $0x50] sm:$0xff]
  %v25 = vld [vmem:[%s0 + $0x58] sm:$0xff]
  %v26 = vld [vmem:[%s0 + $0x60] sm:$0xff]
  %v27 = vld [vmem:[%s0 + $0x68] sm:$0xff]
  %v28 = vld [vmem:[%s0 + $0x70] sm:$0xff]
  %v29 = vld [vmem:[%s0 + $0x78] sm:$0xff]
  %v30 = vld [vmem:[%s0 + $0x80] sm:$0xff]
  %v31 = vld [vmem:[%s0 + $0x88] sm:$0xff]
  %v32 = vld [vmem:[%s0 + $0x90] sm:$0xff]
  %v33 = vld [vmem:[%s0 + $0x98] sm:$0xff]
  %v34 = vld [vmem:[%s0 + $0xa0] sm:$0xff]
  %v35 = vld [vmem:[%s0 + $0xa8] sm:$0xff]
  %v36 = vld [vmem:[%s0 + $0xb0] sm:$0xff]
  %v37 = vld [vmem:[%s0 + $0xb8] sm:$0xff]
  %v38 = vld [vmem:[%s0 + $0xc0] sm:$0xff]
  %v39 = vld [vmem:[%s0 + $0xc8] sm:$0xff]
  %v40 = vld [vmem:[%s0 + $0xd0] sm:$0xff]
  %v41 = vld [vmem:[%s0 + $0xd8] sm:$0xff]
  %v42 = vld [vmem:[%s0 + $0xe0] sm:$0xff]
  %v43 = vld [vmem:[%s0 + $0xe8] sm:$0xff]
  %v44 = vld [vmem:[%s0 + $0xf0] sm:$0xff]
  %v45 = vld [vmem:[%s0 + $0xf8] sm:$0xff]
  %v46 = vld [vmem:[%s0 + $0x100] sm:$0xff]
  %v47 = vld [vmem:[%s0 + $0x108] sm:$0xff]
  %v48 = vld [vmem:[%s0 + $0x110] sm:$0xff]
  %v49 = vld [vmem:[%s0 + $0x118] sm:$0xff]
  %v50 = vld [vmem:[%s0 + $0x120] sm:$0xff]
  %v51 = vld [vmem:[%s0 + $0x128] sm:$0xff]
  %v52 = vld [vmem:[%s0 + $0x130] sm:$0xff]
  %v53 = vld [vmem:[%s0 + $0x138] sm:$0xff]
  %v54 = vld [vmem:[%s0 + $0x140] sm:$0xff]
  %v55 = vld [vmem:[%s0 + $0x148] sm:$0xff]
  %v56 = vld [vmem:[%s0 + $0x150] sm:$0xff]
  %v57 = vld [vmem:[%s0 + $0x158] sm:$0xff]
  %v58 = vld [vmem:[%s0 + $0x160] sm:$0xff]
  %v59 = vld [vmem:[%s0 + $0x168] sm:$0xff]
  %v60 = vld [vmem:[%s0 + $0x170] sm:$0xff]
  %v61 = vld [vmem:[%s0 + $0x178] sm:$0xff]
  %v62 = vld [vmem:[%s0 + $0x180] sm:$0xff]
  %v63 = vld [vmem:[%s0 + $0x188] sm:$0xff]
  %v64 = vld [vmem:[%s0 + $0x190] sm:$0xff]
  %v65 = vld [vmem:[%s0 + $0x198] sm:$0xff]
  %v66 = vld [vmem:[%s0 + $0x1a0] sm:$0xff]
  %v67 = vld [vmem:[%s0 + $0x1a8] sm:$0xff]
  %v68 = vld [vmem:[%s0 + $0x1b0] sm:$0xff]
  %v69 = vld [vmem:[%s0 + $0x1b8] sm:$0xff]
  %v70 = vld [vmem:[%s0 + $0x1c0] sm:$0xff]
  %v71 = vld [vmem:[%s0 + $0x1c8] sm:$0xff]
  %v72 = vld [vmem:[%s0 + $0x1d0] sm:$0xff]
  %v73 = vld [vmem:[%s0 + $0x1d8] sm:$0xff]
  %v74 = vld [vmem:[%s0 + $0x1e0] sm:$0xff]
  %v75 = vld [vmem:[%s0 + $0x1e8] sm:$0xff]
  %v76 = vld [vmem:[%s0 + $0x1f0] sm:$0xff]
  %v77 = vld [vmem:[%s0 + $0x1f8] sm:$0xff]
  %v78 = vld [vmem:[%s1] sm:$0x1]
  %v80 = vperm.slane %v78, 0
  %v82 = vmul.f32 %v14, %v80
  %v83 = vmul.f32 %v15, %v80
  %v84 = vmul.f32 %v16, %v80
  %v85 = vmul.f32 %v17, %v80
  %v86 = vmul.f32 %v18, %v80
  %v87 = vmul.f32 %v19, %v80
  %v88 = vmul.f32 %v20, %v80
  %v89 = vmul.f32 %v21, %v80
  %v90 = vmul.f32 %v22, %v80
  %v91 = vmul.f32 %v23, %v80
  %v92 = vmul.f32 %v24, %v80
  %v93 = vmul.f32 %v25, %v80
  %v94 = vmul.f32 %v26, %v80
  %v95 = vmul.f32 %v27, %v80
  %v96 = vmul.f32 %v28, %v80
  %v97 = vmul.f32 %v29, %v80
  %v98 = vmul.f32 %v30, %v80
  %v99 = vmul.f32 %v31, %v80
  %v100 = vmul.f32 %v32, %v80
  %v101 = vmul.f32 %v33, %v80
  %v102 = vmul.f32 %v34, %v80
  %v103 = vmul.f32 %v35, %v80
  %v104 = vmul.f32 %v36, %v80
  %v105 = vmul.f32 %v37, %v80
  %v106 = vmul.f32 %v38, %v80
  %v107 = vmul.f32 %v39, %v80
  %v108 = vmul.f32 %v40, %v80
  %v109 = vmul.f32 %v41, %v80
  %v110 = vmul.f32 %v42, %v80
  %v111 = vmul.f32 %v43, %v80
  %v112 = vmul.f32 %v44, %v80
  %v113 = vmul.f32 %v45, %v80
  %v114 = vmul.f32 %v46, %v80
  %v115 = vmul.f32 %v47, %v80
  %v116 = vmul.f32 %v48, %v80
  %v117 = vmul.f32 %v49, %v80
  %v118 = vmul.f32 %v50, %v80
  %v119 = vmul.f32 %v51, %v80
  %v120 = vmul.f32 %v52, %v80
  %v121 = vmul.f32 %v53, %v80
  %v122 = vmul.f32 %v54, %v80
  %v123 = vmul.f32 %v55, %v80
  %v124 = vmul.f32 %v56, %v80
  %v125 = vmul.f32 %v57, %v80
  %v126 = vmul.f32 %v58, %v80
  %v127 = vmul.f32 %v59, %v80
  %v128 = vmul.f32 %v60, %v80
  %v129 = vmul.f32 %v61, %v80
  %v130 = vmul.f32 %v62, %v80
  %v131 = vmul.f32 %v63, %v80
  %v132 = vmul.f32 %v64, %v80
  %v133 = vmul.f32 %v65, %v80
  %v134 = vmul.f32 %v66, %v80
  %v135 = vmul.f32 %v67, %v80
  %v136 = vmul.f32 %v68, %v80
  %v137 = vmul.f32 %v69, %v80
  %v138 = vmul.f32 %v70, %v80
  %v139 = vmul.f32 %v71, %v80
  %v140 = vmul.f32 %v72, %v80
  %v141 = vmul.f32 %v73, %v80
  %v142 = vmul.f32 %v74, %v80
  %v143 = vmul.f32 %v75, %v80
  %v144 = vmul.f32 %v76, %v80
  %v145 = vmul.f32 %v77, %v80
  %v146 = vld [vmem:[%s2] sm:$0x1]
  %v148 = vperm.slane %v146, 0
  %v150 = vadd.f32 %v82, %v148
  %v151 = vadd.f32 %v83, %v148
  %v152 = vadd.f32 %v84, %v148
  %v153 = vadd.f32 %v85, %v148
  %v154 = vadd.f32 %v86, %v148
  %v155 = vadd.f32 %v87, %v148
  %v156 = vadd.f32 %v88, %v148
  %v157 = vadd.f32 %v89, %v148
  %v158 = vadd.f32 %v90, %v148
  %v159 = vadd.f32 %v91, %v148
  %v160 = vadd.f32 %v92, %v148
  %v161 = vadd.f32 %v93, %v148
  %v162 = vadd.f32 %v94, %v148
  %v163 = vadd.f32 %v95, %v148
  %v164 = vadd.f32 %v96, %v148
  %v165 = vadd.f32 %v97, %v148
  %v166 = vadd.f32 %v98, %v148
  %v167 = vadd.f32 %v99, %v148
  %v168 = vadd.f32 %v100, %v148
  %v169 = vadd.f32 %v101, %v148
  %v170 = vadd.f32 %v102, %v148
  %v171 = vadd.f32 %v103, %v148
  %v172 = vadd.f32 %v104, %v148
  %v173 = vadd.f32 %v105, %v148
  %v174 = vadd.f32 %v106, %v148
  %v175 = vadd.f32 %v107, %v148
  %v176 = vadd.f32 %v108, %v148
  %v177 = vadd.f32 %v109, %v148
  %v178 = vadd.f32 %v110, %v148
  %v179 = vadd.f32 %v111, %v148
  %v180 = vadd.f32 %v112, %v148
  %v181 = vadd.f32 %v113, %v148
  %v182 = vadd.f32 %v114, %v148
  %v183 = vadd.f32 %v115, %v148
  %v184 = vadd.f32 %v116, %v148
  %v185 = vadd.f32 %v117, %v148
  %v186 = vadd.f32 %v118, %v148
  %v187 = vadd.f32 %v119, %v148
  %v188 = vadd.f32 %v120, %v148
  %v189 = vadd.f32 %v121, %v148
  %v190 = vadd.f32 %v122, %v148
  %v191 = vadd.f32 %v123, %v148
  %v192 = vadd.f32 %v124, %v148
  %v193 = vadd.f32 %v125, %v148
  %v194 = vadd.f32 %v126, %v148
  %v195 = vadd.f32 %v127, %v148
  %v196 = vadd.f32 %v128, %v148
  %v197 = vadd.f32 %v129, %v148
  %v198 = vadd.f32 %v130, %v148
  %v199 = vadd.f32 %v131, %v148
  %v200 = vadd.f32 %v132, %v148
  %v201 = vadd.f32 %v133, %v148
  %v202 = vadd.f32 %v134, %v148
  %v203 = vadd.f32 %v135, %v148
  %v204 = vadd.f32 %v136, %v148
  %v205 = vadd.f32 %v137, %v148
  %v206 = vadd.f32 %v138, %v148
  %v207 = vadd.f32 %v139, %v148
  %v208 = vadd.f32 %v140, %v148
  %v209 = vadd.f32 %v141, %v148
  %v210 = vadd.f32 %v142, %v148
  %v211 = vadd.f32 %v143, %v148
  %v212 = vadd.f32 %v144, %v148
  %v213 = vadd.f32 %v145, %v148
  %vm214 = vcmp.gt.f32.partialorder %v150, 0.0
  %vm215 = vcmp.gt.f32.partialorder %v151, 0.0
  %vm216 = vcmp.gt.f32.partialorder %v152, 0.0
  %vm217 = vcmp.gt.f32.partialorder %v153, 0.0
  %vm218 = vcmp.gt.f32.partialorder %v154, 0.0
  %vm219 = vcmp.gt.f32.partialorder %v155, 0.0
  %vm220 = vcmp.gt.f32.partialorder %v156, 0.0
  %vm221 = vcmp.gt.f32.partialorder %v157, 0.0
  %vm222 = vcmp.gt.f32.partialorder %v158, 0.0
  %vm223 = vcmp.gt.f32.partialorder %v159, 0.0
  %vm224 = vcmp.gt.f32.partialorder %v160, 0.0
  %vm225 = vcmp.gt.f32.partialorder %v161, 0.0
  %vm226 = vcmp.gt.f32.partialorder %v162, 0.0
  %vm227 = vcmp.gt.f32.partialorder %v163, 0.0
  %vm228 = vcmp.gt.f32.partialorder %v164, 0.0
  %vm229 = vcmp.gt.f32.partialorder %v165, 0.0
  %vm230 = vcmp.gt.f32.partialorder %v166, 0.0
  %vm231 = vcmp.gt.f32.partialorder %v167, 0.0
  %vm232 = vcmp.gt.f32.partialorder %v168, 0.0
  %vm233 = vcmp.gt.f32.partialorder %v169, 0.0
  %vm234 = vcmp.gt.f32.partialorder %v170, 0.0
  %vm235 = vcmp.gt.f32.partialorder %v171, 0.0
  %vm236 = vcmp.gt.f32.partialorder %v172, 0.0
  %vm237 = vcmp.gt.f32.partialorder %v173, 0.0
  %vm238 = vcmp.gt.f32.partialorder %v174, 0.0
  %vm239 = vcmp.gt.f32.partialorder %v175, 0.0
  %vm240 = vcmp.gt.f32.partialorder %v176, 0.0
  %vm241 = vcmp.gt.f32.partialorder %v177, 0.0
  %vm242 = vcmp.gt.f32.partialorder %v178, 0.0
  %vm243 = vcmp.gt.f32.partialorder %v179, 0.0
  %vm244 = vcmp.gt.f32.partialorder %v180, 0.0
  %vm245 = vcmp.gt.f32.partialorder %v181, 0.0
  %vm246 = vcmp.gt.f32.partialorder %v182, 0.0
  %vm247 = vcmp.gt.f32.partialorder %v183, 0.0
  %vm248 = vcmp.gt.f32.partialorder %v184, 0.0
  %vm249 = vcmp.gt.f32.partialorder %v185, 0.0
  %vm250 = vcmp.gt.f32.partialorder %v186, 0.0
  %vm251 = vcmp.gt.f32.partialorder %v187, 0.0
  %vm252 = vcmp.gt.f32.partialorder %v188, 0.0
  %vm253 = vcmp.gt.f32.partialorder %v189, 0.0
  %vm254 = vcmp.gt.f32.partialorder %v190, 0.0
  %vm255 = vcmp.gt.f32.partialorder %v191, 0.0
  %vm256 = vcmp.gt.f32.partialorder %v192, 0.0
  %vm257 = vcmp.gt.f32.partialorder %v193, 0.0
  %vm258 = vcmp.gt.f32.partialorder %v194, 0.0
  %vm259 = vcmp.gt.f32.partialorder %v195, 0.0
  %vm260 = vcmp.gt.f32.partialorder %v196, 0.0
  %vm261 = vcmp.gt.f32.partialorder %v197, 0.0
  %vm262 = vcmp.gt.f32.partialorder %v198, 0.0
  %vm263 = vcmp.gt.f32.partialorder %v199, 0.0
  %vm264 = vcmp.gt.f32.partialorder %v200, 0.0
  %vm265 = vcmp.gt.f32.partialorder %v201, 0.0
  %vm266 = vcmp.gt.f32.partialorder %v202, 0.0
  %vm267 = vcmp.gt.f32.partialorder %v203, 0.0
  %vm268 = vcmp.gt.f32.partialorder %v204, 0.0
  %vm269 = vcmp.gt.f32.partialorder %v205, 0.0
  %vm270 = vcmp.gt.f32.partialorder %v206, 0.0
  %vm271 = vcmp.gt.f32.partialorder %v207, 0.0
  %vm272 = vcmp.gt.f32.partialorder %v208, 0.0
  %vm273 = vcmp.gt.f32.partialorder %v209, 0.0
  %vm274 = vcmp.gt.f32.partialorder %v210, 0.0
  %vm275 = vcmp.gt.f32.partialorder %v211, 0.0
  %vm276 = vcmp.gt.f32.partialorder %v212, 0.0
  %vm277 = vcmp.gt.f32.partialorder %v213, 0.0
  %v278 = vmin.f32 %v150, 0.0
  %v279 = vmin.f32 %v151, 0.0
  %v280 = vmin.f32 %v152, 0.0
  %v281 = vmin.f32 %v153, 0.0
  %v282 = vmin.f32 %v154, 0.0
  %v283 = vmin.f32 %v155, 0.0
  %v284 = vmin.f32 %v156, 0.0
  %v285 = vmin.f32 %v157, 0.0
  %v286 = vmin.f32 %v158, 0.0
  %v287 = vmin.f32 %v159, 0.0
  %v288 = vmin.f32 %v160, 0.0
  %v289 = vmin.f32 %v161, 0.0
  %v290 = vmin.f32 %v162, 0.0
  %v291 = vmin.f32 %v163, 0.0
  %v292 = vmin.f32 %v164, 0.0
  %v293 = vmin.f32 %v165, 0.0
  %v294 = vmin.f32 %v166, 0.0
  %v295 = vmin.f32 %v167, 0.0
  %v296 = vmin.f32 %v168, 0.0
  %v297 = vmin.f32 %v169, 0.0
  %v298 = vmin.f32 %v170, 0.0
  %v299 = vmin.f32 %v171, 0.0
  %v300 = vmin.f32 %v172, 0.0
  %v301 = vmin.f32 %v173, 0.0
  %v302 = vmin.f32 %v174, 0.0
  %v303 = vmin.f32 %v175, 0.0
  %v304 = vmin.f32 %v176, 0.0
  %v305 = vmin.f32 %v177, 0.0
  %v306 = vmin.f32 %v178, 0.0
  %v307 = vmin.f32 %v179, 0.0
  %v308 = vmin.f32 %v180, 0.0
  %v309 = vmin.f32 %v181, 0.0
  %v310 = vmin.f32 %v182, 0.0
  %v311 = vmin.f32 %v183, 0.0
  %v312 = vmin.f32 %v184, 0.0
  %v313 = vmin.f32 %v185, 0.0
  %v314 = vmin.f32 %v186, 0.0
  %v315 = vmin.f32 %v187, 0.0
  %v316 = vmin.f32 %v188, 0.0
  %v317 = vmin.f32 %v189, 0.0
  %v318 = vmin.f32 %v190, 0.0
  %v319 = vmin.f32 %v191, 0.0
  %v320 = vmin.f32 %v192, 0.0
  %v321 = vmin.f32 %v193, 0.0
  %v322 = vmin.f32 %v194, 0.0
  %v323 = vmin.f32 %v195, 0.0
  %v324 = vmin.f32 %v196, 0.0
  %v325 = vmin.f32 %v197, 0.0
  %v326 = vmin.f32 %v198, 0.0
  %v327 = vmin.f32 %v199, 0.0
  %v328 = vmin.f32 %v200, 0.0
  %v329 = vmin.f32 %v201, 0.0
  %v330 = vmin.f32 %v202, 0.0
  %v331 = vmin.f32 %v203, 0.0
  %v332 = vmin.f32 %v204, 0.0
  %v333 = vmin.f32 %v205, 0.0
  %v334 = vmin.f32 %v206, 0.0
  %v335 = vmin.f32 %v207, 0.0
  %v336 = vmin.f32 %v208, 0.0
  %v337 = vmin.f32 %v209, 0.0
  %v338 = vmin.f32 %v210, 0.0
  %v339 = vmin.f32 %v211, 0.0
  %v340 = vmin.f32 %v212, 0.0
  %v341 = vmin.f32 %v213, 0.0
  %v342 = vmul.f32 %v278, 1.442695
  %v343 = vpow.pop %v342
  %v344 = vmul.f32 %v279, 1.442695
  %v345 = vpow.pop %v344
  %v346 = vmul.f32 %v280, 1.442695
  %v347 = vpow.pop %v346
  %v348 = vmul.f32 %v281, 1.442695
  %v349 = vpow.pop %v348
  %v350 = vmul.f32 %v282, 1.442695
  %v351 = vpow.pop %v350
  %v352 = vmul.f32 %v283, 1.442695
  %v353 = vpow.pop %v352
  %v354 = vmul.f32 %v284, 1.442695
  %v355 = vpow.pop %v354
  %v356 = vmul.f32 %v285, 1.442695
  %v357 = vpow.pop %v356
  %v358 = vmul.f32 %v286, 1.442695
  %v359 = vpow.pop %v358
  %v360 = vmul.f32 %v287, 1.442695
  %v361 = vpow.pop %v360
  %v362 = vmul.f32 %v288, 1.442695
  %v363 = vpow.pop %v362
  %v364 = vmul.f32 %v289, 1.442695
  %v365 = vpow.pop %v364
  %v366 = vmul.f32 %v290, 1.442695
  %v367 = vpow.pop %v366
  %v368 = vmul.f32 %v291, 1.442695
  %v369 = vpow.pop %v368
  %v370 = vmul.f32 %v292, 1.442695
  %v371 = vpow.pop %v370
  %v372 = vmul.f32 %v293, 1.442695
  %v373 = vpow.pop %v372
  %v374 = vmul.f32 %v294, 1.442695
  %v375 = vpow.pop %v374
  %v376 = vmul.f32 %v295, 1.442695
  %v377 = vpow.pop %v376
  %v378 = vmul.f32 %v296, 1.442695
  %v379 = vpow.pop %v378
  %v380 = vmul.f32 %v297, 1.442695
  %v381 = vpow.pop %v380
  %v382 = vmul.f32 %v298, 1.442695
  %v383 = vpow.pop %v382
  %v384 = vmul.f32 %v299, 1.442695
  %v385 = vpow.pop %v384
  %v386 = vmul.f32 %v300, 1.442695
  %v387 = vpow.pop %v386
  %v388 = vmul.f32 %v301, 1.442695
  %v389 = vpow.pop %v388
  %v390 = vmul.f32 %v302, 1.442695
  %v391 = vpow.pop %v390
  %v392 = vmul.f32 %v303, 1.442695
  %v393 = vpow.pop %v392
  %v394 = vmul.f32 %v304, 1.442695
  %v395 = vpow.pop %v394
  %v396 = vmul.f32 %v305, 1.442695
  %v397 = vpow.pop %v396
  %v398 = vmul.f32 %v306, 1.442695
  %v399 = vpow.pop %v398
  %v400 = vmul.f32 %v307, 1.442695
  %v401 = vpow.pop %v400
  %v402 = vmul.f32 %v308, 1.442695
  %v403 = vpow.pop %v402
  %v404 = vmul.f32 %v309, 1.442695
  %v405 = vpow.pop %v404
  %v406 = vmul.f32 %v310, 1.442695
  %v407 = vpow.pop %v406
  %v408 = vmul.f32 %v311, 1.442695
  %v409 = vpow.pop %v408
  %v410 = vmul.f32 %v312, 1.442695
  %v411 = vpow.pop %v410
  %v412 = vmul.f32 %v313, 1.442695
  %v413 = vpow.pop %v412
  %v414 = vmul.f32 %v314, 1.442695
  %v415 = vpow.pop %v414
  %v416 = vmul.f32 %v315, 1.442695
  %v417 = vpow.pop %v416
  %v418 = vmul.f32 %v316, 1.442695
  %v419 = vpow.pop %v418
  %v420 = vmul.f32 %v317, 1.442695
  %v421 = vpow.pop %v420
  %v422 = vmul.f32 %v318, 1.442695
  %v423 = vpow.pop %v422
  %v424 = vmul.f32 %v319, 1.442695
  %v425 = vpow.pop %v424
  %v426 = vmul.f32 %v320, 1.442695
  %v427 = vpow.pop %v426
  %v428 = vmul.f32 %v321, 1.442695
  %v429 = vpow.pop %v428
  %v430 = vmul.f32 %v322, 1.442695
  %v431 = vpow.pop %v430
  %v432 = vmul.f32 %v323, 1.442695
  %v433 = vpow.pop %v432
  %v434 = vmul.f32 %v324, 1.442695
  %v435 = vpow.pop %v434
  %v436 = vmul.f32 %v325, 1.442695
  %v437 = vpow.pop %v436
  %v438 = vmul.f32 %v326, 1.442695
  %v439 = vpow.pop %v438
  %v440 = vmul.f32 %v327, 1.442695
  %v441 = vpow.pop %v440
  %v442 = vmul.f32 %v328, 1.442695
  %v443 = vpow.pop %v442
  %v444 = vmul.f32 %v329, 1.442695
  %v445 = vpow.pop %v444
  %v446 = vmul.f32 %v330, 1.442695
  %v447 = vpow.pop %v446
  %v448 = vmul.f32 %v331, 1.442695
  %v449 = vpow.pop %v448
  %v450 = vmul.f32 %v332, 1.442695
  %v451 = vpow.pop %v450
  %v452 = vmul.f32 %v333, 1.442695
  %v453 = vpow.pop %v452
  %v454 = vmul.f32 %v334, 1.442695
  %v455 = vpow.pop %v454
  %v456 = vmul.f32 %v335, 1.442695
  %v457 = vpow.pop %v456
  %v458 = vmul.f32 %v336, 1.442695
  %v459 = vpow.pop %v458
  %v460 = vmul.f32 %v337, 1.442695
  %v461 = vpow.pop %v460
  %v462 = vmul.f32 %v338, 1.442695
  %v463 = vpow.pop %v462
  %v464 = vmul.f32 %v339, 1.442695
  %v465 = vpow.pop %v464
  %v466 = vmul.f32 %v340, 1.442695
  %v467 = vpow.pop %v466
  %v468 = vmul.f32 %v341, 1.442695
  %v469 = vpow.pop %v468
  %v470 = vsub.f32 %v343, 1.0
  %v471 = vsub.f32 %v345, 1.0
  %v472 = vsub.f32 %v347, 1.0
  %v473 = vsub.f32 %v349, 1.0
  %v474 = vsub.f32 %v351, 1.0
  %v475 = vsub.f32 %v353, 1.0
  %v476 = vsub.f32 %v355, 1.0
  %v477 = vsub.f32 %v357, 1.0
  %v478 = vsub.f32 %v359, 1.0
  %v479 = vsub.f32 %v361, 1.0
  %v480 = vsub.f32 %v363, 1.0
  %v481 = vsub.f32 %v365, 1.0
  %v482 = vsub.f32 %v367, 1.0
  %v483 = vsub.f32 %v369, 1.0
  %v484 = vsub.f32 %v371, 1.0
  %v485 = vsub.f32 %v373, 1.0
  %v486 = vsub.f32 %v375, 1.0
  %v487 = vsub.f32 %v377, 1.0
  %v488 = vsub.f32 %v379, 1.0
  %v489 = vsub.f32 %v381, 1.0
  %v490 = vsub.f32 %v383, 1.0
  %v491 = vsub.f32 %v385, 1.0
  %v492 = vsub.f32 %v387, 1.0
  %v493 = vsub.f32 %v389, 1.0
  %v494 = vsub.f32 %v391, 1.0
  %v495 = vsub.f32 %v393, 1.0
  %v496 = vsub.f32 %v395, 1.0
  %v497 = vsub.f32 %v397, 1.0
  %v498 = vsub.f32 %v399, 1.0
  %v499 = vsub.f32 %v401, 1.0
  %v500 = vsub.f32 %v403, 1.0
  %v501 = vsub.f32 %v405, 1.0
  %v502 = vsub.f32 %v407, 1.0
  %v503 = vsub.f32 %v409, 1.0
  %v504 = vsub.f32 %v411, 1.0
  %v505 = vsub.f32 %v413, 1.0
  %v506 = vsub.f32 %v415, 1.0
  %v507 = vsub.f32 %v417, 1.0
  %v508 = vsub.f32 %v419, 1.0
  %v509 = vsub.f32 %v421, 1.0
  %v510 = vsub.f32 %v423, 1.0
  %v511 = vsub.f32 %v425, 1.0
  %v512 = vsub.f32 %v427, 1.0
  %v513 = vsub.f32 %v429, 1.0
  %v514 = vsub.f32 %v431, 1.0
  %v515 = vsub.f32 %v433, 1.0
  %v516 = vsub.f32 %v435, 1.0
  %v517 = vsub.f32 %v437, 1.0
  %v518 = vsub.f32 %v439, 1.0
  %v519 = vsub.f32 %v441, 1.0
  %v520 = vsub.f32 %v443, 1.0
  %v521 = vsub.f32 %v445, 1.0
  %v522 = vsub.f32 %v447, 1.0
  %v523 = vsub.f32 %v449, 1.0
  %v524 = vsub.f32 %v451, 1.0
  %v525 = vsub.f32 %v453, 1.0
  %v526 = vsub.f32 %v455, 1.0
  %v527 = vsub.f32 %v457, 1.0
  %v528 = vsub.f32 %v459, 1.0
  %v529 = vsub.f32 %v461, 1.0
  %v530 = vsub.f32 %v463, 1.0
  %v531 = vsub.f32 %v465, 1.0
  %v532 = vsub.f32 %v467, 1.0
  %v533 = vsub.f32 %v469, 1.0
  %v534 = vsel %vm214, %v150, %v470
  %v535 = vsel %vm215, %v151, %v471
  %v536 = vsel %vm216, %v152, %v472
  %v537 = vsel %vm217, %v153, %v473
  %v538 = vsel %vm218, %v154, %v474
  %v539 = vsel %vm219, %v155, %v475
  %v540 = vsel %vm220, %v156, %v476
  %v541 = vsel %vm221, %v157, %v477
  %v542 = vsel %vm222, %v158, %v478
  %v543 = vsel %vm223, %v159, %v479
  %v544 = vsel %vm224, %v160, %v480
  %v545 = vsel %vm225, %v161, %v481
  %v546 = vsel %vm226, %v162, %v482
  %v547 = vsel %vm227, %v163, %v483
  %v548 = vsel %vm228, %v164, %v484
  %v549 = vsel %vm229, %v165, %v485
  %v550 = vsel %vm230, %v166, %v486
  %v551 = vsel %vm231, %v167, %v487
  %v552 = vsel %vm232, %v168, %v488
  %v553 = vsel %vm233, %v169, %v489
  %v554 = vsel %vm234, %v170, %v490
  %v555 = vsel %vm235, %v171, %v491
  %v556 = vsel %vm236, %v172, %v492
  %v557 = vsel %vm237, %v173, %v493
  %v558 = vsel %vm238, %v174, %v494
  %v559 = vsel %vm239, %v175, %v495
  %v560 = vsel %vm240, %v176, %v496
  %v561 = vsel %vm241, %v177, %v497
  %v562 = vsel %vm242, %v178, %v498
  %v563 = vsel %vm243, %v179, %v499
  %v564 = vsel %vm244, %v180, %v500
  %v565 = vsel %vm245, %v181, %v501
  %v566 = vsel %vm246, %v182, %v502
  %v567 = vsel %vm247, %v183, %v503
  %v568 = vsel %vm248, %v184, %v504
  %v569 = vsel %vm249, %v185, %v505
  %v570 = vsel %vm250, %v186, %v506
  %v571 = vsel %vm251, %v187, %v507
  %v572 = vsel %vm252, %v188, %v508
  %v573 = vsel %vm253, %v189, %v509
  %v574 = vsel %vm254, %v190, %v510
  %v575 = vsel %vm255, %v191, %v511
  %v576 = vsel %vm256, %v192, %v512
  %v577 = vsel %vm257, %v193, %v513
  %v578 = vsel %vm258, %v194, %v514
  %v579 = vsel %vm259, %v195, %v515
  %v580 = vsel %vm260, %v196, %v516
  %v581 = vsel %vm261, %v197, %v517
  %v582 = vsel %vm262, %v198, %v518
  %v583 = vsel %vm263, %v199, %v519
  %v584 = vsel %vm264, %v200, %v520
  %v585 = vsel %vm265, %v201, %v521
  %v586 = vsel %vm266, %v202, %v522
  %v587 = vsel %vm267, %v203, %v523
  %v588 = vsel %vm268, %v204, %v524
  %v589 = vsel %vm269, %v205, %v525
  %v590 = vsel %vm270, %v206, %v526
  %v591 = vsel %vm271, %v207, %v527
  %v592 = vsel %vm272, %v208, %v528
  %v593 = vsel %vm273, %v209, %v529
  %v594 = vsel %vm274, %v210, %v530
  %v595 = vsel %vm275, %v211, %v531
  %v596 = vsel %vm276, %v212, %v532
  %v597 = vsel %vm277, %v213, %v533
  %v598 = vpack.c.bf16 %v534, %v534
  %v599 = vpack.c.bf16 %v535, %v535
  %v600 = vpack.c.bf16 %v536, %v536
  %v601 = vpack.c.bf16 %v537, %v537
  %v602 = vpack.c.bf16 %v538, %v538
  %v603 = vpack.c.bf16 %v539, %v539
  %v604 = vpack.c.bf16 %v540, %v540
  %v605 = vpack.c.bf16 %v541, %v541
  %v606 = vpack.c.bf16 %v542, %v542
  %v607 = vpack.c.bf16 %v543, %v543
  %v608 = vpack.c.bf16 %v544, %v544
  %v609 = vpack.c.bf16 %v545, %v545
  %v610 = vpack.c.bf16 %v546, %v546
  %v611 = vpack.c.bf16 %v547, %v547
  %v612 = vpack.c.bf16 %v548, %v548
  %v613 = vpack.c.bf16 %v549, %v549
  %v614 = vpack.c.bf16 %v550, %v550
  %v615 = vpack.c.bf16 %v551, %v551
  %v616 = vpack.c.bf16 %v552, %v552
  %v617 = vpack.c.bf16 %v553, %v553
  %v618 = vpack.c.bf16 %v554, %v554
  %v619 = vpack.c.bf16 %v555, %v555
  %v620 = vpack.c.bf16 %v556, %v556
  %v621 = vpack.c.bf16 %v557, %v557
  %v622 = vpack.c.bf16 %v558, %v558
  %v623 = vpack.c.bf16 %v559, %v559
  %v624 = vpack.c.bf16 %v560, %v560
  %v625 = vpack.c.bf16 %v561, %v561
  %v626 = vpack.c.bf16 %v562, %v562
  %v627 = vpack.c.bf16 %v563, %v563
  %v628 = vpack.c.bf16 %v564, %v564
  %v629 = vpack.c.bf16 %v565, %v565
  %v630 = vpack.c.bf16 %v566, %v566
  %v631 = vpack.c.bf16 %v567, %v567
  %v632 = vpack.c.bf16 %v568, %v568
  %v633 = vpack.c.bf16 %v569, %v569
  %v634 = vpack.c.bf16 %v570, %v570
  %v635 = vpack.c.bf16 %v571, %v571
  %v636 = vpack.c.bf16 %v572, %v572
  %v637 = vpack.c.bf16 %v573, %v573
  %v638 = vpack.c.bf16 %v574, %v574
  %v639 = vpack.c.bf16 %v575, %v575
  %v640 = vpack.c.bf16 %v576, %v576
  %v641 = vpack.c.bf16 %v577, %v577
  %v642 = vpack.c.bf16 %v578, %v578
  %v643 = vpack.c.bf16 %v579, %v579
  %v644 = vpack.c.bf16 %v580, %v580
  %v645 = vpack.c.bf16 %v581, %v581
  %v646 = vpack.c.bf16 %v582, %v582
  %v647 = vpack.c.bf16 %v583, %v583
  %v648 = vpack.c.bf16 %v584, %v584
  %v649 = vpack.c.bf16 %v585, %v585
  %v650 = vpack.c.bf16 %v586, %v586
  %v651 = vpack.c.bf16 %v587, %v587
  %v652 = vpack.c.bf16 %v588, %v588
  %v653 = vpack.c.bf16 %v589, %v589
  %v654 = vpack.c.bf16 %v590, %v590
  %v655 = vpack.c.bf16 %v591, %v591
  %v656 = vpack.c.bf16 %v592, %v592
  %v657 = vpack.c.bf16 %v593, %v593
  %v658 = vpack.c.bf16 %v594, %v594
  %v659 = vpack.c.bf16 %v595, %v595
  %v660 = vpack.c.bf16 %v596, %v596
  %v661 = vpack.c.bf16 %v597, %v597
  %662 = vst [vmem:[%s3] sm:$0xf] %v598
  %663 = vst [vmem:[%s3 + $0x4] sm:$0xf] %v599
  %664 = vst [vmem:[%s3 + $0x8] sm:$0xf] %v600
  %665 = vst [vmem:[%s3 + $0xc] sm:$0xf] %v601
  %666 = vst [vmem:[%s3 + $0x10] sm:$0xf] %v602
  %667 = vst [vmem:[%s3 + $0x14] sm:$0xf] %v603
  %668 = vst [vmem:[%s3 + $0x18] sm:$0xf] %v604
  %669 = vst [vmem:[%s3 + $0x1c] sm:$0xf] %v605
  %670 = vst [vmem:[%s3 + $0x20] sm:$0xf] %v606
  %671 = vst [vmem:[%s3 + $0x24] sm:$0xf] %v607
  %672 = vst [vmem:[%s3 + $0x28] sm:$0xf] %v608
  %673 = vst [vmem:[%s3 + $0x2c] sm:$0xf] %v609
  %674 = vst [vmem:[%s3 + $0x30] sm:$0xf] %v610
  %675 = vst [vmem:[%s3 + $0x34] sm:$0xf] %v611
  %676 = vst [vmem:[%s3 + $0x38] sm:$0xf] %v612
  %677 = vst [vmem:[%s3 + $0x3c] sm:$0xf] %v613
  %678 = vst [vmem:[%s3 + $0x40] sm:$0xf] %v614
  %679 = vst [vmem:[%s3 + $0x44] sm:$0xf] %v615
  %680 = vst [vmem:[%s3 + $0x48] sm:$0xf] %v616
  %681 = vst [vmem:[%s3 + $0x4c] sm:$0xf] %v617
  %682 = vst [vmem:[%s3 + $0x50] sm:$0xf] %v618
  %683 = vst [vmem:[%s3 + $0x54] sm:$0xf] %v619
  %684 = vst [vmem:[%s3 + $0x58] sm:$0xf] %v620
  %685 = vst [vmem:[%s3 + $0x5c] sm:$0xf] %v621
  %686 = vst [vmem:[%s3 + $0x60] sm:$0xf] %v622
  %687 = vst [vmem:[%s3 + $0x64] sm:$0xf] %v623
  %688 = vst [vmem:[%s3 + $0x68] sm:$0xf] %v624
  %689 = vst [vmem:[%s3 + $0x6c] sm:$0xf] %v625
  %690 = vst [vmem:[%s3 + $0x70] sm:$0xf] %v626
  %691 = vst [vmem:[%s3 + $0x74] sm:$0xf] %v627
  %692 = vst [vmem:[%s3 + $0x78] sm:$0xf] %v628
  %693 = vst [vmem:[%s3 + $0x7c] sm:$0xf] %v629
  %694 = vst [vmem:[%s3 + $0x80] sm:$0xf] %v630
  %695 = vst [vmem:[%s3 + $0x84] sm:$0xf] %v631
  %696 = vst [vmem:[%s3 + $0x88] sm:$0xf] %v632
  %697 = vst [vmem:[%s3 + $0x8c] sm:$0xf] %v633
  %698 = vst [vmem:[%s3 + $0x90] sm:$0xf] %v634
  %699 = vst [vmem:[%s3 + $0x94] sm:$0xf] %v635
  %700 = vst [vmem:[%s3 + $0x98] sm:$0xf] %v636
  %701 = vst [vmem:[%s3 + $0x9c] sm:$0xf] %v637
  %702 = vst [vmem:[%s3 + $0xa0] sm:$0xf] %v638
  %703 = vst [vmem:[%s3 + $0xa4] sm:$0xf] %v639
  %704 = vst [vmem:[%s3 + $0xa8] sm:$0xf] %v640
  %705 = vst [vmem:[%s3 + $0xac] sm:$0xf] %v641
  %706 = vst [vmem:[%s3 + $0xb0] sm:$0xf] %v642
  %707 = vst [vmem:[%s3 + $0xb4] sm:$0xf] %v643
  %708 = vst [vmem:[%s3 + $0xb8] sm:$0xf] %v644
  %709 = vst [vmem:[%s3 + $0xbc] sm:$0xf] %v645
  %710 = vst [vmem:[%s3 + $0xc0] sm:$0xf] %v646
  %711 = vst [vmem:[%s3 + $0xc4] sm:$0xf] %v647
  %712 = vst [vmem:[%s3 + $0xc8] sm:$0xf] %v648
  %713 = vst [vmem:[%s3 + $0xcc] sm:$0xf] %v649
  %714 = vst [vmem:[%s3 + $0xd0] sm:$0xf] %v650
  %715 = vst [vmem:[%s3 + $0xd4] sm:$0xf] %v651
  %716 = vst [vmem:[%s3 + $0xd8] sm:$0xf] %v652
  %717 = vst [vmem:[%s3 + $0xdc] sm:$0xf] %v653
  %718 = vst [vmem:[%s3 + $0xe0] sm:$0xf] %v654
  %719 = vst [vmem:[%s3 + $0xe4] sm:$0xf] %v655
  %720 = vst [vmem:[%s3 + $0xe8] sm:$0xf] %v656
  %721 = vst [vmem:[%s3 + $0xec] sm:$0xf] %v657
  %722 = vst [vmem:[%s3 + $0xf0] sm:$0xf] %v658
  %723 = vst [vmem:[%s3 + $0xf4] sm:$0xf] %v659
  %724 = vst [vmem:[%s3 + $0xf8] sm:$0xf] %v660
  %725 = vst [vmem:[%s3 + $0xfc] sm:$0xf] %v661
  // Predicated region
  $region14: #{resblock_forward.5} parent=0 // pred_check
    _
  $region15: #{resblock_forward.5} parent=0 // pred_check_branch
    %727 = sbr.rel (0) target = $region17
  $region16: #{resblock_forward.5} parent=0 // pred_region
    _
  $region17: #{resblock_forward.5} parent=0 // pred_fallthru
    _
  // Predicated region
  $region18: #{resblock_forward.5} parent=0 // pred_check
    _
  $region19: #{resblock_forward.5} parent=0 // pred_check_branch
    %729 = sbr.rel (0) target = $region21
  $region20: #{resblock_forward.5} parent=0 // pred_region
    _
  $region21: #{resblock_forward.5} parent=0 // pred_fallthru
    _

// kernel: resblock_forward.7
$region0: #{resblock_forward.7}
  #allocation0 [shape = 'u32[]', space=smem, size = 0x4, offset = 0x4, fixed_abs, tag = 'smem constant byte address 0x4 - core index']
  #allocation1 [shape = 'u32[72,128]{1,0:T(1,128)}', space=vmem, size = 0x9000, scoped, tag = 'internal scratch']
  %s0 = inlined_call_operand.vmem [shape: f32[512,128], index: 0, kind: input, shape index: {}]
  %s1 = inlined_call_operand.vmem [shape: f32[1,128], index: 1, kind: input, shape index: {}]
  %s2 = inlined_call_operand.vmem [shape: f32[1,128], index: 2, kind: input, shape index: {}]
  %s3 = inlined_call_operand.vmem [shape: f32[512,128], index: 3, kind: input, shape index: {}]
  %s4 = inlined_call_operand.vmem [shape: f32[512,128], index: 4, kind: output, shape index: {}]
  %s5 = sld [smem:[#allocation0]]
  $region26: #{resblock_forward.7} parent=0
    _
  %s7 = ssub.s32 1, %s5
  %s8 = scalar_select 0, %s7, %s5
  // Predicated region
  $region2: #{resblock_forward.7} parent=0 // pred_check
    _
  $region3: #{resblock_forward.7} parent=0 // pred_check_branch
    %10 = sbr.rel (0) target = $region5
  $region4: #{resblock_forward.7} parent=0 // pred_region
    _
  $region5: #{resblock_forward.7} parent=0 // pred_fallthru
    _
  // Predicated region
  $region6: #{resblock_forward.7} parent=0 // pred_check
    _
  $region7: #{resblock_forward.7} parent=0 // pred_check_branch
    %12 = sbr.rel (0) target = $region9
  $region8: #{resblock_forward.7} parent=0 // pred_region
    _
  $region9: #{resblock_forward.7} parent=0 // pred_fallthru
    _
  // Predicated region
  $region10: #{resblock_forward.7} parent=0 // pred_check
    _
  $region11: #{resblock_forward.7} parent=0 // pred_check_branch
    %14 = sbr.rel (0) target = $region13
  $region12: #{resblock_forward.7} parent=0 // pred_region
    _
  $region13: #{resblock_forward.7} parent=0 // pred_fallthru
    _
  // Predicated region
  $region14: #{resblock_forward.7} parent=0 // pred_check
    _
  $region15: #{resblock_forward.7} parent=0 // pred_check_branch
    %16 = sbr.rel (0) target = $region17
  $region16: #{resblock_forward.7} parent=0 // pred_region
    _
  $region17: #{resblock_forward.7} parent=0 // pred_fallthru
    _
  %v17 = vld [vmem:[%s0] sm:$0xff]
  %v18 = vld [vmem:[%s0 + $0x8] sm:$0xff]
  %v19 = vld [vmem:[%s0 + $0x10] sm:$0xff]
  %v20 = vld [vmem:[%s0 + $0x18] sm:$0xff]
  %v21 = vld [vmem:[%s0 + $0x20] sm:$0xff]
  %v22 = vld [vmem:[%s0 + $0x28] sm:$0xff]
  %v23 = vld [vmem:[%s0 + $0x30] sm:$0xff]
  %v24 = vld [vmem:[%s0 + $0x38] sm:$0xff]
  %v25 = vld [vmem:[%s0 + $0x40] sm:$0xff]
  %v26 = vld [vmem:[%s0 + $0x48] sm:$0xff]
  %v27 = vld [vmem:[%s0 + $0x50] sm:$0xff]
  %v28 = vld [vmem:[%s0 + $0x58] sm:$0xff]
  %v29 = vld [vmem:[%s0 + $0x60] sm:$0xff]
  %v30 = vld [vmem:[%s0 + $0x68] sm:$0xff]
  %v31 = vld [vmem:[%s0 + $0x70] sm:$0xff]
  %v32 = vld [vmem:[%s0 + $0x78] sm:$0xff]
  %v33 = vld [vmem:[%s0 + $0x80] sm:$0xff]
  %v34 = vld [vmem:[%s0 + $0x88] sm:$0xff]
  %v35 = vld [vmem:[%s0 + $0x90] sm:$0xff]
  %v36 = vld [vmem:[%s0 + $0x98] sm:$0xff]
  %v37 = vld [vmem:[%s0 + $0xa0] sm:$0xff]
  %v38 = vld [vmem:[%s0 + $0xa8] sm:$0xff]
  %v39 = vld [vmem:[%s0 + $0xb0] sm:$0xff]
  %v40 = vld [vmem:[%s0 + $0xb8] sm:$0xff]
  %v41 = vld [vmem:[%s0 + $0xc0] sm:$0xff]
  %v42 = vld [vmem:[%s0 + $0xc8] sm:$0xff]
  %v43 = vld [vmem:[%s0 + $0xd0] sm:$0xff]
  %v44 = vld [vmem:[%s0 + $0xd8] sm:$0xff]
  %v45 = vld [vmem:[%s0 + $0xe0] sm:$0xff]
  %v46 = vld [vmem:[%s0 + $0xe8] sm:$0xff]
  %v47 = vld [vmem:[%s0 + $0xf0] sm:$0xff]
  %v48 = vld [vmem:[%s0 + $0xf8] sm:$0xff]
  %v49 = vld [vmem:[%s0 + $0x100] sm:$0xff]
  %v50 = vld [vmem:[%s0 + $0x108] sm:$0xff]
  %v51 = vld [vmem:[%s0 + $0x110] sm:$0xff]
  %v52 = vld [vmem:[%s0 + $0x118] sm:$0xff]
  %v53 = vld [vmem:[%s0 + $0x120] sm:$0xff]
  %v54 = vld [vmem:[%s0 + $0x128] sm:$0xff]
  %v55 = vld [vmem:[%s0 + $0x130] sm:$0xff]
  %v56 = vld [vmem:[%s0 + $0x138] sm:$0xff]
  %v57 = vld [vmem:[%s0 + $0x140] sm:$0xff]
  %v58 = vld [vmem:[%s0 + $0x148] sm:$0xff]
  %v59 = vld [vmem:[%s0 + $0x150] sm:$0xff]
  %v60 = vld [vmem:[%s0 + $0x158] sm:$0xff]
  %v61 = vld [vmem:[%s0 + $0x160] sm:$0xff]
  %v62 = vld [vmem:[%s0 + $0x168] sm:$0xff]
  %v63 = vld [vmem:[%s0 + $0x170] sm:$0xff]
  %v64 = vld [vmem:[%s0 + $0x178] sm:$0xff]
  %v65 = vld [vmem:[%s0 + $0x180] sm:$0xff]
  %v66 = vld [vmem:[%s0 + $0x188] sm:$0xff]
  %v67 = vld [vmem:[%s0 + $0x190] sm:$0xff]
  %v68 = vld [vmem:[%s0 + $0x198] sm:$0xff]
  %v69 = vld [vmem:[%s0 + $0x1a0] sm:$0xff]
  %v70 = vld [vmem:[%s0 + $0x1a8] sm:$0xff]
  %v71 = vld [vmem:[%s0 + $0x1b0] sm:$0xff]
  %v72 = vld [vmem:[%s0 + $0x1b8] sm:$0xff]
  %v73 = vld [vmem:[%s0 + $0x1c0] sm:$0xff]
  %v74 = vld [vmem:[%s0 + $0x1c8] sm:$0xff]
  %v75 = vld [vmem:[%s0 + $0x1d0] sm:$0xff]
  %v76 = vld [vmem:[%s0 + $0x1d8] sm:$0xff]
  %v77 = vld [vmem:[%s0 + $0x1e0] sm:$0xff]
  %v78 = vld [vmem:[%s0 + $0x1e8] sm:$0xff]
  %v79 = vld [vmem:[%s0 + $0x1f0] sm:$0xff]
  %v80 = vld [vmem:[%s0 + $0x1f8] sm:$0xff]
  %v81 = vld [vmem:[%s1] sm:$0x1]
  %v83 = vperm.slane %v81, 0
  %v85 = vmul.f32 %v17, %v83
  %v86 = vmul.f32 %v18, %v83
  %v87 = vmul.f32 %v19, %v83
  %v88 = vmul.f32 %v20, %v83
  %v89 = vmul.f32 %v21, %v83
  %v90 = vmul.f32 %v22, %v83
  %v91 = vmul.f32 %v23, %v83
  %v92 = vmul.f32 %v24, %v83
  %v93 = vmul.f32 %v25, %v83
  %v94 = vmul.f32 %v26, %v83
  %v95 = vmul.f32 %v27, %v83
  %v96 = vmul.f32 %v28, %v83
  %v97 = vmul.f32 %v29, %v83
  %v98 = vmul.f32 %v30, %v83
  %v99 = vmul.f32 %v31, %v83
  %v100 = vmul.f32 %v32, %v83
  %v101 = vmul.f32 %v33, %v83
  %v102 = vmul.f32 %v34, %v83
  %v103 = vmul.f32 %v35, %v83
  %v104 = vmul.f32 %v36, %v83
  %v105 = vmul.f32 %v37, %v83
  %v106 = vmul.f32 %v38, %v83
  %v107 = vmul.f32 %v39, %v83
  %v108 = vmul.f32 %v40, %v83
  %v109 = vmul.f32 %v41, %v83
  %v110 = vmul.f32 %v42, %v83
  %v111 = vmul.f32 %v43, %v83
  %v112 = vmul.f32 %v44, %v83
  %v113 = vmul.f32 %v45, %v83
  %v114 = vmul.f32 %v46, %v83
  %v115 = vmul.f32 %v47, %v83
  %v116 = vmul.f32 %v48, %v83
  %v117 = vmul.f32 %v49, %v83
  %v118 = vmul.f32 %v50, %v83
  %v119 = vmul.f32 %v51, %v83
  %v120 = vmul.f32 %v52, %v83
  %v121 = vmul.f32 %v53, %v83
  %v122 = vmul.f32 %v54, %v83
  %v123 = vmul.f32 %v55, %v83
  %v124 = vmul.f32 %v56, %v83
  %v125 = vmul.f32 %v57, %v83
  %v126 = vmul.f32 %v58, %v83
  %v127 = vmul.f32 %v59, %v83
  %v128 = vmul.f32 %v60, %v83
  %v129 = vmul.f32 %v61, %v83
  %v130 = vmul.f32 %v62, %v83
  %v131 = vmul.f32 %v63, %v83
  %v132 = vmul.f32 %v64, %v83
  %v133 = vmul.f32 %v65, %v83
  %v134 = vmul.f32 %v66, %v83
  %v135 = vmul.f32 %v67, %v83
  %v136 = vmul.f32 %v68, %v83
  %v137 = vmul.f32 %v69, %v83
  %v138 = vmul.f32 %v70, %v83
  %v139 = vmul.f32 %v71, %v83
  %v140 = vmul.f32 %v72, %v83
  %v141 = vmul.f32 %v73, %v83
  %v142 = vmul.f32 %v74, %v83
  %v143 = vmul.f32 %v75, %v83
  %v144 = vmul.f32 %v76, %v83
  %v145 = vmul.f32 %v77, %v83
  %v146 = vmul.f32 %v78, %v83
  %v147 = vmul.f32 %v79, %v83
  %v148 = vmul.f32 %v80, %v83
  %v149 = vld [vmem:[%s2] sm:$0x1]
  %v151 = vperm.slane %v149, 0
  %v153 = vadd.f32 %v85, %v151
  %v154 = vadd.f32 %v86, %v151
  %v155 = vadd.f32 %v87, %v151
  %v156 = vadd.f32 %v88, %v151
  %v157 = vadd.f32 %v89, %v151
  %v158 = vadd.f32 %v90, %v151
  %v159 = vadd.f32 %v91, %v151
  %v160 = vadd.f32 %v92, %v151
  %v161 = vadd.f32 %v93, %v151
  %v162 = vadd.f32 %v94, %v151
  %v163 = vadd.f32 %v95, %v151
  %v164 = vadd.f32 %v96, %v151
  %v165 = vadd.f32 %v97, %v151
  %v166 = vadd.f32 %v98, %v151
  %v167 = vadd.f32 %v99, %v151
  %v168 = vadd.f32 %v100, %v151
  %v169 = vadd.f32 %v101, %v151
  %v170 = vadd.f32 %v102, %v151
  %v171 = vadd.f32 %v103, %v151
  %v172 = vadd.f32 %v104, %v151
  %v173 = vadd.f32 %v105, %v151
  %v174 = vadd.f32 %v106, %v151
  %v175 = vadd.f32 %v107, %v151
  %v176 = vadd.f32 %v108, %v151
  %v177 = vadd.f32 %v109, %v151
  %v178 = vadd.f32 %v110, %v151
  %v179 = vadd.f32 %v111, %v151
  %v180 = vadd.f32 %v112, %v151
  %v181 = vadd.f32 %v113, %v151
  %v182 = vadd.f32 %v114, %v151
  %v183 = vadd.f32 %v115, %v151
  %v184 = vadd.f32 %v116, %v151
  %v185 = vadd.f32 %v117, %v151
  %v186 = vadd.f32 %v118, %v151
  %v187 = vadd.f32 %v119, %v151
  %v188 = vadd.f32 %v120, %v151
  %v189 = vadd.f32 %v121, %v151
  %v190 = vadd.f32 %v122, %v151
  %v191 = vadd.f32 %v123, %v151
  %v192 = vadd.f32 %v124, %v151
  %v193 = vadd.f32 %v125, %v151
  %v194 = vadd.f32 %v126, %v151
  %v195 = vadd.f32 %v127, %v151
  %v196 = vadd.f32 %v128, %v151
  %v197 = vadd.f32 %v129, %v151
  %v198 = vadd.f32 %v130, %v151
  %v199 = vadd.f32 %v131, %v151
  %v200 = vadd.f32 %v132, %v151
  %v201 = vadd.f32 %v133, %v151
  %v202 = vadd.f32 %v134, %v151
  %v203 = vadd.f32 %v135, %v151
  %v204 = vadd.f32 %v136, %v151
  %v205 = vadd.f32 %v137, %v151
  %v206 = vadd.f32 %v138, %v151
  %v207 = vadd.f32 %v139, %v151
  %v208 = vadd.f32 %v140, %v151
  %v209 = vadd.f32 %v141, %v151
  %v210 = vadd.f32 %v142, %v151
  %v211 = vadd.f32 %v143, %v151
  %v212 = vadd.f32 %v144, %v151
  %v213 = vadd.f32 %v145, %v151
  %v214 = vadd.f32 %v146, %v151
  %v215 = vadd.f32 %v147, %v151
  %v216 = vadd.f32 %v148, %v151
  %v217 = vld [vmem:[%s3] sm:$0xff]
  %v218 = vld [vmem:[%s3 + $0x8] sm:$0xff]
  %v219 = vld [vmem:[%s3 + $0x10] sm:$0xff]
  %v220 = vld [vmem:[%s3 + $0x18] sm:$0xff]
  %v221 = vld [vmem:[%s3 + $0x20] sm:$0xff]
  %v222 = vld [vmem:[%s3 + $0x28] sm:$0xff]
  %v223 = vld [vmem:[%s3 + $0x30] sm:$0xff]
  %v224 = vld [vmem:[%s3 + $0x38] sm:$0xff]
  %v225 = vld [vmem:[%s3 + $0x40] sm:$0xff]
  %v226 = vld [vmem:[%s3 + $0x48] sm:$0xff]
  %v227 = vld [vmem:[%s3 + $0x50] sm:$0xff]
  %v228 = vld [vmem:[%s3 + $0x58] sm:$0xff]
  %v229 = vld [vmem:[%s3 + $0x60] sm:$0xff]
  %v230 = vld [vmem:[%s3 + $0x68] sm:$0xff]
  %v231 = vld [vmem:[%s3 + $0x70] sm:$0xff]
  %v232 = vld [vmem:[%s3 + $0x78] sm:$0xff]
  %v233 = vld [vmem:[%s3 + $0x80] sm:$0xff]
  %v234 = vld [vmem:[%s3 + $0x88] sm:$0xff]
  %v235 = vld [vmem:[%s3 + $0x90] sm:$0xff]
  %v236 = vld [vmem:[%s3 + $0x98] sm:$0xff]
  %v237 = vld [vmem:[%s3 + $0xa0] sm:$0xff]
  %v238 = vld [vmem:[%s3 + $0xa8] sm:$0xff]
  %v239 = vld [vmem:[%s3 + $0xb0] sm:$0xff]
  %v240 = vld [vmem:[%s3 + $0xb8] sm:$0xff]
  %v241 = vld [vmem:[%s3 + $0xc0] sm:$0xff]
  %v242 = vld [vmem:[%s3 + $0xc8] sm:$0xff]
  %v243 = vld [vmem:[%s3 + $0xd0] sm:$0xff]
  %v244 = vld [vmem:[%s3 + $0xd8] sm:$0xff]
  %v245 = vld [vmem:[%s3 + $0xe0] sm:$0xff]
  %v246 = vld [vmem:[%s3 + $0xe8] sm:$0xff]
  %v247 = vld [vmem:[%s3 + $0xf0] sm:$0xff]
  %v248 = vld [vmem:[%s3 + $0xf8] sm:$0xff]
  %v249 = vld [vmem:[%s3 + $0x100] sm:$0xff]
  %v250 = vld [vmem:[%s3 + $0x108] sm:$0xff]
  %v251 = vld [vmem:[%s3 + $0x110] sm:$0xff]
  %v252 = vld [vmem:[%s3 + $0x118] sm:$0xff]
  %v253 = vld [vmem:[%s3 + $0x120] sm:$0xff]
  %v254 = vld [vmem:[%s3 + $0x128] sm:$0xff]
  %v255 = vld [vmem:[%s3 + $0x130] sm:$0xff]
  %v256 = vld [vmem:[%s3 + $0x138] sm:$0xff]
  %v257 = vld [vmem:[%s3 + $0x140] sm:$0xff]
  %v258 = vld [vmem:[%s3 + $0x148] sm:$0xff]
  %v259 = vld [vmem:[%s3 + $0x150] sm:$0xff]
  %v260 = vld [vmem:[%s3 + $0x158] sm:$0xff]
  %v261 = vld [vmem:[%s3 + $0x160] sm:$0xff]
  %v262 = vld [vmem:[%s3 + $0x168] sm:$0xff]
  %v263 = vld [vmem:[%s3 + $0x170] sm:$0xff]
  %v264 = vld [vmem:[%s3 + $0x178] sm:$0xff]
  %v265 = vld [vmem:[%s3 + $0x180] sm:$0xff]
  %v266 = vld [vmem:[%s3 + $0x188] sm:$0xff]
  %v267 = vld [vmem:[%s3 + $0x190] sm:$0xff]
  %v268 = vld [vmem:[%s3 + $0x198] sm:$0xff]
  %v269 = vld [vmem:[%s3 + $0x1a0] sm:$0xff]
  %v270 = vld [vmem:[%s3 + $0x1a8] sm:$0xff]
  %v271 = vld [vmem:[%s3 + $0x1b0] sm:$0xff]
  %v272 = vld [vmem:[%s3 + $0x1b8] sm:$0xff]
  %v273 = vld [vmem:[%s3 + $0x1c0] sm:$0xff]
  %v274 = vld [vmem:[%s3 + $0x1c8] sm:$0xff]
  %v275 = vld [vmem:[%s3 + $0x1d0] sm:$0xff]
  %v276 = vld [vmem:[%s3 + $0x1d8] sm:$0xff]
  %v277 = vld [vmem:[%s3 + $0x1e0] sm:$0xff]
  %v278 = vld [vmem:[%s3 + $0x1e8] sm:$0xff]
  %v279 = vld [vmem:[%s3 + $0x1f0] sm:$0xff]
  %v280 = vld [vmem:[%s3 + $0x1f8] sm:$0xff]
  %v281 = vadd.f32 %v217, %v153
  %v282 = vadd.f32 %v218, %v154
  %v283 = vadd.f32 %v219, %v155
  %v284 = vadd.f32 %v220, %v156
  %v285 = vadd.f32 %v221, %v157
  %v286 = vadd.f32 %v222, %v158
  %v287 = vadd.f32 %v223, %v159
  %v288 = vadd.f32 %v224, %v160
  %v289 = vadd.f32 %v225, %v161
  %v290 = vadd.f32 %v226, %v162
  %v291 = vadd.f32 %v227, %v163
  %v292 = vadd.f32 %v228, %v164
  %v293 = vadd.f32 %v229, %v165
  %v294 = vadd.f32 %v230, %v166
  %v295 = vadd.f32 %v231, %v167
  %v296 = vadd.f32 %v232, %v168
  %v297 = vadd.f32 %v233, %v169
  %v298 = vadd.f32 %v234, %v170
  %v299 = vadd.f32 %v235, %v171
  %v300 = vadd.f32 %v236, %v172
  %v301 = vadd.f32 %v237, %v173
  %v302 = vadd.f32 %v238, %v174
  %v303 = vadd.f32 %v239, %v175
  %v304 = vadd.f32 %v240, %v176
  %v305 = vadd.f32 %v241, %v177
  %v306 = vadd.f32 %v242, %v178
  %v307 = vadd.f32 %v243, %v179
  %v308 = vadd.f32 %v244, %v180
  %v309 = vadd.f32 %v245, %v181
  %v310 = vadd.f32 %v246, %v182
  %v311 = vadd.f32 %v247, %v183
  %v312 = vadd.f32 %v248, %v184
  %v313 = vadd.f32 %v249, %v185
  %v314 = vadd.f32 %v250, %v186
  %v315 = vadd.f32 %v251, %v187
  %v316 = vadd.f32 %v252, %v188
  %v317 = vadd.f32 %v253, %v189
  %v318 = vadd.f32 %v254, %v190
  %v319 = vadd.f32 %v255, %v191
  %v320 = vadd.f32 %v256, %v192
  %v321 = vadd.f32 %v257, %v193
  %v322 = vadd.f32 %v258, %v194
  %v323 = vadd.f32 %v259, %v195
  %v324 = vadd.f32 %v260, %v196
  %v325 = vadd.f32 %v261, %v197
  %v326 = vadd.f32 %v262, %v198
  %v327 = vadd.f32 %v263, %v199
  %v328 = vadd.f32 %v264, %v200
  %v329 = vadd.f32 %v265, %v201
  %v330 = vadd.f32 %v266, %v202
  %v331 = vadd.f32 %v267, %v203
  %v332 = vadd.f32 %v268, %v204
  %v333 = vadd.f32 %v269, %v205
  %v334 = vadd.f32 %v270, %v206
  %v335 = vadd.f32 %v271, %v207
  %v336 = vadd.f32 %v272, %v208
  %v337 = vadd.f32 %v273, %v209
  %v338 = vadd.f32 %v274, %v210
  %v339 = vadd.f32 %v275, %v211
  %v340 = vadd.f32 %v276, %v212
  %v341 = vadd.f32 %v277, %v213
  %v342 = vadd.f32 %v278, %v214
  %v343 = vadd.f32 %v279, %v215
  %v344 = vadd.f32 %v280, %v216
  %345 = vst [vmem:[%s4] sm:$0xff] %v281
  %346 = vst [vmem:[%s4 + $0x8] sm:$0xff] %v282
  %347 = vst [vmem:[%s4 + $0x10] sm:$0xff] %v283
  %348 = vst [vmem:[%s4 + $0x18] sm:$0xff] %v284
  %349 = vst [vmem:[%s4 + $0x20] sm:$0xff] %v285
  %350 = vst [vmem:[%s4 + $0x28] sm:$0xff] %v286
  %351 = vst [vmem:[%s4 + $0x30] sm:$0xff] %v287
  %352 = vst [vmem:[%s4 + $0x38] sm:$0xff] %v288
  %353 = vst [vmem:[%s4 + $0x40] sm:$0xff] %v289
  %354 = vst [vmem:[%s4 + $0x48] sm:$0xff] %v290
  %355 = vst [vmem:[%s4 + $0x50] sm:$0xff] %v291
  %356 = vst [vmem:[%s4 + $0x58] sm:$0xff] %v292
  %357 = vst [vmem:[%s4 + $0x60] sm:$0xff] %v293
  %358 = vst [vmem:[%s4 + $0x68] sm:$0xff] %v294
  %359 = vst [vmem:[%s4 + $0x70] sm:$0xff] %v295
  %360 = vst [vmem:[%s4 + $0x78] sm:$0xff] %v296
  %361 = vst [vmem:[%s4 + $0x80] sm:$0xff] %v297
  %362 = vst [vmem:[%s4 + $0x88] sm:$0xff] %v298
  %363 = vst [vmem:[%s4 + $0x90] sm:$0xff] %v299
  %364 = vst [vmem:[%s4 + $0x98] sm:$0xff] %v300
  %365 = vst [vmem:[%s4 + $0xa0] sm:$0xff] %v301
  %366 = vst [vmem:[%s4 + $0xa8] sm:$0xff] %v302
  %367 = vst [vmem:[%s4 + $0xb0] sm:$0xff] %v303
  %368 = vst [vmem:[%s4 + $0xb8] sm:$0xff] %v304
  %369 = vst [vmem:[%s4 + $0xc0] sm:$0xff] %v305
  %370 = vst [vmem:[%s4 + $0xc8] sm:$0xff] %v306
  %371 = vst [vmem:[%s4 + $0xd0] sm:$0xff] %v307
  %372 = vst [vmem:[%s4 + $0xd8] sm:$0xff] %v308
  %373 = vst [vmem:[%s4 + $0xe0] sm:$0xff] %v309
  %374 = vst [vmem:[%s4 + $0xe8] sm:$0xff] %v310
  %375 = vst [vmem:[%s4 + $0xf0] sm:$0xff] %v311
  %376 = vst [vmem:[%s4 + $0xf8] sm:$0xff] %v312
  %377 = vst [vmem:[%s4 + $0x100] sm:$0xff] %v313
  %378 = vst [vmem:[%s4 + $0x108] sm:$0xff] %v314
  %379 = vst [vmem:[%s4 + $0x110] sm:$0xff] %v315
  %380 = vst [vmem:[%s4 + $0x118] sm:$0xff] %v316
  %381 = vst [vmem:[%s4 + $0x120] sm:$0xff] %v317
  %382 = vst [vmem:[%s4 + $0x128] sm:$0xff] %v318
  %383 = vst [vmem:[%s4 + $0x130] sm:$0xff] %v319
  %384 = vst [vmem:[%s4 + $0x138] sm:$0xff] %v320
  %385 = vst [vmem:[%s4 + $0x140] sm:$0xff] %v321
  %386 = vst [vmem:[%s4 + $0x148] sm:$0xff] %v322
  %387 = vst [vmem:[%s4 + $0x150] sm:$0xff] %v323
  %388 = vst [vmem:[%s4 + $0x158] sm:$0xff] %v324
  %389 = vst [vmem:[%s4 + $0x160] sm:$0xff] %v325
  %390 = vst [vmem:[%s4 + $0x168] sm:$0xff] %v326
  %391 = vst [vmem:[%s4 + $0x170] sm:$0xff] %v327
  %392 = vst [vmem:[%s4 + $0x178] sm:$0xff] %v328
  %393 = vst [vmem:[%s4 + $0x180] sm:$0xff] %v329
  %394 = vst [vmem:[%s4 + $0x188] sm:$0xff] %v330
  %395 = vst [vmem:[%s4 + $0x190] sm:$0xff] %v331
  %396 = vst [vmem:[%s4 + $0x198] sm:$0xff] %v332
  %397 = vst [vmem:[%s4 + $0x1a0] sm:$0xff] %v333
  %398 = vst [vmem:[%s4 + $0x1a8] sm:$0xff] %v334
  %399 = vst [vmem:[%s4 + $0x1b0] sm:$0xff] %v335
  %400 = vst [vmem:[%s4 + $0x1b8] sm:$0xff] %v336
  %401 = vst [vmem:[%s4 + $0x1c0] sm:$0xff] %v337
  %402 = vst [vmem:[%s4 + $0x1c8] sm:$0xff] %v338
  %403 = vst [vmem:[%s4 + $0x1d0] sm:$0xff] %v339
  %404 = vst [vmem:[%s4 + $0x1d8] sm:$0xff] %v340
  %405 = vst [vmem:[%s4 + $0x1e0] sm:$0xff] %v341
  %406 = vst [vmem:[%s4 + $0x1e8] sm:$0xff] %v342
  %407 = vst [vmem:[%s4 + $0x1f0] sm:$0xff] %v343
  %408 = vst [vmem:[%s4 + $0x1f8] sm:$0xff] %v344
  // Predicated region
  $region18: #{resblock_forward.7} parent=0 // pred_check
    _
  $region19: #{resblock_forward.7} parent=0 // pred_check_branch
    %410 = sbr.rel (0) target = $region21
  $region20: #{resblock_forward.7} parent=0 // pred_region
    _
  $region21: #{resblock_forward.7} parent=0 // pred_fallthru
    _
  // Predicated region
  $region22: #{resblock_forward.7} parent=0 // pred_check
    _
  $region23: #{resblock_forward.7} parent=0 // pred_check_branch
    %412 = sbr.rel (0) target = $region25
  $region24: #{resblock_forward.7} parent=0 // pred_region
    _
  $region25: #{resblock_forward.7} parent=0 // pred_fallthru
    _

// kernel: resblock_forward.4
$region0: #{resblock_forward.4}
  #allocation0 [shape = 'u32[]', space=smem, size = 0x4, offset = 0x4, fixed_abs, tag = 'smem constant byte address 0x4 - core index']
  #allocation1 [shape = 'u32[72,128]{1,0:T(1,128)}', space=vmem, size = 0x9000, scoped, tag = 'internal scratch']
  %s0 = inlined_call_operand.vmem [shape: bf16[3,2,16,18,128], index: 0, kind: input, shape index: {}]
  %s1 = inlined_call_operand.vmem [shape: bf16[9,128,128], index: 1, kind: input, shape index: {}]
  %s2 = inlined_call_operand.vmem [shape: f32[512,128], index: 2, kind: output, shape index: {0}]
  %s3 = inlined_call_operand.vmem [shape: f32[4,2,128], index: 3, kind: output, shape index: {1}]
  %4 = xla_tuple %s2, %s3
  %s5 = sld [smem:[#allocation0]]
  $region90: #{resblock_forward.4} parent=0
    _
  %s7 = ssub.s32 1, %s5
  %s8 = scalar_select 0, %s7, %s5
  $region1: #{resblock_forward.4} parent=0
    #allocation2 [shape = 'u8[294912]{0}', space=vmem, size = 0x48000, scoped, tag = 'input window, operand 0']
    loop: start=0, step=1, limit=6
    $region2: #{resblock_forward.4} parent=1 // loop_pre_header
      _
    $region3: #{resblock_forward.4} parent=1 // loop_header
      %s10 = sphi 0, %s14
      %p11 = scmp.ge.s32.totalorder %s10, 6
      %s17 = sphi 0, %s29
      %s18 = sphi 0, %s25
      %s19 = sphi 0, %s17
      %s20 = sphi 0, %s18
      %s21 = sphi 0, %s19
      %s22 = sphi 0, %s20
      %s34 = sphi 0, %s36
      %s37 = sphi 0, %s34
      %s38 = sphi 0, %s37
      %s54 = sphi 0, %s38
      %s58 = sphi 0, %s58
      %s60 = sphi 0, %s58
      %s61 = sphi 0, %s60
      %s75 = sphi 0, %s61
      %s85 = sphi 0, %s87
      %s88 = sphi 0, %s85
      %s89 = sphi 0, %s88
      %s105 = sphi 0, %s89
      %s115 = sphi 0, %s117
      %s118 = sphi 0, %s115
      %s119 = sphi 0, %s118
      %s135 = sphi 0, %s119
    $region4: #{resblock_forward.4} parent=1 // loop_header_branch
      %13 = sbr.rel (%p11) target = $region8
    $region5: #{resblock_forward.4} parent=1 // loop_body
      %s15 = ssub.s32 %s10, 1
      %s16 = ssub.s32 %s10, 2
      %s23 = sadd.s32 1, %s18
      %p24 = scmp.ge.s32.totalorder %s23, 2
      %s25 = scalar_select %p24, 0, %s23
      %s26 = sadd.s32 1, %s17
      %s27 = scalar_select %p24, %s26, %s17
      %p28 = scmp.ge.s32.totalorder %s27, 2
      %s29 = scalar_select %p28, 0, %s27
      %s30 = ssub.s32 %s17, %s29
      %s31 = ssub.s32 %s18, %s25
      %s32 = sor.u32 %s30, %s31
      %p33 = scmp.eq.s32.totalorder %s32, 0
      %s35 = sadd.s32 %s34, 1
      %s36 = scalar_select %p33, %s34, %s35
      %p39 = pneg %p33
      %p40 = scmp.eq.s32.totalorder %s10, 3
      %p41 = por %p39, %p40
      %p42 = scmp.ne.s32.totalorder %s34, %s37
      %p43 = scmp.eq.s32.totalorder %s10, 0
      %p44 = por %p42, %p43
      %p45 = scmp.ne.s32.totalorder %s34, %s37
      %p46 = scmp.eq.s32.totalorder %s15, 3
      %p47 = por %p45, %p46
      %p48 = scmp.ne.s32.totalorder %s37, %s38
      %p49 = scmp.eq.s32.totalorder %s15, 0
      %p50 = por %p48, %p49
      %p51 = scmp.ne.s32.totalorder %s37, %s38
      %p52 = scmp.eq.s32.totalorder %s16, 3
      %p53 = por %p51, %p52
      %p55 = scmp.ne.s32.totalorder %s38, %s54
      %p56 = scmp.eq.s32.totalorder %s16, 0
      %p57 = por %p55, %p56
      %s59 = sadd.s32 %s58, 1
      %p62 = scmp.eq.s32.totalorder %s10, 3
      %p63 = scmp.ne.s32.totalorder %s58, %s60
      %p64 = scmp.eq.s32.totalorder %s10, 0
      %p65 = por %p63, %p64
      %p66 = scmp.ne.s32.totalorder %s58, %s60
      %p67 = scmp.eq.s32.totalorder %s15, 3
      %p68 = por %p66, %p67
      %p69 = scmp.ne.s32.totalorder %s60, %s61
      %p70 = scmp.eq.s32.totalorder %s15, 0
      %p71 = por %p69, %p70
      %p72 = scmp.ne.s32.totalorder %s60, %s61
      %p73 = scmp.eq.s32.totalorder %s16, 3
      %p74 = por %p72, %p73
      %p76 = scmp.ne.s32.totalorder %s61, %s75
      %p77 = scmp.eq.s32.totalorder %s16, 0
      %p78 = por %p76, %p77
      %s79 = smul.u32 %s17, 2
      %s80 = sadd.s32 %s79, %s18
      %s81 = smul.u32 %s29, 2
      %s82 = sadd.s32 %s81, %s25
      %s83 = ssub.s32 %s80, %s82
      %p84 = scmp.eq.s32.totalorder %s83, 0
      %s86 = sadd.s32 %s85, 1
      %s87 = scalar_select %p84, %s85, %s86
      %p90 = pneg %p84
      %p91 = scmp.eq.s32.totalorder %s10, 3
      %p92 = por %p90, %p91
      %p93 = scmp.ne.s32.totalorder %s85, %s88
      %p94 = scmp.eq.s32.totalorder %s10, 0
      %p95 = por %p93, %p94
      %p96 = scmp.ne.s32.totalorder %s85, %s88
      %p97 = scmp.eq.s32.totalorder %s15, 3
      %p98 = por %p96, %p97
      %p99 = scmp.ne.s32.totalorder %s88, %s89
      %p100 = scmp.eq.s32.totalorder %s15, 0
      %p101 = por %p99, %p100
      %p102 = scmp.ne.s32.totalorder %s88, %s89
      %p103 = scmp.eq.s32.totalorder %s16, 3
      %p104 = por %p102, %p103
      %p106 = scmp.ne.s32.totalorder %s89, %s105
      %p107 = scmp.eq.s32.totalorder %s16, 0
      %p108 = por %p106, %p107
      %s109 = smul.u32 %s17, 2
      %s110 = sadd.s32 %s109, %s18
      %s111 = smul.u32 %s29, 2
      %s112 = sadd.s32 %s111, %s25
      %s113 = ssub.s32 %s110, %s112
      %p114 = scmp.eq.s32.totalorder %s113, 0
      %s116 = sadd.s32 %s115, 1
      %s117 = scalar_select %p114, %s115, %s116
      %p120 = pneg %p114
      %p121 = scmp.eq.s32.totalorder %s10, 3
      %p122 = por %p120, %p121
      %p123 = scmp.ne.s32.totalorder %s115, %s118
      %p124 = scmp.eq.s32.totalorder %s10, 0
      %p125 = por %p123, %p124
      %p126 = scmp.ne.s32.totalorder %s115, %s118
      %p127 = scmp.eq.s32.totalorder %s15, 3
      %p128 = por %p126, %p127
      %p129 = scmp.ne.s32.totalorder %s118, %s119
      %p130 = scmp.eq.s32.totalorder %s15, 0
      %p131 = por %p129, %p130
      %p132 = scmp.ne.s32.totalorder %s118, %s119
      %p133 = scmp.eq.s32.totalorder %s16, 3
      %p134 = por %p132, %p133
      %p136 = scmp.ne.s32.totalorder %s119, %s135
      %p137 = scmp.eq.s32.totalorder %s16, 0
      %p138 = por %p136, %p137
      %p139 = scmp.le.s32.totalorder 1, %s10
      %p140 = scmp.lt.s32.totalorder %s10, 5
      %p141 = pnand %p139, %p140
      %p142 = pneg %p141
      // Predicated region
      $region9: #{resblock_forward.4} parent=5 // pred_check
        _
      $region10: #{resblock_forward.4} parent=5 // pred_check_branch
        %144 = sbr.rel (%p141) target = $region12
      $region11: #{resblock_forward.4} parent=5 // pred_region
        %s145 = ssub.s32 %s10, 1
        // Predicated region
        $region13: #{resblock_forward.4} parent=11 // pred_check
          %p146 = pneg %p71
        $region14: #{resblock_forward.4} parent=11 // pred_check_branch
          %148 = sbr.rel (%p146) target = $region16
        $region15: #{resblock_forward.4} parent=11 // pred_region
          _
        $region16: #{resblock_forward.4} parent=11 // pred_fallthru
          _
      $region12: #{resblock_forward.4} parent=5 // pred_fallthru
        _
      %p149 = scmp.lt.s32.totalorder %s10, 4
      // Predicated region
      $region17: #{resblock_forward.4} parent=5 // pred_check
        %p150 = pneg %p149
      $region18: #{resblock_forward.4} parent=5 // pred_check_branch
        %152 = sbr.rel (%p150) target = $region20
      $region19: #{resblock_forward.4} parent=5 // pred_region
        // Predicated region
        $region21: #{resblock_forward.4} parent=19 // pred_check
          %p153 = pneg %p44
        $region22: #{resblock_forward.4} parent=19 // pred_check_branch
          %155 = sbr.rel (%p153) target = $region24
        $region23: #{resblock_forward.4} parent=19 // pred_region
          %s156 = sand.u32 %s34, 1
          %s157 = sand.u32 %s34, 1
          %s158 = smul.addr %s157, 288
          %s159 = scalar_lea.vmem [#allocation2], %s158
          %s160 = smul.u32 8, %s18
          %s161 = smul.addr %s160, 3
          %s162 = smul.addr %s17, 48
          %s163 = sadd.s32 %s161, %s162
          %s164 = smul.addr %s163, 4
          %s165 = scalar_lea.vmem %s0, %s164
          // Predicated region
          $region25: #{resblock_forward.4} parent=23 // pred_check
            _
          $region26: #{resblock_forward.4} parent=23 // pred_check_branch
            %167 = sbr.rel (0) target = $region28
          $region27: #{resblock_forward.4} parent=23 // pred_region
            // Predicated region
            $region29: #{resblock_forward.4} parent=27 // pred_check
              _
            $region30: #{resblock_forward.4} parent=27 // pred_check_branch
              %169 = sbr.rel target = $region32
            $region31: #{resblock_forward.4} parent=27 // pred_region
              // Predicated region
              $region44: #{resblock_forward.4} parent=31 // pred_check
                _
              $region45: #{resblock_forward.4} parent=31 // pred_check_branch
                %327 = sbr.rel (0) target = $region47
              $region46: #{resblock_forward.4} parent=31 // pred_region
                loop: start=0, step=1, limit=1
                $region48: #{resblock_forward.4} parent=46 // loop_pre_header
                  _
                $region49: #{resblock_forward.4} parent=46 // loop_header
                  %s329 = sphi 0, %s333
                  %p330 = scmp.ge.s32.totalorder %s329, 1
                  %s334 = sphi %s165, %s165
                  %s335 = sphi %s159, %s159
                $region50: #{resblock_forward.4} parent=46 // loop_header_branch
                  %332 = sbr.rel (%p330) target = $region54
                $region51: #{resblock_forward.4} parent=46 // loop_body
                  _
                $region52: #{resblock_forward.4} parent=46 // loop_footer
                  %s333 = sadd.s32 1, %s329
                $region53: #{resblock_forward.4} parent=46 // loop_footer_branch
                  %328 = sbr.rel target = $region49
                $region54: #{resblock_forward.4} parent=46 // loop_exit
                  _
                %s337 = ssub.s32 16, 1
                loop: start=0, step=1, limit=1
                $region55: #{resblock_forward.4} parent=46 // loop_pre_header
                  _
                $region56: #{resblock_forward.4} parent=46 // loop_header
                  %s339 = sphi 0, %s343
                  %p340 = scmp.ge.s32.totalorder %s339, 1
                  %s344 = sphi %s165, %s165
                  %s345 = sphi %s159, %s159
                $region57: #{resblock_forward.4} parent=46 // loop_header_branch
                  %342 = sbr.rel (%p340) target = $region61
                $region58: #{resblock_forward.4} parent=46 // loop_body
                  %v346 = vld [vmem:[%s344] sm:%s337]
                  %347 = vst [vmem:[%s345] sm:%s337] %v346
                  %v348 = vld [vmem:[%s344 + $0x4] sm:%s337]
                  %349 = vst [vmem:[%s345 + $0x4] sm:%s337] %v348
                  %v350 = vld [vmem:[%s344 + $0x8] sm:%s337]
                  %351 = vst [vmem:[%s345 + $0x8] sm:%s337] %v350
                  %v352 = vld [vmem:[%s344 + $0xc] sm:%s337]
                  %353 = vst [vmem:[%s345 + $0xc] sm:%s337] %v352
                  %v354 = vld [vmem:[%s344 + $0x10] sm:%s337]
                  %355 = vst [vmem:[%s345 + $0x10] sm:%s337] %v354
                  %v356 = vld [vmem:[%s344 + $0x14] sm:%s337]
                  %357 = vst [vmem:[%s345 + $0x14] sm:%s337] %v356
                  %v358 = vld [vmem:[%s344 + $0x18] sm:%s337]
                  %359 = vst [vmem:[%s345 + $0x18] sm:%s337] %v358
                  %v360 = vld [vmem:[%s344 + $0x1c] sm:%s337]
                  %361 = vst [vmem:[%s345 + $0x1c] sm:%s337] %v360
                  %v362 = vld [vmem:[%s344 + $0x20] sm:%s337]
                  %363 = vst [vmem:[%s345 + $0x20] sm:%s337] %v362
                  %v364 = vld [vmem:[%s344 + $0x24] sm:%s337]
                  %365 = vst [vmem:[%s345 + $0x24] sm:%s337] %v364
                  %v366 = vld [vmem:[%s344 + $0x28] sm:%s337]
                  %367 = vst [vmem:[%s345 + $0x28] sm:%s337] %v366
                  %v368 = vld [vmem:[%s344 + $0x2c] sm:%s337]
                  %369 = vst [vmem:[%s345 + $0x2c] sm:%s337] %v368
                  %v370 = vld [vmem:[%s344 + $0x30] sm:%s337]
                  %371 = vst [vmem:[%s345 + $0x30] sm:%s337] %v370
                  %v372 = vld [vmem:[%s344 + $0x34] sm:%s337]
                  %373 = vst [vmem:[%s345 + $0x34] sm:%s337] %v372
                  %v374 = vld [vmem:[%s344 + $0x38] sm:%s337]
                  %375 = vst [vmem:[%s345 + $0x38] sm:%s337] %v374
                  %v376 = vld [vmem:[%s344 + $0x3c] sm:%s337]
                  %377 = vst [vmem:[%s345 + $0x3c] sm:%s337] %v376
                  %v378 = vld [vmem:[%s344 + $0x40] sm:%s337]
                  %379 = vst [vmem:[%s345 + $0x40] sm:%s337] %v378
                  %v380 = vld [vmem:[%s344 + $0x44] sm:%s337]
                  %381 = vst [vmem:[%s345 + $0x44] sm:%s337] %v380
                  %v382 = vld [vmem:[%s344 + $0x48] sm:%s337]
                  %383 = vst [vmem:[%s345 + $0x48] sm:%s337] %v382
                  %v384 = vld [vmem:[%s344 + $0x4c] sm:%s337]
                  %385 = vst [vmem:[%s345 + $0x4c] sm:%s337] %v384
                  %v386 = vld [vmem:[%s344 + $0x50] sm:%s337]
                  %387 = vst [vmem:[%s345 + $0x50] sm:%s337] %v386
                  %v388 = vld [vmem:[%s344 + $0x54] sm:%s337]
                  %389 = vst [vmem:[%s345 + $0x54] sm:%s337] %v388
                  %v390 = vld [vmem:[%s344 + $0x58] sm:%s337]
                  %391 = vst [vmem:[%s345 + $0x58] sm:%s337] %v390
                  %v392 = vld [vmem:[%s344 + $0x5c] sm:%s337]
                  %393 = vst [vmem:[%s345 + $0x5c] sm:%s337] %v392
                  %v394 = vld [vmem:[%s344 + $0x180] sm:%s337]
                  %395 = vst [vmem:[%s345 + $0x60] sm:%s337] %v394
                  %v396 = vld [vmem:[%s344 + $0x184] sm:%s337]
                  %397 = vst [vmem:[%s345 + $0x64] sm:%s337] %v396
                  %v398 = vld [vmem:[%s344 + $0x188] sm:%s337]
                  %399 = vst [vmem:[%s345 + $0x68] sm:%s337] %v398
                  %v400 = vld [vmem:[%s344 + $0x18c] sm:%s337]
                  %401 = vst [vmem:[%s345 + $0x6c] sm:%s337] %v400
                  %v402 = vld [vmem:[%s344 + $0x190] sm:%s337]
                  %403 = vst [vmem:[%s345 + $0x70] sm:%s337] %v402
                  %v404 = vld [vmem:[%s344 + $0x194] sm:%s337]
                  %405 = vst [vmem:[%s345 + $0x74] sm:%s337] %v404
                  %v406 = vld [vmem:[%s344 + $0x198] sm:%s337]
                  %407 = vst [vmem:[%s345 + $0x78] sm:%s337] %v406
                  %v408 = vld [vmem:[%s344 + $0x19c] sm:%s337]
                  %409 = vst [vmem:[%s345 + $0x7c] sm:%s337] %v408
                  %v410 = vld [vmem:[%s344 + $0x1a0] sm:%s337]
                  %411 = vst [vmem:[%s345 + $0x80] sm:%s337] %v410
                  %v412 = vld [vmem:[%s344 + $0x1a4] sm:%s337]
                  %413 = vst [vmem:[%s345 + $0x84] sm:%s337] %v412
                  %v414 = vld [vmem:[%s344 + $0x1a8] sm:%s337]
                  %415 = vst [vmem:[%s345 + $0x88] sm:%s337] %v414
                  %v416 = vld [vmem:[%s344 + $0x1ac] sm:%s337]
                  %417 = vst [vmem:[%s345 + $0x8c] sm:%s337] %v416
                  %v418 = vld [vmem:[%s344 + $0x1b0] sm:%s337]
                  %419 = vst [vmem:[%s345 + $0x90] sm:%s337] %v418
                  %v420 = vld [vmem:[%s344 + $0x1b4] sm:%s337]
                  %421 = vst [vmem:[%s345 + $0x94] sm:%s337] %v420
                  %v422 = vld [vmem:[%s344 + $0x1b8] sm:%s337]
                  %423 = vst [vmem:[%s345 + $0x98] sm:%s337] %v422
                  %v424 = vld [vmem:[%s344 + $0x1bc] sm:%s337]
                  %425 = vst [vmem:[%s345 + $0x9c] sm:%s337] %v424
                  %v426 = vld [vmem:[%s344 + $0x1c0] sm:%s337]
                  %427 = vst [vmem:[%s345 + $0xa0] sm:%s337] %v426
                  %v428 = vld [vmem:[%s344 + $0x1c4] sm:%s337]
                  %429 = vst [vmem:[%s345 + $0xa4] sm:%s337] %v428
                  %v430 = vld [vmem:[%s344 + $0x1c8] sm:%s337]
                  %431 = vst [vmem:[%s345 + $0xa8] sm:%s337] %v430
                  %v432 = vld [vmem:[%s344 + $0x1cc] sm:%s337]
                  %433 = vst [vmem:[%s345 + $0xac] sm:%s337] %v432
                  %v434 = vld [vmem:[%s344 + $0x1d0] sm:%s337]
                  %435 = vst [vmem:[%s345 + $0xb0] sm:%s337] %v434
                  %v436 = vld [vmem:[%s344 + $0x1d4] sm:%s337]
                  %437 = vst [vmem:[%s345 + $0xb4] sm:%s337] %v436
                  %v438 = vld [vmem:[%s344 + $0x1d8] sm:%s337]
                  %439 = vst [vmem:[%s345 + $0xb8] sm:%s337] %v438
                  %v440 = vld [vmem:[%s344 + $0x1dc] sm:%s337]
                  %441 = vst [vmem:[%s345 + $0xbc] sm:%s337] %v440
                  %v442 = vld [vmem:[%s344 + $0x300] sm:%s337]
                  %443 = vst [vmem:[%s345 + $0xc0] sm:%s337] %v442
                  %v444 = vld [vmem:[%s344 + $0x304] sm:%s337]
                  %445 = vst [vmem:[%s345 + $0xc4] sm:%s337] %v444
                  %v446 = vld [vmem:[%s344 + $0x308] sm:%s337]
                  %447 = vst [vmem:[%s345 + $0xc8] sm:%s337] %v446
                  %v448 = vld [vmem:[%s344 + $0x30c] sm:%s337]
                  %449 = vst [vmem:[%s345 + $0xcc] sm:%s337] %v448
                  %v450 = vld [vmem:[%s344 + $0x310] sm:%s337]
                  %451 = vst [vmem:[%s345 + $0xd0] sm:%s337] %v450
                  %v452 = vld [vmem:[%s344 + $0x314] sm:%s337]
                  %453 = vst [vmem:[%s345 + $0xd4] sm:%s337] %v452
                  %v454 = vld [vmem:[%s344 + $0x318] sm:%s337]
                  %455 = vst [vmem:[%s345 + $0xd8] sm:%s337] %v454
                  %v456 = vld [vmem:[%s344 + $0x31c] sm:%s337]
                  %457 = vst [vmem:[%s345 + $0xdc] sm:%s337] %v456
                  %v458 = vld [vmem:[%s344 + $0x320] sm:%s337]
                  %459 = vst [vmem:[%s345 + $0xe0] sm:%s337] %v458
                  %v460 = vld [vmem:[%s344 + $0x324] sm:%s337]
                  %461 = vst [vmem:[%s345 + $0xe4] sm:%s337] %v460
                  %v462 = vld [vmem:[%s344 + $0x328] sm:%s337]
                  %463 = vst [vmem:[%s345 + $0xe8] sm:%s337] %v462
                  %v464 = vld [vmem:[%s344 + $0x32c] sm:%s337]
                  %465 = vst [vmem:[%s345 + $0xec] sm:%s337] %v464
                  %v466 = vld [vmem:[%s344 + $0x330] sm:%s337]
                  %467 = vst [vmem:[%s345 + $0xf0] sm:%s337] %v466
                  %v468 = vld [vmem:[%s344 + $0x334] sm:%s337]
                  %469 = vst [vmem:[%s345 + $0xf4] sm:%s337] %v468
                  %v470 = vld [vmem:[%s344 + $0x338] sm:%s337]
                  %471 = vst [vmem:[%s345 + $0xf8] sm:%s337] %v470
                  %v472 = vld [vmem:[%s344 + $0x33c] sm:%s337]
                  %473 = vst [vmem:[%s345 + $0xfc] sm:%s337] %v472
                  %v474 = vld [vmem:[%s344 + $0x340] sm:%s337]
                  %475 = vst [vmem:[%s345 + $0x100] sm:%s337] %v474
                  %v476 = vld [vmem:[%s344 + $0x344] sm:%s337]
                  %477 = vst [vmem:[%s345 + $0x104] sm:%s337] %v476
                  %v478 = vld [vmem:[%s344 + $0x348] sm:%s337]
                  %479 = vst [vmem:[%s345 + $0x108] sm:%s337] %v478
                  %v480 = vld [vmem:[%s344 + $0x34c] sm:%s337]
                  %481 = vst [vmem:[%s345 + $0x10c] sm:%s337] %v480
                  %v482 = vld [vmem:[%s344 + $0x350] sm:%s337]
                  %483 = vst [vmem:[%s345 + $0x110] sm:%s337] %v482
                  %v484 = vld [vmem:[%s344 + $0x354] sm:%s337]
                  %485 = vst [vmem:[%s345 + $0x114] sm:%s337] %v484
                  %v486 = vld [vmem:[%s344 + $0x358] sm:%s337]
                  %487 = vst [vmem:[%s345 + $0x118] sm:%s337] %v486
                  %v488 = vld [vmem:[%s344 + $0x35c] sm:%s337]
                  %489 = vst [vmem:[%s345 + $0x11c] sm:%s337] %v488
                $region59: #{resblock_forward.4} parent=46 // loop_footer
                  %s343 = sadd.s32 1, %s339
                $region60: #{resblock_forward.4} parent=46 // loop_footer_branch
                  %338 = sbr.rel target = $region56
                $region61: #{resblock_forward.4} parent=46 // loop_exit
                  _
              $region47: #{resblock_forward.4} parent=31 // pred_fallthru
                _
            $region32: #{resblock_forward.4} parent=27 // pred_fallthru
              _
            // Predicated region
            $region33: #{resblock_forward.4} parent=27 // pred_check
              _
            $region34: #{resblock_forward.4} parent=27 // pred_check_branch
              %171 = sbr.rel (0) target = $region36
            $region35: #{resblock_forward.4} parent=27 // pred_region
              %s173 = ssub.s32 16, 1
              loop: start=0, step=1, limit=1
              $region37: #{resblock_forward.4} parent=35 // loop_pre_header
                _
              $region38: #{resblock_forward.4} parent=35 // loop_header
                %s175 = sphi 0, %s179
                %p176 = scmp.ge.s32.totalorder %s175, 1
                %s180 = sphi %s165, %s165
                %s181 = sphi %s159, %s159
              $region39: #{resblock_forward.4} parent=35 // loop_header_branch
                %178 = sbr.rel (%p176) target = $region43
              $region40: #{resblock_forward.4} parent=35 // loop_body
                %v182 = vld [vmem:[%s180] sm:%s173]
                %183 = vst [vmem:[%s181] sm:%s173] %v182
                %v184 = vld [vmem:[%s180 + $0x4] sm:%s173]
                %185 = vst [vmem:[%s181 + $0x4] sm:%s173] %v184
                %v186 = vld [vmem:[%s180 + $0x8] sm:%s173]
                %187 = vst [vmem:[%s181 + $0x8] sm:%s173] %v186
                %v188 = vld [vmem:[%s180 + $0xc] sm:%s173]
                %189 = vst [vmem:[%s181 + $0xc] sm:%s173] %v188
                %v190 = vld [vmem:[%s180 + $0x10] sm:%s173]
                %191 = vst [vmem:[%s181 + $0x10] sm:%s173] %v190
                %v192 = vld [vmem:[%s180 + $0x14] sm:%s173]
                %193 = vst [vmem:[%s181 + $0x14] sm:%s173] %v192
                %v194 = vld [vmem:[%s180 + $0x18] sm:%s173]
                %195 = vst [vmem:[%s181 + $0x18] sm:%s173] %v194
                %v196 = vld [vmem:[%s180 + $0x1c] sm:%s173]
                %197 = vst [vmem:[%s181 + $0x1c] sm:%s173] %v196
                %v198 = vld [vmem:[%s180 + $0x20] sm:%s173]
                %199 = vst [vmem:[%s181 + $0x20] sm:%s173] %v198
                %v200 = vld [vmem:[%s180 + $0x24] sm:%s173]
                %201 = vst [vmem:[%s181 + $0x24] sm:%s173] %v200
                %v202 = vld [vmem:[%s180 + $0x28] sm:%s173]
                %203 = vst [vmem:[%s181 + $0x28] sm:%s173] %v202
                %v204 = vld [vmem:[%s180 + $0x2c] sm:%s173]
                %205 = vst [vmem:[%s181 + $0x2c] sm:%s173] %v204
                %v206 = vld [vmem:[%s180 + $0x30] sm:%s173]
                %207 = vst [vmem:[%s181 + $0x30] sm:%s173] %v206
                %v208 = vld [vmem:[%s180 + $0x34] sm:%s173]
                %209 = vst [vmem:[%s181 + $0x34] sm:%s173] %v208
                %v210 = vld [vmem:[%s180 + $0x38] sm:%s173]
                %211 = vst [vmem:[%s181 + $0x38] sm:%s173] %v210
                %v212 = vld [vmem:[%s180 + $0x3c] sm:%s173]
                %213 = vst [vmem:[%s181 + $0x3c] sm:%s173] %v212
                %v214 = vld [vmem:[%s180 + $0x40] sm:%s173]
                %215 = vst [vmem:[%s181 + $0x40] sm:%s173] %v214
                %v216 = vld [vmem:[%s180 + $0x44] sm:%s173]
                %217 = vst [vmem:[%s181 + $0x44] sm:%s173] %v216
                %v218 = vld [vmem:[%s180 + $0x48] sm:%s173]
                %219 = vst [vmem:[%s181 + $0x48] sm:%s173] %v218
                %v220 = vld [vmem:[%s180 + $0x4c] sm:%s173]
                %221 = vst [vmem:[%s181 + $0x4c] sm:%s173] %v220
                %v222 = vld [vmem:[%s180 + $0x50] sm:%s173]
                %223 = vst [vmem:[%s181 + $0x50] sm:%s173] %v222
                %v224 = vld [vmem:[%s180 + $0x54] sm:%s173]
                %225 = vst [vmem:[%s181 + $0x54] sm:%s173] %v224
                %v226 = vld [vmem:[%s180 + $0x58] sm:%s173]
                %227 = vst [vmem:[%s181 + $0x58] sm:%s173] %v226
                %v228 = vld [vmem:[%s180 + $0x5c] sm:%s173]
                %229 = vst [vmem:[%s181 + $0x5c] sm:%s173] %v228
                %v230 = vld [vmem:[%s180 + $0x180] sm:%s173]
                %231 = vst [vmem:[%s181 + $0x60] sm:%s173] %v230
                %v232 = vld [vmem:[%s180 + $0x184] sm:%s173]
                %233 = vst [vmem:[%s181 + $0x64] sm:%s173] %v232
                %v234 = vld [vmem:[%s180 + $0x188] sm:%s173]
                %235 = vst [vmem:[%s181 + $0x68] sm:%s173] %v234
                %v236 = vld [vmem:[%s180 + $0x18c] sm:%s173]
                %237 = vst [vmem:[%s181 + $0x6c] sm:%s173] %v236
                %v238 = vld [vmem:[%s180 + $0x190] sm:%s173]
                %239 = vst [vmem:[%s181 + $0x70] sm:%s173] %v238
                %v240 = vld [vmem:[%s180 + $0x194] sm:%s173]
                %241 = vst [vmem:[%s181 + $0x74] sm:%s173] %v240
                %v242 = vld [vmem:[%s180 + $0x198] sm:%s173]
                %243 = vst [vmem:[%s181 + $0x78] sm:%s173] %v242
                %v244 = vld [vmem:[%s180 + $0x19c] sm:%s173]
                %245 = vst [vmem:[%s181 + $0x7c] sm:%s173] %v244
                %v246 = vld [vmem:[%s180 + $0x1a0] sm:%s173]
                %247 = vst [vmem:[%s181 + $0x80] sm:%s173] %v246
                %v248 = vld [vmem:[%s180 + $0x1a4] sm:%s173]
                %249 = vst [vmem:[%s181 + $0x84] sm:%s173] %v248
                %v250 = vld [vmem:[%s180 + $0x1a8] sm:%s173]
                %251 = vst [vmem:[%s181 + $0x88] sm:%s173] %v250
                %v252 = vld [vmem:[%s180 + $0x1ac] sm:%s173]
                %253 = vst [vmem:[%s181 + $0x8c] sm:%s173] %v252
                %v254 = vld [vmem:[%s180 + $0x1b0] sm:%s173]
                %255 = vst [vmem:[%s181 + $0x90] sm:%s173] %v254
                %v256 = vld [vmem:[%s180 + $0x1b4] sm:%s173]
                %257 = vst [vmem:[%s181 + $0x94] sm:%s173] %v256
                %v258 = vld [vmem:[%s180 + $0x1b8] sm:%s173]
                %259 = vst [vmem:[%s181 + $0x98] sm:%s173] %v258
                %v260 = vld [vmem:[%s180 + $0x1bc] sm:%s173]
                %261 = vst [vmem:[%s181 + $0x9c] sm:%s173] %v260
                %v262 = vld [vmem:[%s180 + $0x1c0] sm:%s173]
                %263 = vst [vmem:[%s181 + $0xa0] sm:%s173] %v262
                %v264 = vld [vmem:[%s180 + $0x1c4] sm:%s173]
                %265 = vst [vmem:[%s181 + $0xa4] sm:%s173] %v264
                %v266 = vld [vmem:[%s180 + $0x1c8] sm:%s173]
                %267 = vst [vmem:[%s181 + $0xa8] sm:%s173] %v266
                %v268 = vld [vmem:[%s180 + $0x1cc] sm:%s173]
                %269 = vst [vmem:[%s181 + $0xac] sm:%s173] %v268
                %v270 = vld [vmem:[%s180 + $0x1d0] sm:%s173]
                %271 = vst [vmem:[%s181 + $0xb0] sm:%s173] %v270
                %v272 = vld [vmem:[%s180 + $0x1d4] sm:%s173]
                %273 = vst [vmem:[%s181 + $0xb4] sm:%s173] %v272
                %v274 = vld [vmem:[%s180 + $0x1d8] sm:%s173]
                %275 = vst [vmem:[%s181 + $0xb8] sm:%s173] %v274
                %v276 = vld [vmem:[%s180 + $0x1dc] sm:%s173]
                %277 = vst [vmem:[%s181 + $0xbc] sm:%s173] %v276
                %v278 = vld [vmem:[%s180 + $0x300] sm:%s173]
                %279 = vst [vmem:[%s181 + $0xc0] sm:%s173] %v278
                %v280 = vld [vmem:[%s180 + $0x304] sm:%s173]
                %281 = vst [vmem:[%s181 + $0xc4] sm:%s173] %v280
                %v282 = vld [vmem:[%s180 + $0x308] sm:%s173]
                %283 = vst [vmem:[%s181 + $0xc8] sm:%s173] %v282
                %v284 = vld [vmem:[%s180 + $0x30c] sm:%s173]
                %285 = vst [vmem:[%s181 + $0xcc] sm:%s173] %v284
                %v286 = vld [vmem:[%s180 + $0x310] sm:%s173]
                %287 = vst [vmem:[%s181 + $0xd0] sm:%s173] %v286
                %v288 = vld [vmem:[%s180 + $0x314] sm:%s173]
                %289 = vst [vmem:[%s181 + $0xd4] sm:%s173] %v288
                %v290 = vld [vmem:[%s180 + $0x318] sm:%s173]
                %291 = vst [vmem:[%s181 + $0xd8] sm:%s173] %v290
                %v292 = vld [vmem:[%s180 + $0x31c] sm:%s173]
                %293 = vst [vmem:[%s181 + $0xdc] sm:%s173] %v292
                %v294 = vld [vmem:[%s180 + $0x320] sm:%s173]
                %295 = vst [vmem:[%s181 + $0xe0] sm:%s173] %v294
                %v296 = vld [vmem:[%s180 + $0x324] sm:%s173]
                %297 = vst [vmem:[%s181 + $0xe4] sm:%s173] %v296
                %v298 = vld [vmem:[%s180 + $0x328] sm:%s173]
                %299 = vst [vmem:[%s181 + $0xe8] sm:%s173] %v298
                %v300 = vld [vmem:[%s180 + $0x32c] sm:%s173]
                %301 = vst [vmem:[%s181 + $0xec] sm:%s173] %v300
                %v302 = vld [vmem:[%s180 + $0x330] sm:%s173]
                %303 = vst [vmem:[%s181 + $0xf0] sm:%s173] %v302
                %v304 = vld [vmem:[%s180 + $0x334] sm:%s173]
                %305 = vst [vmem:[%s181 + $0xf4] sm:%s173] %v304
                %v306 = vld [vmem:[%s180 + $0x338] sm:%s173]
                %307 = vst [vmem:[%s181 + $0xf8] sm:%s173] %v306
                %v308 = vld [vmem:[%s180 + $0x33c] sm:%s173]
                %309 = vst [vmem:[%s181 + $0xfc] sm:%s173] %v308
                %v310 = vld [vmem:[%s180 + $0x340] sm:%s173]
                %311 = vst [vmem:[%s181 + $0x100] sm:%s173] %v310
                %v312 = vld [vmem:[%s180 + $0x344] sm:%s173]
                %313 = vst [vmem:[%s181 + $0x104] sm:%s173] %v312
                %v314 = vld [vmem:[%s180 + $0x348] sm:%s173]
                %315 = vst [vmem:[%s181 + $0x108] sm:%s173] %v314
                %v316 = vld [vmem:[%s180 + $0x34c] sm:%s173]
                %317 = vst [vmem:[%s181 + $0x10c] sm:%s173] %v316
                %v318 = vld [vmem:[%s180 + $0x350] sm:%s173]
                %319 = vst [vmem:[%s181 + $0x110] sm:%s173] %v318
                %v320 = vld [vmem:[%s180 + $0x354] sm:%s173]
                %321 = vst [vmem:[%s181 + $0x114] sm:%s173] %v320
                %v322 = vld [vmem:[%s180 + $0x358] sm:%s173]
                %323 = vst [vmem:[%s181 + $0x118] sm:%s173] %v322
                %v324 = vld [vmem:[%s180 + $0x35c] sm:%s173]
                %325 = vst [vmem:[%s181 + $0x11c] sm:%s173] %v324
              $region41: #{resblock_forward.4} parent=35 // loop_footer
                %s179 = sadd.s32 1, %s175
              $region42: #{resblock_forward.4} parent=35 // loop_footer_branch
                %174 = sbr.rel target = $region38
              $region43: #{resblock_forward.4} parent=35 // loop_exit
                _
            $region36: #{resblock_forward.4} parent=27 // pred_fallthru
              _
          $region28: #{resblock_forward.4} parent=23 // pred_fallthru
            _
          %490 = vnop
        $region24: #{resblock_forward.4} parent=19 // pred_fallthru
          _
      $region20: #{resblock_forward.4} parent=5 // pred_fallthru
        _
      %p491 = scmp.le.s32.totalorder 1, %s10
      %p492 = scmp.lt.s32.totalorder %s10, 5
      %p493 = pnand %p491, %p492
      %p494 = pneg %p493
      // Predicated region
      $region62: #{resblock_forward.4} parent=5 // pred_check
        _
      $region63: #{resblock_forward.4} parent=5 // pred_check_branch
        %496 = sbr.rel (%p493) target = $region65
      $region64: #{resblock_forward.4} parent=5 // pred_region
        %s497 = ssub.s32 %s10, 1
        %s498 = sand.u32 %s37, 1
        %s499 = sand.u32 %s37, 1
        %s500 = smul.addr %s499, 288
        %s501 = scalar_lea.vmem [#allocation2], %s500
        // Predicated region
        $region66: #{resblock_forward.4} parent=64 // pred_check
          %p502 = pneg %p50
        $region67: #{resblock_forward.4} parent=64 // pred_check_branch
          %504 = sbr.rel (%p502) target = $region69
        $region68: #{resblock_forward.4} parent=64 // pred_region
          _
        $region69: #{resblock_forward.4} parent=64 // pred_fallthru
          _
        %s505 = sand.u32 %s37, 1
        %s506 = sand.u32 %s37, 1
        %s507 = smul.addr %s506, 288
        %s508 = scalar_lea.vmem [#allocation2], %s507
        %p509 = pneg %p50
        %p510 = pneg %p47
        %p511 = pneg %p71
        %p512 = pneg %p68
        %p513 = pneg %p101
        %p514 = pneg %p98
        %s515 = smul.u32 %s19, 2
        %s516 = sadd.s32 %s515, %s20
        %s517 = smul.u32 16, %s516
        %p518 = scmp.lt.s32.totalorder %s517, 63
        %s519 = scalar_select %p518, %s517, 63
        %s520 = smul.addr %s519, 8
        %s521 = scalar_lea.vmem %s2, %s520
        %p522 = pneg %p131
        %p523 = pneg %p128
        %s524 = smul.u32 %s19, 2
        %s525 = sadd.s32 %s524, %s20
        %p526 = scmp.lt.s32.totalorder %s525, 3
        %s527 = scalar_select %p526, %s525, 3
        %s528 = smul.addr %s527, 2
        %s529 = scalar_lea.vmem %s3, %s528
        %s530 = smul.u32 8, %s20
        %s531 = smul.u32 %s19, 2
        %s532 = sadd.s32 %s531, %s20
        %s533 = smul.u32 16, %s532
        %p534 = scmp.lt.s32.totalorder %s533, 63
        %s535 = scalar_select %p534, %s533, 63
        %s536 = smul.addr %s535, 8
        %s537 = scalar_lea.vmem %s2, %s536
        %s538 = smul.u32 %s19, 2
        %s539 = sadd.s32 %s538, %s20
        %s540 = smul.u32 16, %s539
        %s541 = smul.u32 %s19, 2
        %s542 = sadd.s32 %s541, %s20
        %p543 = scmp.lt.s32.totalorder %s542, 3
        %s544 = scalar_select %p543, %s542, 3
        %s545 = smul.addr %s544, 2
        %s546 = scalar_lea.vmem %s3, %s545
        %s547 = smul.u32 %s19, 2
        %s548 = sadd.s32 %s547, %s20
        %v549 = vld [vmem:[%s501] sm:$0xf]
        %v550 = vld [vmem:[%s501 + $0x4] sm:$0xf]
        %v551 = vld [vmem:[%s501 + $0x8] sm:$0x1]
        %v552 = vld [vmem:[%s501 + $0xc] sm:$0xf]
        %v553 = vld [vmem:[%s501 + $0x10] sm:$0xf]
        %v554 = vld [vmem:[%s501 + $0x14] sm:$0x1]
        %v555 = vld [vmem:[%s501 + $0x18] sm:$0xf]
        %v556 = vld [vmem:[%s501 + $0x1c] sm:$0xf]
        %v557 = vld [vmem:[%s501 + $0x20] sm:$0x1]
        %v558 = vld [vmem:[%s501 + $0x24] sm:$0xf]
        %v559 = vld [vmem:[%s501 + $0x28] sm:$0xf]
        %v560 = vld [vmem:[%s501 + $0x2c] sm:$0x1]
        %v561 = vld [vmem:[%s501 + $0x30] sm:$0xf]
        %v562 = vld [vmem:[%s501 + $0x34] sm:$0xf]
        %v563 = vld [vmem:[%s501 + $0x38] sm:$0x1]
        %v564 = vld [vmem:[%s501 + $0x3c] sm:$0xf]
        %v565 = vld [vmem:[%s501 + $0x40] sm:$0xf]
        %v566 = vld [vmem:[%s501 + $0x44] sm:$0x1]
        %v567 = vld [vmem:[%s501 + $0x48] sm:$0xf]
        %v568 = vld [vmem:[%s501 + $0x4c] sm:$0xf]
        %v569 = vld [vmem:[%s501 + $0x50] sm:$0x1]
        %v570 = vld [vmem:[%s501 + $0x54] sm:$0xf]
        %v571 = vld [vmem:[%s501 + $0x58] sm:$0xf]
        %v572 = vld [vmem:[%s501 + $0x5c] sm:$0x1]
        %v573 = vld [vmem:[%s1] sm:$0xf]
        %v574 = vld [vmem:[%s1 + $0x4] sm:$0xf]
        %v575 = vld [vmem:[%s1 + $0x8] sm:$0xf]
        %v576 = vld [vmem:[%s1 + $0xc] sm:$0xf]
        %v577 = vld [vmem:[%s1 + $0x10] sm:$0xf]
        %v578 = vld [vmem:[%s1 + $0x14] sm:$0xf]
        %v579 = vld [vmem:[%s1 + $0x18] sm:$0xf]
        %v580 = vld [vmem:[%s1 + $0x1c] sm:$0xf]
        %v581 = vld [vmem:[%s1 + $0x20] sm:$0xf]
        %v582 = vld [vmem:[%s1 + $0x24] sm:$0xf]
        %v583 = vld [vmem:[%s1 + $0x28] sm:$0xf]
        %v584 = vld [vmem:[%s1 + $0x2c] sm:$0xf]
        %v585 = vld [vmem:[%s1 + $0x30] sm:$0xf]
        %v586 = vld [vmem:[%s1 + $0x34] sm:$0xf]
        %v587 = vld [vmem:[%s1 + $0x38] sm:$0xf]
        %v588 = vld [vmem:[%s1 + $0x3c] sm:$0xf]
        %vm589 = vsmask.f32 3328
        %vm590 = vsmask.f32 7440
        %vm591 = vmor %vm589, %vm590
        %v593 = vshrl.u32 %v549, 16
        %v595 = vrot.slane %v593, 4
        %v596 = vshll.u32 %v549, 16
        %v598 = vrot.slane %v596, 5
        %v599 = vor.u32 %v595, %v598
        %v600 = vrot.slane %v599, 4
        %v602 = vshll.u32 %v550, 16
        %v604 = vrot.slane %v602, 5
        %v605 = vsel %vm591, %v600, %v604
        %v606 = vshrl.u32 %v550, 16
        %v608 = vrot.slane %v606, 4
        %v609 = vor.u32 %v608, %v604
        %v610 = vrot.slane %v609, 4
        %v612 = vshll.u32 %v551, 16
        %v614 = vrot.slane %v612, 5
        %v615 = vsel %vm591, %v610, %v614
        %v617 = vshrl.u32 %v552, 16
        %v619 = vrot.slane %v617, 4
        %v620 = vshll.u32 %v552, 16
        %v622 = vrot.slane %v620, 5
        %v623 = vor.u32 %v619, %v622
        %v624 = vrot.slane %v623, 4
        %v626 = vshll.u32 %v553, 16
        %v628 = vrot.slane %v626, 5
        %v629 = vsel %vm591, %v624, %v628
        %v630 = vshrl.u32 %v553, 16
        %v632 = vrot.slane %v630, 4
        %v633 = vor.u32 %v632, %v628
        %v634 = vrot.slane %v633, 4
        %v636 = vshll.u32 %v554, 16
        %v638 = vrot.slane %v636, 5
        %v639 = vsel %vm591, %v634, %v638
        %v641 = vshrl.u32 %v555, 16
        %v643 = vrot.slane %v641, 4
        %v644 = vshll.u32 %v555, 16
        %v646 = vrot.slane %v644, 5
        %v647 = vor.u32 %v643, %v646
        %v648 = vrot.slane %v647, 4
        %v650 = vshll.u32 %v556, 16
        %v652 = vrot.slane %v650, 5
        %v653 = vsel %vm591, %v648, %v652
        %v654 = vshrl.u32 %v556, 16
        %v656 = vrot.slane %v654, 4
        %v657 = vor.u32 %v656, %v652
        %v658 = vrot.slane %v657, 4
        %v660 = vshll.u32 %v557, 16
        %v662 = vrot.slane %v660, 5
        %v663 = vsel %vm591, %v658, %v662
        %v665 = vshrl.u32 %v558, 16
        %v667 = vrot.slane %v665, 4
        %v668 = vshll.u32 %v558, 16
        %v670 = vrot.slane %v668, 5
        %v671 = vor.u32 %v667, %v670
        %v672 = vrot.slane %v671, 4
        %v674 = vshll.u32 %v559, 16
        %v676 = vrot.slane %v674, 5
        %v677 = vsel %vm591, %v672, %v676
        %v678 = vshrl.u32 %v559, 16
        %v680 = vrot.slane %v678, 4
        %v681 = vor.u32 %v680, %v676
        %v682 = vrot.slane %v681, 4
        %v684 = vshll.u32 %v560, 16
        %v686 = vrot.slane %v684, 5
        %v687 = vsel %vm591, %v682, %v686
        %v689 = vshrl.u32 %v561, 16
        %v691 = vrot.slane %v689, 4
        %v692 = vshll.u32 %v561, 16
        %v694 = vrot.slane %v692, 5
        %v695 = vor.u32 %v691, %v694
        %v696 = vrot.slane %v695, 4
        %v698 = vshll.u32 %v562, 16
        %v700 = vrot.slane %v698, 5
        %v701 = vsel %vm591, %v696, %v700
        %v702 = vshrl.u32 %v562, 16
        %v704 = vrot.slane %v702, 4
        %v705 = vor.u32 %v704, %v700
        %v706 = vrot.slane %v705, 4
        %v708 = vshll.u32 %v563, 16
        %v710 = vrot.slane %v708, 5
        %v711 = vsel %vm591, %v706, %v710
        %v713 = vshrl.u32 %v564, 16
        %v715 = vrot.slane %v713, 4
        %v716 = vshll.u32 %v564, 16
        %v718 = vrot.slane %v716, 5
        %v719 = vor.u32 %v715, %v718
        %v720 = vrot.slane %v719, 4
        %v722 = vshll.u32 %v565, 16
        %v724 = vrot.slane %v722, 5
        %v725 = vsel %vm591, %v720, %v724
        %v726 = vshrl.u32 %v565, 16
        %v728 = vrot.slane %v726, 4
        %v729 = vor.u32 %v728, %v724
        %v730 = vrot.slane %v729, 4
        %v732 = vshll.u32 %v566, 16
        %v734 = vrot.slane %v732, 5
        %v735 = vsel %vm591, %v730, %v734
        %v737 = vshrl.u32 %v567, 16
        %v739 = vrot.slane %v737, 4
        %v740 = vshll.u32 %v567, 16
        %v742 = vrot.slane %v740, 5
        %v743 = vor.u32 %v739, %v742
        %v744 = vrot.slane %v743, 4
        %v746 = vshll.u32 %v568, 16
        %v748 = vrot.slane %v746, 5
        %v749 = vsel %vm591, %v744, %v748
        %v750 = vshrl.u32 %v568, 16
        %v752 = vrot.slane %v750, 4
        %v753 = vor.u32 %v752, %v748
        %v754 = vrot.slane %v753, 4
        %v756 = vshll.u32 %v569, 16
        %v758 = vrot.slane %v756, 5
        %v759 = vsel %vm591, %v754, %v758
        %v761 = vshrl.u32 %v570, 16
        %v763 = vrot.slane %v761, 4
        %v764 = vshll.u32 %v570, 16
        %v766 = vrot.slane %v764, 5
        %v767 = vor.u32 %v763, %v766
        %v768 = vrot.slane %v767, 4
        %v770 = vshll.u32 %v571, 16
        %v772 = vrot.slane %v770, 5
        %v773 = vsel %vm591, %v768, %v772
        %v774 = vshrl.u32 %v571, 16
        %v776 = vrot.slane %v774, 4
        %v777 = vor.u32 %v776, %v772
        %v778 = vrot.slane %v777, 4
        %v780 = vshll.u32 %v572, 16
        %v782 = vrot.slane %v780, 5
        %v783 = vsel %vm591, %v778, %v782
        %s784 = scalar_lea.vmem %s1, 64
        %v785 = vld [vmem:[%s784] sm:$0xf]
        %v786 = vld [vmem:[%s784 + $0x4] sm:$0xf]
        %v787 = vld [vmem:[%s784 + $0x8] sm:$0xf]
        %v788 = vld [vmem:[%s784 + $0xc] sm:$0xf]
        %v789 = vld [vmem:[%s784 + $0x10] sm:$0xf]
        %v790 = vld [vmem:[%s784 + $0x14] sm:$0xf]
        %v791 = vld [vmem:[%s784 + $0x18] sm:$0xf]
        %v792 = vld [vmem:[%s784 + $0x1c] sm:$0xf]
        %v793 = vld [vmem:[%s784 + $0x20] sm:$0xf]
        %v794 = vld [vmem:[%s784 + $0x24] sm:$0xf]
        %v795 = vld [vmem:[%s784 + $0x28] sm:$0xf]
        %v796 = vld [vmem:[%s784 + $0x2c] sm:$0xf]
        %v797 = vld [vmem:[%s784 + $0x30] sm:$0xf]
        %v798 = vld [vmem:[%s784 + $0x34] sm:$0xf]
        %v799 = vld [vmem:[%s784 + $0x38] sm:$0xf]
        %v800 = vld [vmem:[%s784 + $0x3c] sm:$0xf]
        %v801 = vunpack.c.l.b16 %v605
        %v802 = vunpack.c.l.b16 %v615
        %v803 = vunpack.c.l.b16 %v629
        %v804 = vunpack.c.l.b16 %v639
        %v805 = vunpack.c.l.b16 %v653
        %v806 = vunpack.c.l.b16 %v663
        %v807 = vunpack.c.l.b16 %v677
        %v808 = vunpack.c.l.b16 %v687
        %v809 = vunpack.c.l.b16 %v701
        %v810 = vunpack.c.l.b16 %v711
        %v811 = vunpack.c.l.b16 %v725
        %v812 = vunpack.c.l.b16 %v735
        %v813 = vunpack.c.l.b16 %v749
        %v814 = vunpack.c.l.b16 %v759
        %v815 = vunpack.c.l.b16 %v773
        %v816 = vunpack.c.l.b16 %v783
        %v817 = vpack.c.b16 %v802, %v801
        %v818 = vpack.c.b16 %v804, %v803
        %v819 = vpack.c.b16 %v806, %v805
        %v820 = vpack.c.b16 %v808, %v807
        %v821 = vpack.c.b16 %v810, %v809
        %v822 = vpack.c.b16 %v812, %v811
        %v823 = vpack.c.b16 %v814, %v813
        %v824 = vpack.c.b16 %v816, %v815
        %v849 = vunpack.c.l.b16 %v785
        %v850 = vunpack.c.l.b16 %v786
        %v851 = vunpack.c.l.b16 %v787
        %v852 = vunpack.c.l.b16 %v788
        %v853 = vunpack.c.l.b16 %v789
        %v854 = vunpack.c.l.b16 %v790
        %v855 = vunpack.c.l.b16 %v791
        %v856 = vunpack.c.l.b16 %v792
        %v857 = vunpack.c.l.b16 %v793
        %v858 = vunpack.c.l.b16 %v794
        %v859 = vunpack.c.l.b16 %v795
        %v860 = vunpack.c.l.b16 %v796
        %v861 = vunpack.c.l.b16 %v797
        %v862 = vunpack.c.l.b16 %v798
        %v863 = vunpack.c.l.b16 %v799
        %v864 = vunpack.c.l.b16 %v800
        %v865 = vpack.c.b16 %v850, %v849
        %v866 = vpack.c.b16 %v852, %v851
        %v867 = vpack.c.b16 %v854, %v853
        %v868 = vpack.c.b16 %v856, %v855
        %v869 = vpack.c.b16 %v858, %v857
        %v870 = vpack.c.b16 %v860, %v859
        %v871 = vpack.c.b16 %v862, %v861
        %v872 = vpack.c.b16 %v864, %v863
        %881 = vmatpush.bf16.msra.mxu0 %v872
        %882 = vmatpush.bf16.msra.mxu0 %v871
        %883 = vmatpush.bf16.msra.mxu0 %v870
        %884 = vmatpush.bf16.msra.mxu0 %v869
        %885 = vmatpush.bf16.msra.mxu0 %v868
        %886 = vmatpush.bf16.msra.mxu0 %v867
        %887 = vmatpush.bf16.msra.mxu0 %v866
        %888 = vmatpush.bf16.msra.mxu0 %v865
        %889 = vmatmul.bf16.gmra.mxu0 %v817
        %v890 = vpop.f32.mrf.mxu0
        %v891 = vadd.f32 0.0, %v890
        %v892 = vpop.f32.mrf.mxu0
        %v893 = vadd.f32 0.0, %v892
        %894 = vmatmul.bf16.gmra.mxu0 %v818
        %v895 = vpop.f32.mrf.mxu0
        %v896 = vadd.f32 0.0, %v895
        %v897 = vpop.f32.mrf.mxu0
        %v898 = vadd.f32 0.0, %v897
        %899 = vmatmul.bf16.gmra.mxu0 %v819
        %v900 = vpop.f32.mrf.mxu0
        %v901 = vadd.f32 0.0, %v900
        %v902 = vpop.f32.mrf.mxu0
        %v903 = vadd.f32 0.0, %v902
        %904 = vmatmul.bf16.gmra.mxu0 %v820
        %v905 = vpop.f32.mrf.mxu0
        %v906 = vadd.f32 0.0, %v905
        %v907 = vpop.f32.mrf.mxu0
        %v908 = vadd.f32 0.0, %v907
        %909 = vmatmul.bf16.gmra.mxu0 %v821
        %v910 = vpop.f32.mrf.mxu0
        %v911 = vadd.f32 0.0, %v910
        %v912 = vpop.f32.mrf.mxu0
        %v913 = vadd.f32 0.0, %v912
        %914 = vmatmul.bf16.gmra.mxu0 %v822
        %v915 = vpop.f32.mrf.mxu0
        %v916 = vadd.f32 0.0, %v915
        %v917 = vpop.f32.mrf.mxu0
        %v918 = vadd.f32 0.0, %v917
        %919 = vmatmul.bf16.gmra.mxu0 %v823
        %v920 = vpop.f32.mrf.mxu0
        %v921 = vadd.f32 0.0, %v920
        %v922 = vpop.f32.mrf.mxu0
        %v923 = vadd.f32 0.0, %v922
        %924 = vmatmul.bf16.gmra.mxu0 %v824
        %v925 = vpop.f32.mrf.mxu0
        %v926 = vadd.f32 0.0, %v925
        %v927 = vpop.f32.mrf.mxu0
        %v928 = vadd.f32 0.0, %v927
        %929 = vdwg.mxu0
        %v946 = vunpack.c.l.b16 %v549
        %v947 = vunpack.c.l.b16 %v550
        %v948 = vunpack.c.l.b16 %v552
        %v949 = vunpack.c.l.b16 %v553
        %v950 = vunpack.c.l.b16 %v555
        %v951 = vunpack.c.l.b16 %v556
        %v952 = vunpack.c.l.b16 %v558
        %v953 = vunpack.c.l.b16 %v559
        %v954 = vunpack.c.l.b16 %v561
        %v955 = vunpack.c.l.b16 %v562
        %v956 = vunpack.c.l.b16 %v564
        %v957 = vunpack.c.l.b16 %v565
        %v958 = vunpack.c.l.b16 %v567
        %v959 = vunpack.c.l.b16 %v568
        %v960 = vunpack.c.l.b16 %v570
        %v961 = vunpack.c.l.b16 %v571
        %v962 = vpack.c.b16 %v947, %v946
        %v963 = vpack.c.b16 %v949, %v948
        %v964 = vpack.c.b16 %v951, %v950
        %v965 = vpack.c.b16 %v953, %v952
        %v966 = vpack.c.b16 %v955, %v954
        %v967 = vpack.c.b16 %v957, %v956
        %v968 = vpack.c.b16 %v959, %v958
        %v969 = vpack.c.b16 %v961, %v960
        %v994 = vunpack.c.l.b16 %v573
        %v995 = vunpack.c.l.b16 %v574
        %v996 = vunpack.c.l.b16 %v575
        %v997 = vunpack.c.l.b16 %v576
        %v998 = vunpack.c.l.b16 %v577
        %v999 = vunpack.c.l.b16 %v578
        %v1000 = vunpack.c.l.b16 %v579
        %v1001 = vunpack.c.l.b16 %v580
        %v1002 = vunpack.c.l.b16 %v581
        %v1003 = vunpack.c.l.b16 %v582
        %v1004 = vunpack.c.l.b16 %v583
        %v1005 = vunpack.c.l.b16 %v584
        %v1006 = vunpack.c.l.b16 %v585
        %v1007 = vunpack.c.l.b16 %v586
        %v1008 = vunpack.c.l.b16 %v587
        %v1009 = vunpack.c.l.b16 %v588
        %v1010 = vpack.c.b16 %v995, %v994
        %v1011 = vpack.c.b16 %v997, %v996
        %v1012 = vpack.c.b16 %v999, %v998
        %v1013 = vpack.c.b16 %v1001, %v1000
        %v1014 = vpack.c.b16 %v1003, %v1002
        %v1015 = vpack.c.b16 %v1005, %v1004
        %v1016 = vpack.c.b16 %v1007, %v1006
        %v1017 = vpack.c.b16 %v1009, %v1008
        %1026 = vmatpush.bf16.msra.mxu0 %v1017
        %1027 = vmatpush.bf16.msra.mxu0 %v1016
        %1028 = vmatpush.bf16.msra.mxu0 %v1015
        %1029 = vmatpush.bf16.msra.mxu0 %v1014
        %1030 = vmatpush.bf16.msra.mxu0 %v1013
        %1031 = vmatpush.bf16.msra.mxu0 %v1012
        %1032 = vmatpush.bf16.msra.mxu0 %v1011
        %1033 = vmatpush.bf16.msra.mxu0 %v1010
        %1034 = vmatmul.bf16.gmra.mxu0 %v962
        %v1035 = vpop.f32.mrf.mxu0
        %v1036 = vadd.f32 %v891, %v1035
        %v1037 = vpop.f32.mrf.mxu0
        %v1038 = vadd.f32 %v893, %v1037
        %1039 = vmatmul.bf16.gmra.mxu0 %v963
        %v1040 = vpop.f32.mrf.mxu0
        %v1041 = vadd.f32 %v896, %v1040
        %v1042 = vpop.f32.mrf.mxu0
        %v1043 = vadd.f32 %v898, %v1042
        %1044 = vmatmul.bf16.gmra.mxu0 %v964
        %v1045 = vpop.f32.mrf.mxu0
        %v1046 = vadd.f32 %v901, %v1045
        %v1047 = vpop.f32.mrf.mxu0
        %v1048 = vadd.f32 %v903, %v1047
        %1049 = vmatmul.bf16.gmra.mxu0 %v965
        %v1050 = vpop.f32.mrf.mxu0
        %v1051 = vadd.f32 %v906, %v1050
        %v1052 = vpop.f32.mrf.mxu0
        %v1053 = vadd.f32 %v908, %v1052
        %1054 = vmatmul.bf16.gmra.mxu0 %v966
        %v1055 = vpop.f32.mrf.mxu0
        %v1056 = vadd.f32 %v911, %v1055
        %v1057 = vpop.f32.mrf.mxu0
        %v1058 = vadd.f32 %v913, %v1057
        %1059 = vmatmul.bf16.gmra.mxu0 %v967
        %v1060 = vpop.f32.mrf.mxu0
        %v1061 = vadd.f32 %v916, %v1060
        %v1062 = vpop.f32.mrf.mxu0
        %v1063 = vadd.f32 %v918, %v1062
        %1064 = vmatmul.bf16.gmra.mxu0 %v968
        %v1065 = vpop.f32.mrf.mxu0
        %v1066 = vadd.f32 %v921, %v1065
        %v1067 = vpop.f32.mrf.mxu0
        %v1068 = vadd.f32 %v923, %v1067
        %1069 = vmatmul.bf16.gmra.mxu0 %v969
        %v1070 = vpop.f32.mrf.mxu0
        %v1071 = vadd.f32 %v926, %v1070
        %v1072 = vpop.f32.mrf.mxu0
        %v1073 = vadd.f32 %v928, %v1072
        %1074 = vdwg.mxu0
        %vm1083 = vcmask 1042432
        %vm1084 = vcmask 1046532
        %vm1085 = vmor %vm1083, %vm1084
        %v1086 = vrot.slane %v549, 5
        %v1087 = vrot.slane %v1086, 4
        %v1088 = vrot.slane %v550, 5
        %v1089 = vsel %vm1085, %v1087, %v1088
        %v1090 = vrot.slane %v1088, 4
        %v1091 = vrot.slane %v551, 5
        %v1092 = vsel %vm1085, %v1090, %v1091
        %v1093 = vrot.slane %v552, 5
        %v1094 = vrot.slane %v1093, 4
        %v1095 = vrot.slane %v553, 5
        %v1096 = vsel %vm1085, %v1094, %v1095
        %v1097 = vrot.slane %v1095, 4
        %v1098 = vrot.slane %v554, 5
        %v1099 = vsel %vm1085, %v1097, %v1098
        %v1100 = vrot.slane %v555, 5
        %v1101 = vrot.slane %v1100, 4
        %v1102 = vrot.slane %v556, 5
        %v1103 = vsel %vm1085, %v1101, %v1102
        %v1104 = vrot.slane %v1102, 4
        %v1105 = vrot.slane %v557, 5
        %v1106 = vsel %vm1085, %v1104, %v1105
        %v1107 = vrot.slane %v558, 5
        %v1108 = vrot.slane %v1107, 4
        %v1109 = vrot.slane %v559, 5
        %v1110 = vsel %vm1085, %v1108, %v1109
        %v1111 = vrot.slane %v1109, 4
        %v1112 = vrot.slane %v560, 5
        %v1113 = vsel %vm1085, %v1111, %v1112
        %v1114 = vrot.slane %v561, 5
        %v1115 = vrot.slane %v1114, 4
        %v1116 = vrot.slane %v562, 5
        %v1117 = vsel %vm1085, %v1115, %v1116
        %v1118 = vrot.slane %v1116, 4
        %v1119 = vrot.slane %v563, 5
        %v1120 = vsel %vm1085, %v1118, %v1119
        %v1121 = vrot.slane %v564, 5
        %v1122 = vrot.slane %v1121, 4
        %v1123 = vrot.slane %v565, 5
        %v1124 = vsel %vm1085, %v1122, %v1123
        %v1125 = vrot.slane %v1123, 4
        %v1126 = vrot.slane %v566, 5
        %v1127 = vsel %vm1085, %v1125, %v1126
        %v1128 = vrot.slane %v567, 5
        %v1129 = vrot.slane %v1128, 4
        %v1130 = vrot.slane %v568, 5
        %v1131 = vsel %vm1085, %v1129, %v1130
        %v1132 = vrot.slane %v1130, 4
        %v1133 = vrot.slane %v569, 5
        %v1134 = vsel %vm1085, %v1132, %v1133
        %v1135 = vrot.slane %v570, 5
        %v1136 = vrot.slane %v1135, 4
        %v1137 = vrot.slane %v571, 5
        %v1138 = vsel %vm1085, %v1136, %v1137
        %v1139 = vrot.slane %v1137, 4
        %v1140 = vrot.slane %v572, 5
        %v1141 = vsel %vm1085, %v1139, %v1140
        %s1142 = scalar_lea.vmem %s1, 128
        %v1143 = vld [vmem:[%s1142] sm:$0xf]
        %v1144 = vld [vmem:[%s1142 + $0x4] sm:$0xf]
        %v1145 = vld [vmem:[%s1142 + $0x8] sm:$0xf]
        %v1146 = vld [vmem:[%s1142 + $0xc] sm:$0xf]
        %v1147 = vld [vmem:[%s1142 + $0x10] sm:$0xf]
        %v1148 = vld [vmem:[%s1142 + $0x14] sm:$0xf]
        %v1149 = vld [vmem:[%s1142 + $0x18] sm:$0xf]
        %v1150 = vld [vmem:[%s1142 + $0x1c] sm:$0xf]
        %v1151 = vld [vmem:[%s1142 + $0x20] sm:$0xf]
        %v1152 = vld [vmem:[%s1142 + $0x24] sm:$0xf]
        %v1153 = vld [vmem:[%s1142 + $0x28] sm:$0xf]
        %v1154 = vld [vmem:[%s1142 + $0x2c] sm:$0xf]
        %v1155 = vld [vmem:[%s1142 + $0x30] sm:$0xf]
        %v1156 = vld [vmem:[%s1142 + $0x34] sm:$0xf]
        %v1157 = vld [vmem:[%s1142 + $0x38] sm:$0xf]
        %v1158 = vld [vmem:[%s1142 + $0x3c] sm:$0xf]
        %v1159 = vunpack.c.l.b16 %v1089
        %v1160 = vunpack.c.l.b16 %v1092
        %v1161 = vunpack.c.l.b16 %v1096
        %v1162 = vunpack.c.l.b16 %v1099
        %v1163 = vunpack.c.l.b16 %v1103
        %v1164 = vunpack.c.l.b16 %v1106
        %v1165 = vunpack.c.l.b16 %v1110
        %v1166 = vunpack.c.l.b16 %v1113
        %v1167 = vunpack.c.l.b16 %v1117
        %v1168 = vunpack.c.l.b16 %v1120
        %v1169 = vunpack.c.l.b16 %v1124
        %v1170 = vunpack.c.l.b16 %v1127
        %v1171 = vunpack.c.l.b16 %v1131
        %v1172 = vunpack.c.l.b16 %v1134
        %v1173 = vunpack.c.l.b16 %v1138
        %v1174 = vunpack.c.l.b16 %v1141
        %v1175 = vpack.c.b16 %v1160, %v1159
        %v1176 = vpack.c.b16 %v1162, %v1161
        %v1177 = vpack.c.b16 %v1164, %v1163
        %v1178 = vpack.c.b16 %v1166, %v1165
        %v1179 = vpack.c.b16 %v1168, %v1167
        %v1180 = vpack.c.b16 %v1170, %v1169
        %v1181 = vpack.c.b16 %v1172, %v1171
        %v1182 = vpack.c.b16 %v1174, %v1173
        %v1207 = vunpack.c.l.b16 %v1143
        %v1208 = vunpack.c.l.b16 %v1144
        %v1209 = vunpack.c.l.b16 %v1145
        %v1210 = vunpack.c.l.b16 %v1146
        %v1211 = vunpack.c.l.b16 %v1147
        %v1212 = vunpack.c.l.b16 %v1148
        %v1213 = vunpack.c.l.b16 %v1149
        %v1214 = vunpack.c.l.b16 %v1150
        %v1215 = vunpack.c.l.b16 %v1151
        %v1216 = vunpack.c.l.b16 %v1152
        %v1217 = vunpack.c.l.b16 %v1153
        %v1218 = vunpack.c.l.b16 %v1154
        %v1219 = vunpack.c.l.b16 %v1155
        %v1220 = vunpack.c.l.b16 %v1156
        %v1221 = vunpack.c.l.b16 %v1157
        %v1222 = vunpack.c.l.b16 %v1158
        %v1223 = vpack.c.b16 %v1208, %v1207
        %v1224 = vpack.c.b16 %v1210, %v1209
        %v1225 = vpack.c.b16 %v1212, %v1211
        %v1226 = vpack.c.b16 %v1214, %v1213
        %v1227 = vpack.c.b16 %v1216, %v1215
        %v1228 = vpack.c.b16 %v1218, %v1217
        %v1229 = vpack.c.b16 %v1220, %v1219
        %v1230 = vpack.c.b16 %v1222, %v1221
        %1239 = vmatpush.bf16.msra.mxu0 %v1230
        %1240 = vmatpush.bf16.msra.mxu0 %v1229
        %1241 = vmatpush.bf16.msra.mxu0 %v1228
        %1242 = vmatpush.bf16.msra.mxu0 %v1227
        %1243 = vmatpush.bf16.msra.mxu0 %v1226
        %1244 = vmatpush.bf16.msra.mxu0 %v1225
        %1245 = vmatpush.bf16.msra.mxu0 %v1224
        %1246 = vmatpush.bf16.msra.mxu0 %v1223
        %1247 = vmatmul.bf16.gmra.mxu0 %v1175
        %v1248 = vpop.f32.mrf.mxu0
        %v1249 = vadd.f32 0.0, %v1248
        %v1250 = vpop.f32.mrf.mxu0
        %v1251 = vadd.f32 0.0, %v1250
        %1252 = vmatmul.bf16.gmra.mxu0 %v1176
        %v1253 = vpop.f32.mrf.mxu0
        %v1254 = vadd.f32 0.0, %v1253
        %v1255 = vpop.f32.mrf.mxu0
        %v1256 = vadd.f32 0.0, %v1255
        %1257 = vmatmul.bf16.gmra.mxu0 %v1177
        %v1258 = vpop.f32.mrf.mxu0
        %v1259 = vadd.f32 0.0, %v1258
        %v1260 = vpop.f32.mrf.mxu0
        %v1261 = vadd.f32 0.0, %v1260
        %1262 = vmatmul.bf16.gmra.mxu0 %v1178
        %v1263 = vpop.f32.mrf.mxu0
        %v1264 = vadd.f32 0.0, %v1263
        %v1265 = vpop.f32.mrf.mxu0
        %v1266 = vadd.f32 0.0, %v1265
        %1267 = vmatmul.bf16.gmra.mxu0 %v1179
        %v1268 = vpop.f32.mrf.mxu0
        %v1269 = vadd.f32 0.0, %v1268
        %v1270 = vpop.f32.mrf.mxu0
        %v1271 = vadd.f32 0.0, %v1270
        %1272 = vmatmul.bf16.gmra.mxu0 %v1180
        %v1273 = vpop.f32.mrf.mxu0
        %v1274 = vadd.f32 0.0, %v1273
        %v1275 = vpop.f32.mrf.mxu0
        %v1276 = vadd.f32 0.0, %v1275
        %1277 = vmatmul.bf16.gmra.mxu0 %v1181
        %v1278 = vpop.f32.mrf.mxu0
        %v1279 = vadd.f32 0.0, %v1278
        %v1280 = vpop.f32.mrf.mxu0
        %v1281 = vadd.f32 0.0, %v1280
        %1282 = vmatmul.bf16.gmra.mxu0 %v1182
        %v1283 = vpop.f32.mrf.mxu0
        %v1284 = vadd.f32 0.0, %v1283
        %v1285 = vpop.f32.mrf.mxu0
        %v1286 = vadd.f32 0.0, %v1285
        %1287 = vdwg.mxu0
        %v1288 = vadd.f32 %v1036, %v1249
        %v1289 = vadd.f32 %v1038, %v1251
        %v1290 = vadd.f32 %v1041, %v1254
        %v1291 = vadd.f32 %v1043, %v1256
        %v1292 = vadd.f32 %v1046, %v1259
        %v1293 = vadd.f32 %v1048, %v1261
        %v1294 = vadd.f32 %v1051, %v1264
        %v1295 = vadd.f32 %v1053, %v1266
        %v1296 = vadd.f32 %v1056, %v1269
        %v1297 = vadd.f32 %v1058, %v1271
        %v1298 = vadd.f32 %v1061, %v1274
        %v1299 = vadd.f32 %v1063, %v1276
        %v1300 = vadd.f32 %v1066, %v1279
        %v1301 = vadd.f32 %v1068, %v1281
        %v1302 = vadd.f32 %v1071, %v1284
        %v1303 = vadd.f32 %v1073, %v1286
        %s1304 = scalar_lea.vmem %s501, 96 [#allocation2]
        %v1305 = vld [vmem:[%s1304] sm:$0xf]
        %v1306 = vld [vmem:[%s1304 + $0x4] sm:$0xf]
        %v1307 = vld [vmem:[%s1304 + $0x8] sm:$0x1]
        %v1308 = vld [vmem:[%s1304 + $0xc] sm:$0xf]
        %v1309 = vld [vmem:[%s1304 + $0x10] sm:$0xf]
        %v1310 = vld [vmem:[%s1304 + $0x14] sm:$0x1]
        %v1311 = vld [vmem:[%s1304 + $0x18] sm:$0xf]
        %v1312 = vld [vmem:[%s1304 + $0x1c] sm:$0xf]
        %v1313 = vld [vmem:[%s1304 + $0x20] sm:$0x1]
        %v1314 = vld [vmem:[%s1304 + $0x24] sm:$0xf]
        %v1315 = vld [vmem:[%s1304 + $0x28] sm:$0xf]
        %v1316 = vld [vmem:[%s1304 + $0x2c] sm:$0x1]
        %v1317 = vld [vmem:[%s1304 + $0x30] sm:$0xf]
        %v1318 = vld [vmem:[%s1304 + $0x34] sm:$0xf]
        %v1319 = vld [vmem:[%s1304 + $0x38] sm:$0x1]
        %v1320 = vld [vmem:[%s1304 + $0x3c] sm:$0xf]
        %v1321 = vld [vmem:[%s1304 + $0x40] sm:$0xf]
        %v1322 = vld [vmem:[%s1304 + $0x44] sm:$0x1]
        %v1323 = vld [vmem:[%s1304 + $0x48] sm:$0xf]
        %v1324 = vld [vmem:[%s1304 + $0x4c] sm:$0xf]
        %v1325 = vld [vmem:[%s1304 + $0x50] sm:$0x1]
        %v1326 = vld [vmem:[%s1304 + $0x54] sm:$0xf]
        %v1327 = vld [vmem:[%s1304 + $0x58] sm:$0xf]
        %v1328 = vld [vmem:[%s1304 + $0x5c] sm:$0x1]
        %s1329 = scalar_lea.vmem %s1, 192
        %v1330 = vld [vmem:[%s1329] sm:$0xf]
        %v1331 = vld [vmem:[%s1329 + $0x4] sm:$0xf]
        %v1332 = vld [vmem:[%s1329 + $0x8] sm:$0xf]
        %v1333 = vld [vmem:[%s1329 + $0xc] sm:$0xf]
        %v1334 = vld [vmem:[%s1329 + $0x10] sm:$0xf]
        %v1335 = vld [vmem:[%s1329 + $0x14] sm:$0xf]
        %v1336 = vld [vmem:[%s1329 + $0x18] sm:$0xf]
        %v1337 = vld [vmem:[%s1329 + $0x1c] sm:$0xf]
        %v1338 = vld [vmem:[%s1329 + $0x20] sm:$0xf]
        %v1339 = vld [vmem:[%s1329 + $0x24] sm:$0xf]
        %v1340 = vld [vmem:[%s1329 + $0x28] sm:$0xf]
        %v1341 = vld [vmem:[%s1329 + $0x2c] sm:$0xf]
        %v1342 = vld [vmem:[%s1329 + $0x30] sm:$0xf]
        %v1343 = vld [vmem:[%s1329 + $0x34] sm:$0xf]
        %v1344 = vld [vmem:[%s1329 + $0x38] sm:$0xf]
        %v1345 = vld [vmem:[%s1329 + $0x3c] sm:$0xf]
        %v1362 = vunpack.c.l.b16 %v1305
        %v1363 = vunpack.c.l.b16 %v1306
        %v1364 = vunpack.c.l.b16 %v1308
        %v1365 = vunpack.c.l.b16 %v1309
        %v1366 = vunpack.c.l.b16 %v1311
        %v1367 = vunpack.c.l.b16 %v1312
        %v1368 = vunpack.c.l.b16 %v1314
        %v1369 = vunpack.c.l.b16 %v1315
        %v1370 = vunpack.c.l.b16 %v1317
        %v1371 = vunpack.c.l.b16 %v1318
        %v1372 = vunpack.c.l.b16 %v1320
        %v1373 = vunpack.c.l.b16 %v1321
        %v1374 = vunpack.c.l.b16 %v1323
        %v1375 = vunpack.c.l.b16 %v1324
        %v1376 = vunpack.c.l.b16 %v1326
        %v1377 = vunpack.c.l.b16 %v1327
        %v1378 = vpack.c.b16 %v1363, %v1362
        %v1379 = vpack.c.b16 %v1365, %v1364
        %v1380 = vpack.c.b16 %v1367, %v1366
        %v1381 = vpack.c.b16 %v1369, %v1368
        %v1382 = vpack.c.b16 %v1371, %v1370
        %v1383 = vpack.c.b16 %v1373, %v1372
        %v1384 = vpack.c.b16 %v1375, %v1374
        %v1385 = vpack.c.b16 %v1377, %v1376
        %v1410 = vunpack.c.l.b16 %v1330
        %v1411 = vunpack.c.l.b16 %v1331
        %v1412 = vunpack.c.l.b16 %v1332
        %v1413 = vunpack.c.l.b16 %v1333
        %v1414 = vunpack.c.l.b16 %v1334
        %v1415 = vunpack.c.l.b16 %v1335
        %v1416 = vunpack.c.l.b16 %v1336
        %v1417 = vunpack.c.l.b16 %v1337
        %v1418 = vunpack.c.l.b16 %v1338
        %v1419 = vunpack.c.l.b16 %v1339
        %v1420 = vunpack.c.l.b16 %v1340
        %v1421 = vunpack.c.l.b16 %v1341
        %v1422 = vunpack.c.l.b16 %v1342
        %v1423 = vunpack.c.l.b16 %v1343
        %v1424 = vunpack.c.l.b16 %v1344
        %v1425 = vunpack.c.l.b16 %v1345
        %v1426 = vpack.c.b16 %v1411, %v1410
        %v1427 = vpack.c.b16 %v1413, %v1412
        %v1428 = vpack.c.b16 %v1415, %v1414
        %v1429 = vpack.c.b16 %v1417, %v1416
        %v1430 = vpack.c.b16 %v1419, %v1418
        %v1431 = vpack.c.b16 %v1421, %v1420
        %v1432 = vpack.c.b16 %v1423, %v1422
        %v1433 = vpack.c.b16 %v1425, %v1424
        %1442 = vmatpush.bf16.msra.mxu0 %v1433
        %1443 = vmatpush.bf16.msra.mxu0 %v1432
        %1444 = vmatpush.bf16.msra.mxu0 %v1431
        %1445 = vmatpush.bf16.msra.mxu0 %v1430
        %1446 = vmatpush.bf16.msra.mxu0 %v1429
        %1447 = vmatpush.bf16.msra.mxu0 %v1428
        %1448 = vmatpush.bf16.msra.mxu0 %v1427
        %1449 = vmatpush.bf16.msra.mxu0 %v1426
        %1450 = vmatmul.bf16.gmra.mxu0 %v1378
        %v1451 = vpop.f32.mrf.mxu0
        %v1452 = vadd.f32 0.0, %v1451
        %v1453 = vpop.f32.mrf.mxu0
        %v1454 = vadd.f32 0.0, %v1453
        %1455 = vmatmul.bf16.gmra.mxu0 %v1379
        %v1456 = vpop.f32.mrf.mxu0
        %v1457 = vadd.f32 0.0, %v1456
        %v1458 = vpop.f32.mrf.mxu0
        %v1459 = vadd.f32 0.0, %v1458
        %1460 = vmatmul.bf16.gmra.mxu0 %v1380
        %v1461 = vpop.f32.mrf.mxu0
        %v1462 = vadd.f32 0.0, %v1461
        %v1463 = vpop.f32.mrf.mxu0
        %v1464 = vadd.f32 0.0, %v1463
        %1465 = vmatmul.bf16.gmra.mxu0 %v1381
        %v1466 = vpop.f32.mrf.mxu0
        %v1467 = vadd.f32 0.0, %v1466
        %v1468 = vpop.f32.mrf.mxu0
        %v1469 = vadd.f32 0.0, %v1468
        %1470 = vmatmul.bf16.gmra.mxu0 %v1382
        %v1471 = vpop.f32.mrf.mxu0
        %v1472 = vadd.f32 0.0, %v1471
        %v1473 = vpop.f32.mrf.mxu0
        %v1474 = vadd.f32 0.0, %v1473
        %1475 = vmatmul.bf16.gmra.mxu0 %v1383
        %v1476 = vpop.f32.mrf.mxu0
        %v1477 = vadd.f32 0.0, %v1476
        %v1478 = vpop.f32.mrf.mxu0
        %v1479 = vadd.f32 0.0, %v1478
        %1480 = vmatmul.bf16.gmra.mxu0 %v1384
        %v1481 = vpop.f32.mrf.mxu0
        %v1482 = vadd.f32 0.0, %v1481
        %v1483 = vpop.f32.mrf.mxu0
        %v1484 = vadd.f32 0.0, %v1483
        %1485 = vmatmul.bf16.gmra.mxu0 %v1385
        %v1486 = vpop.f32.mrf.mxu0
        %v1487 = vadd.f32 0.0, %v1486
        %v1488 = vpop.f32.mrf.mxu0
        %v1489 = vadd.f32 0.0, %v1488
        %1490 = vdwg.mxu0
        %v1491 = vadd.f32 %v1288, %v1452
        %v1492 = vadd.f32 %v1289, %v1454
        %v1493 = vadd.f32 %v1290, %v1457
        %v1494 = vadd.f32 %v1291, %v1459
        %v1495 = vadd.f32 %v1292, %v1462
        %v1496 = vadd.f32 %v1293, %v1464
        %v1497 = vadd.f32 %v1294, %v1467
        %v1498 = vadd.f32 %v1295, %v1469
        %v1499 = vadd.f32 %v1296, %v1472
        %v1500 = vadd.f32 %v1297, %v1474
        %v1501 = vadd.f32 %v1298, %v1477
        %v1502 = vadd.f32 %v1299, %v1479
        %v1503 = vadd.f32 %v1300, %v1482
        %v1504 = vadd.f32 %v1301, %v1484
        %v1505 = vadd.f32 %v1302, %v1487
        %v1506 = vadd.f32 %v1303, %v1489
        %v1508 = vshrl.u32 %v1305, 16
        %v1510 = vrot.slane %v1508, 4
        %v1511 = vshll.u32 %v1305, 16
        %v1513 = vrot.slane %v1511, 5
        %v1514 = vor.u32 %v1510, %v1513
        %v1515 = vrot.slane %v1514, 4
        %v1517 = vshll.u32 %v1306, 16
        %v1519 = vrot.slane %v1517, 5
        %v1520 = vsel %vm591, %v1515, %v1519
        %v1521 = vshrl.u32 %v1306, 16
        %v1523 = vrot.slane %v1521, 4
        %v1524 = vor.u32 %v1523, %v1519
        %v1525 = vrot.slane %v1524, 4
        %v1527 = vshll.u32 %v1307, 16
        %v1529 = vrot.slane %v1527, 5
        %v1530 = vsel %vm591, %v1525, %v1529
        %v1532 = vshrl.u32 %v1308, 16
        %v1534 = vrot.slane %v1532, 4
        %v1535 = vshll.u32 %v1308, 16
        %v1537 = vrot.slane %v1535, 5
        %v1538 = vor.u32 %v1534, %v1537
        %v1539 = vrot.slane %v1538, 4
        %v1541 = vshll.u32 %v1309, 16
        %v1543 = vrot.slane %v1541, 5
        %v1544 = vsel %vm591, %v1539, %v1543
        %v1545 = vshrl.u32 %v1309, 16
        %v1547 = vrot.slane %v1545, 4
        %v1548 = vor.u32 %v1547, %v1543
        %v1549 = vrot.slane %v1548, 4
        %v1551 = vshll.u32 %v1310, 16
        %v1553 = vrot.slane %v1551, 5
        %v1554 = vsel %vm591, %v1549, %v1553
        %v1556 = vshrl.u32 %v1311, 16
        %v1558 = vrot.slane %v1556, 4
        %v1559 = vshll.u32 %v1311, 16
        %v1561 = vrot.slane %v1559, 5
        %v1562 = vor.u32 %v1558, %v1561
        %v1563 = vrot.slane %v1562, 4
        %v1565 = vshll.u32 %v1312, 16
        %v1567 = vrot.slane %v1565, 5
        %v1568 = vsel %vm591, %v1563, %v1567
        %v1569 = vshrl.u32 %v1312, 16
        %v1571 = vrot.slane %v1569, 4
        %v1572 = vor.u32 %v1571, %v1567
        %v1573 = vrot.slane %v1572, 4
        %v1575 = vshll.u32 %v1313, 16
        %v1577 = vrot.slane %v1575, 5
        %v1578 = vsel %vm591, %v1573, %v1577
        %v1580 = vshrl.u32 %v1314, 16
        %v1582 = vrot.slane %v1580, 4
        %v1583 = vshll.u32 %v1314, 16
        %v1585 = vrot.slane %v1583, 5
        %v1586 = vor.u32 %v1582, %v1585
        %v1587 = vrot.slane %v1586, 4
        %v1589 = vshll.u32 %v1315, 16
        %v1591 = vrot.slane %v1589, 5
        %v1592 = vsel %vm591, %v1587, %v1591
        %v1593 = vshrl.u32 %v1315, 16
        %v1595 = vrot.slane %v1593, 4
        %v1596 = vor.u32 %v1595, %v1591
        %v1597 = vrot.slane %v1596, 4
        %v1599 = vshll.u32 %v1316, 16
        %v1601 = vrot.slane %v1599, 5
        %v1602 = vsel %vm591, %v1597, %v1601
        %v1604 = vshrl.u32 %v1317, 16
        %v1606 = vrot.slane %v1604, 4
        %v1607 = vshll.u32 %v1317, 16
        %v1609 = vrot.slane %v1607, 5
        %v1610 = vor.u32 %v1606, %v1609
        %v1611 = vrot.slane %v1610, 4
        %v1613 = vshll.u32 %v1318, 16
        %v1615 = vrot.slane %v1613, 5
        %v1616 = vsel %vm591, %v1611, %v1615
        %v1617 = vshrl.u32 %v1318, 16
        %v1619 = vrot.slane %v1617, 4
        %v1620 = vor.u32 %v1619, %v1615
        %v1621 = vrot.slane %v1620, 4
        %v1623 = vshll.u32 %v1319, 16
        %v1625 = vrot.slane %v1623, 5
        %v1626 = vsel %vm591, %v1621, %v1625
        %v1628 = vshrl.u32 %v1320, 16
        %v1630 = vrot.slane %v1628, 4
        %v1631 = vshll.u32 %v1320, 16
        %v1633 = vrot.slane %v1631, 5
        %v1634 = vor.u32 %v1630, %v1633
        %v1635 = vrot.slane %v1634, 4
        %v1637 = vshll.u32 %v1321, 16
        %v1639 = vrot.slane %v1637, 5
        %v1640 = vsel %vm591, %v1635, %v1639
        %v1641 = vshrl.u32 %v1321, 16
        %v1643 = vrot.slane %v1641, 4
        %v1644 = vor.u32 %v1643, %v1639
        %v1645 = vrot.slane %v1644, 4
        %v1647 = vshll.u32 %v1322, 16
        %v1649 = vrot.slane %v1647, 5
        %v1650 = vsel %vm591, %v1645, %v1649
        %v1652 = vshrl.u32 %v1323, 16
        %v1654 = vrot.slane %v1652, 4
        %v1655 = vshll.u32 %v1323, 16
        %v1657 = vrot.slane %v1655, 5
        %v1658 = vor.u32 %v1654, %v1657
        %v1659 = vrot.slane %v1658, 4
        %v1661 = vshll.u32 %v1324, 16
        %v1663 = vrot.slane %v1661, 5
        %v1664 = vsel %vm591, %v1659, %v1663
        %v1665 = vshrl.u32 %v1324, 16
        %v1667 = vrot.slane %v1665, 4
        %v1668 = vor.u32 %v1667, %v1663
        %v1669 = vrot.slane %v1668, 4
        %v1671 = vshll.u32 %v1325, 16
        %v1673 = vrot.slane %v1671, 5
        %v1674 = vsel %vm591, %v1669, %v1673
        %v1676 = vshrl.u32 %v1326, 16
        %v1678 = vrot.slane %v1676, 4
        %v1679 = vshll.u32 %v1326, 16
        %v1681 = vrot.slane %v1679, 5
        %v1682 = vor.u32 %v1678, %v1681
        %v1683 = vrot.slane %v1682, 4
        %v1685 = vshll.u32 %v1327, 16
        %v1687 = vrot.slane %v1685, 5
        %v1688 = vsel %vm591, %v1683, %v1687
        %v1689 = vshrl.u32 %v1327, 16
        %v1691 = vrot.slane %v1689, 4
        %v1692 = vor.u32 %v1691, %v1687
        %v1693 = vrot.slane %v1692, 4
        %v1695 = vshll.u32 %v1328, 16
        %v1697 = vrot.slane %v1695, 5
        %v1698 = vsel %vm591, %v1693, %v1697
        %s1699 = scalar_lea.vmem %s1, 256
        %v1700 = vld [vmem:[%s1699] sm:$0xf]
        %v1701 = vld [vmem:[%s1699 + $0x4] sm:$0xf]
        %v1702 = vld [vmem:[%s1699 + $0x8] sm:$0xf]
        %v1703 = vld [vmem:[%s1699 + $0xc] sm:$0xf]
        %v1704 = vld [vmem:[%s1699 + $0x10] sm:$0xf]
        %v1705 = vld [vmem:[%s1699 + $0x14] sm:$0xf]
        %v1706 = vld [vmem:[%s1699 + $0x18] sm:$0xf]
        %v1707 = vld [vmem:[%s1699 + $0x1c] sm:$0xf]
        %v1708 = vld [vmem:[%s1699 + $0x20] sm:$0xf]
        %v1709 = vld [vmem:[%s1699 + $0x24] sm:$0xf]
        %v1710 = vld [vmem:[%s1699 + $0x28] sm:$0xf]
        %v1711 = vld [vmem:[%s1699 + $0x2c] sm:$0xf]
        %v1712 = vld [vmem:[%s1699 + $0x30] sm:$0xf]
        %v1713 = vld [vmem:[%s1699 + $0x34] sm:$0xf]
        %v1714 = vld [vmem:[%s1699 + $0x38] sm:$0xf]
        %v1715 = vld [vmem:[%s1699 + $0x3c] sm:$0xf]
        %v1716 = vunpack.c.l.b16 %v1520
        %v1717 = vunpack.c.l.b16 %v1530
        %v1718 = vunpack.c.l.b16 %v1544
        %v1719 = vunpack.c.l.b16 %v1554
        %v1720 = vunpack.c.l.b16 %v1568
        %v1721 = vunpack.c.l.b16 %v1578
        %v1722 = vunpack.c.l.b16 %v1592
        %v1723 = vunpack.c.l.b16 %v1602
        %v1724 = vunpack.c.l.b16 %v1616
        %v1725 = vunpack.c.l.b16 %v1626
        %v1726 = vunpack.c.l.b16 %v1640
        %v1727 = vunpack.c.l.b16 %v1650
        %v1728 = vunpack.c.l.b16 %v1664
        %v1729 = vunpack.c.l.b16 %v1674
        %v1730 = vunpack.c.l.b16 %v1688
        %v1731 = vunpack.c.l.b16 %v1698
        %v1732 = vpack.c.b16 %v1717, %v1716
        %v1733 = vpack.c.b16 %v1719, %v1718
        %v1734 = vpack.c.b16 %v1721, %v1720
        %v1735 = vpack.c.b16 %v1723, %v1722
        %v1736 = vpack.c.b16 %v1725, %v1724
        %v1737 = vpack.c.b16 %v1727, %v1726
        %v1738 = vpack.c.b16 %v1729, %v1728
        %v1739 = vpack.c.b16 %v1731, %v1730
        %v1764 = vunpack.c.l.b16 %v1700
        %v1765 = vunpack.c.l.b16 %v1701
        %v1766 = vunpack.c.l.b16 %v1702
        %v1767 = vunpack.c.l.b16 %v1703
        %v1768 = vunpack.c.l.b16 %v1704
        %v1769 = vunpack.c.l.b16 %v1705
        %v1770 = vunpack.c.l.b16 %v1706
        %v1771 = vunpack.c.l.b16 %v1707
        %v1772 = vunpack.c.l.b16 %v1708
        %v1773 = vunpack.c.l.b16 %v1709
        %v1774 = vunpack.c.l.b16 %v1710
        %v1775 = vunpack.c.l.b16 %v1711
        %v1776 = vunpack.c.l.b16 %v1712
        %v1777 = vunpack.c.l.b16 %v1713
        %v1778 = vunpack.c.l.b16 %v1714
        %v1779 = vunpack.c.l.b16 %v1715
        %v1780 = vpack.c.b16 %v1765, %v1764
        %v1781 = vpack.c.b16 %v1767, %v1766
        %v1782 = vpack.c.b16 %v1769, %v1768
        %v1783 = vpack.c.b16 %v1771, %v1770
        %v1784 = vpack.c.b16 %v1773, %v1772
        %v1785 = vpack.c.b16 %v1775, %v1774
        %v1786 = vpack.c.b16 %v1777, %v1776
        %v1787 = vpack.c.b16 %v1779, %v1778
        %1796 = vmatpush.bf16.msra.mxu0 %v1787
        %1797 = vmatpush.bf16.msra.mxu0 %v1786
        %1798 = vmatpush.bf16.msra.mxu0 %v1785
        %1799 = vmatpush.bf16.msra.mxu0 %v1784
        %1800 = vmatpush.bf16.msra.mxu0 %v1783
        %1801 = vmatpush.bf16.msra.mxu0 %v1782
        %1802 = vmatpush.bf16.msra.mxu0 %v1781
        %1803 = vmatpush.bf16.msra.mxu0 %v1780
        %1804 = vmatmul.bf16.gmra.mxu0 %v1732
        %v1805 = vpop.f32.mrf.mxu0
        %v1806 = vadd.f32 0.0, %v1805
        %v1807 = vpop.f32.mrf.mxu0
        %v1808 = vadd.f32 0.0, %v1807
        %1809 = vmatmul.bf16.gmra.mxu0 %v1733
        %v1810 = vpop.f32.mrf.mxu0
        %v1811 = vadd.f32 0.0, %v1810
        %v1812 = vpop.f32.mrf.mxu0
        %v1813 = vadd.f32 0.0, %v1812
        %1814 = vmatmul.bf16.gmra.mxu0 %v1734
        %v1815 = vpop.f32.mrf.mxu0
        %v1816 = vadd.f32 0.0, %v1815
        %v1817 = vpop.f32.mrf.mxu0
        %v1818 = vadd.f32 0.0, %v1817
        %1819 = vmatmul.bf16.gmra.mxu0 %v1735
        %v1820 = vpop.f32.mrf.mxu0
        %v1821 = vadd.f32 0.0, %v1820
        %v1822 = vpop.f32.mrf.mxu0
        %v1823 = vadd.f32 0.0, %v1822
        %1824 = vmatmul.bf16.gmra.mxu0 %v1736
        %v1825 = vpop.f32.mrf.mxu0
        %v1826 = vadd.f32 0.0, %v1825
        %v1827 = vpop.f32.mrf.mxu0
        %v1828 = vadd.f32 0.0, %v1827
        %1829 = vmatmul.bf16.gmra.mxu0 %v1737
        %v1830 = vpop.f32.mrf.mxu0
        %v1831 = vadd.f32 0.0, %v1830
        %v1832 = vpop.f32.mrf.mxu0
        %v1833 = vadd.f32 0.0, %v1832
        %1834 = vmatmul.bf16.gmra.mxu0 %v1738
        %v1835 = vpop.f32.mrf.mxu0
        %v1836 = vadd.f32 0.0, %v1835
        %v1837 = vpop.f32.mrf.mxu0
        %v1838 = vadd.f32 0.0, %v1837
        %1839 = vmatmul.bf16.gmra.mxu0 %v1739
        %v1840 = vpop.f32.mrf.mxu0
        %v1841 = vadd.f32 0.0, %v1840
        %v1842 = vpop.f32.mrf.mxu0
        %v1843 = vadd.f32 0.0, %v1842
        %1844 = vdwg.mxu0
        %v1845 = vadd.f32 %v1491, %v1806
        %v1846 = vadd.f32 %v1492, %v1808
        %v1847 = vadd.f32 %v1493, %v1811
        %v1848 = vadd.f32 %v1494, %v1813
        %v1849 = vadd.f32 %v1495, %v1816
        %v1850 = vadd.f32 %v1496, %v1818
        %v1851 = vadd.f32 %v1497, %v1821
        %v1852 = vadd.f32 %v1498, %v1823
        %v1853 = vadd.f32 %v1499, %v1826
        %v1854 = vadd.f32 %v1500, %v1828
        %v1855 = vadd.f32 %v1501, %v1831
        %v1856 = vadd.f32 %v1502, %v1833
        %v1857 = vadd.f32 %v1503, %v1836
        %v1858 = vadd.f32 %v1504, %v1838
        %v1859 = vadd.f32 %v1505, %v1841
        %v1860 = vadd.f32 %v1506, %v1843
        %v1869 = vrot.slane %v1305, 5
        %v1870 = vrot.slane %v1869, 4
        %v1871 = vrot.slane %v1306, 5
        %v1872 = vsel %vm1085, %v1870, %v1871
        %v1873 = vrot.slane %v1871, 4
        %v1874 = vrot.slane %v1307, 5
        %v1875 = vsel %vm1085, %v1873, %v1874
        %v1876 = vrot.slane %v1308, 5
        %v1877 = vrot.slane %v1876, 4
        %v1878 = vrot.slane %v1309, 5
        %v1879 = vsel %vm1085, %v1877, %v1878
        %v1880 = vrot.slane %v1878, 4
        %v1881 = vrot.slane %v1310, 5
        %v1882 = vsel %vm1085, %v1880, %v1881
        %v1883 = vrot.slane %v1311, 5
        %v1884 = vrot.slane %v1883, 4
        %v1885 = vrot.slane %v1312, 5
        %v1886 = vsel %vm1085, %v1884, %v1885
        %v1887 = vrot.slane %v1885, 4
        %v1888 = vrot.slane %v1313, 5
        %v1889 = vsel %vm1085, %v1887, %v1888
        %v1890 = vrot.slane %v1314, 5
        %v1891 = vrot.slane %v1890, 4
        %v1892 = vrot.slane %v1315, 5
        %v1893 = vsel %vm1085, %v1891, %v1892
        %v1894 = vrot.slane %v1892, 4
        %v1895 = vrot.slane %v1316, 5
        %v1896 = vsel %vm1085, %v1894, %v1895
        %v1897 = vrot.slane %v1317, 5
        %v1898 = vrot.slane %v1897, 4
        %v1899 = vrot.slane %v1318, 5
        %v1900 = vsel %vm1085, %v1898, %v1899
        %v1901 = vrot.slane %v1899, 4
        %v1902 = vrot.slane %v1319, 5
        %v1903 = vsel %vm1085, %v1901, %v1902
        %v1904 = vrot.slane %v1320, 5
        %v1905 = vrot.slane %v1904, 4
        %v1906 = vrot.slane %v1321, 5
        %v1907 = vsel %vm1085, %v1905, %v1906
        %v1908 = vrot.slane %v1906, 4
        %v1909 = vrot.slane %v1322, 5
        %v1910 = vsel %vm1085, %v1908, %v1909
        %v1911 = vrot.slane %v1323, 5
        %v1912 = vrot.slane %v1911, 4
        %v1913 = vrot.slane %v1324, 5
        %v1914 = vsel %vm1085, %v1912, %v1913
        %v1915 = vrot.slane %v1913, 4
        %v1916 = vrot.slane %v1325, 5
        %v1917 = vsel %vm1085, %v1915, %v1916
        %v1918 = vrot.slane %v1326, 5
        %v1919 = vrot.slane %v1918, 4
        %v1920 = vrot.slane %v1327, 5
        %v1921 = vsel %vm1085, %v1919, %v1920
        %v1922 = vrot.slane %v1920, 4
        %v1923 = vrot.slane %v1328, 5
        %v1924 = vsel %vm1085, %v1922, %v1923
        %s1925 = scalar_lea.vmem %s1, 320
        %v1926 = vld [vmem:[%s1925] sm:$0xf]
        %v1927 = vld [vmem:[%s1925 + $0x4] sm:$0xf]
        %v1928 = vld [vmem:[%s1925 + $0x8] sm:$0xf]
        %v1929 = vld [vmem:[%s1925 + $0xc] sm:$0xf]
        %v1930 = vld [vmem:[%s1925 + $0x10] sm:$0xf]
        %v1931 = vld [vmem:[%s1925 + $0x14] sm:$0xf]
        %v1932 = vld [vmem:[%s1925 + $0x18] sm:$0xf]
        %v1933 = vld [vmem:[%s1925 + $0x1c] sm:$0xf]
        %v1934 = vld [vmem:[%s1925 + $0x20] sm:$0xf]
        %v1935 = vld [vmem:[%s1925 + $0x24] sm:$0xf]
        %v1936 = vld [vmem:[%s1925 + $0x28] sm:$0xf]
        %v1937 = vld [vmem:[%s1925 + $0x2c] sm:$0xf]
        %v1938 = vld [vmem:[%s1925 + $0x30] sm:$0xf]
        %v1939 = vld [vmem:[%s1925 + $0x34] sm:$0xf]
        %v1940 = vld [vmem:[%s1925 + $0x38] sm:$0xf]
        %v1941 = vld [vmem:[%s1925 + $0x3c] sm:$0xf]
        %v1942 = vunpack.c.l.b16 %v1872
        %v1943 = vunpack.c.l.b16 %v1875
        %v1944 = vunpack.c.l.b16 %v1879
        %v1945 = vunpack.c.l.b16 %v1882
        %v1946 = vunpack.c.l.b16 %v1886
        %v1947 = vunpack.c.l.b16 %v1889
        %v1948 = vunpack.c.l.b16 %v1893
        %v1949 = vunpack.c.l.b16 %v1896
        %v1950 = vunpack.c.l.b16 %v1900
        %v1951 = vunpack.c.l.b16 %v1903
        %v1952 = vunpack.c.l.b16 %v1907
        %v1953 = vunpack.c.l.b16 %v1910
        %v1954 = vunpack.c.l.b16 %v1914
        %v1955 = vunpack.c.l.b16 %v1917
        %v1956 = vunpack.c.l.b16 %v1921
        %v1957 = vunpack.c.l.b16 %v1924
        %v1958 = vpack.c.b16 %v1943, %v1942
        %v1959 = vpack.c.b16 %v1945, %v1944
        %v1960 = vpack.c.b16 %v1947, %v1946
        %v1961 = vpack.c.b16 %v1949, %v1948
        %v1962 = vpack.c.b16 %v1951, %v1950
        %v1963 = vpack.c.b16 %v1953, %v1952
        %v1964 = vpack.c.b16 %v1955, %v1954
        %v1965 = vpack.c.b16 %v1957, %v1956
        %v1990 = vunpack.c.l.b16 %v1926
        %v1991 = vunpack.c.l.b16 %v1927
        %v1992 = vunpack.c.l.b16 %v1928
        %v1993 = vunpack.c.l.b16 %v1929
        %v1994 = vunpack.c.l.b16 %v1930
        %v1995 = vunpack.c.l.b16 %v1931
        %v1996 = vunpack.c.l.b16 %v1932
        %v1997 = vunpack.c.l.b16 %v1933
        %v1998 = vunpack.c.l.b16 %v1934
        %v1999 = vunpack.c.l.b16 %v1935
        %v2000 = vunpack.c.l.b16 %v1936
        %v2001 = vunpack.c.l.b16 %v1937
        %v2002 = vunpack.c.l.b16 %v1938
        %v2003 = vunpack.c.l.b16 %v1939
        %v2004 = vunpack.c.l.b16 %v1940
        %v2005 = vunpack.c.l.b16 %v1941
        %v2006 = vpack.c.b16 %v1991, %v1990
        %v2007 = vpack.c.b16 %v1993, %v1992
        %v2008 = vpack.c.b16 %v1995, %v1994
        %v2009 = vpack.c.b16 %v1997, %v1996
        %v2010 = vpack.c.b16 %v1999, %v1998
        %v2011 = vpack.c.b16 %v2001, %v2000
        %v2012 = vpack.c.b16 %v2003, %v2002
        %v2013 = vpack.c.b16 %v2005, %v2004
        %2022 = vmatpush.bf16.msra.mxu0 %v2013
        %2023 = vmatpush.bf16.msra.mxu0 %v2012
        %2024 = vmatpush.bf16.msra.mxu0 %v2011
        %2025 = vmatpush.bf16.msra.mxu0 %v2010
        %2026 = vmatpush.bf16.msra.mxu0 %v2009
        %2027 = vmatpush.bf16.msra.mxu0 %v2008
        %2028 = vmatpush.bf16.msra.mxu0 %v2007
        %2029 = vmatpush.bf16.msra.mxu0 %v2006
        %2030 = vmatmul.bf16.gmra.mxu0 %v1958
        %v2031 = vpop.f32.mrf.mxu0
        %v2032 = vadd.f32 0.0, %v2031
        %v2033 = vpop.f32.mrf.mxu0
        %v2034 = vadd.f32 0.0, %v2033
        %2035 = vmatmul.bf16.gmra.mxu0 %v1959
        %v2036 = vpop.f32.mrf.mxu0
        %v2037 = vadd.f32 0.0, %v2036
        %v2038 = vpop.f32.mrf.mxu0
        %v2039 = vadd.f32 0.0, %v2038
        %2040 = vmatmul.bf16.gmra.mxu0 %v1960
        %v2041 = vpop.f32.mrf.mxu0
        %v2042 = vadd.f32 0.0, %v2041
        %v2043 = vpop.f32.mrf.mxu0
        %v2044 = vadd.f32 0.0, %v2043
        %2045 = vmatmul.bf16.gmra.mxu0 %v1961
        %v2046 = vpop.f32.mrf.mxu0
        %v2047 = vadd.f32 0.0, %v2046
        %v2048 = vpop.f32.mrf.mxu0
        %v2049 = vadd.f32 0.0, %v2048
        %2050 = vmatmul.bf16.gmra.mxu0 %v1962
        %v2051 = vpop.f32.mrf.mxu0
        %v2052 = vadd.f32 0.0, %v2051
        %v2053 = vpop.f32.mrf.mxu0
        %v2054 = vadd.f32 0.0, %v2053
        %2055 = vmatmul.bf16.gmra.mxu0 %v1963
        %v2056 = vpop.f32.mrf.mxu0
        %v2057 = vadd.f32 0.0, %v2056
        %v2058 = vpop.f32.mrf.mxu0
        %v2059 = vadd.f32 0.0, %v2058
        %2060 = vmatmul.bf16.gmra.mxu0 %v1964
        %v2061 = vpop.f32.mrf.mxu0
        %v2062 = vadd.f32 0.0, %v2061
        %v2063 = vpop.f32.mrf.mxu0
        %v2064 = vadd.f32 0.0, %v2063
        %2065 = vmatmul.bf16.gmra.mxu0 %v1965
        %v2066 = vpop.f32.mrf.mxu0
        %v2067 = vadd.f32 0.0, %v2066
        %v2068 = vpop.f32.mrf.mxu0
        %v2069 = vadd.f32 0.0, %v2068
        %2070 = vdwg.mxu0
        %v2071 = vadd.f32 %v1845, %v2032
        %v2072 = vadd.f32 %v1846, %v2034
        %v2073 = vadd.f32 %v1847, %v2037
        %v2074 = vadd.f32 %v1848, %v2039
        %v2075 = vadd.f32 %v1849, %v2042
        %v2076 = vadd.f32 %v1850, %v2044
        %v2077 = vadd.f32 %v1851, %v2047
        %v2078 = vadd.f32 %v1852, %v2049
        %v2079 = vadd.f32 %v1853, %v2052
        %v2080 = vadd.f32 %v1854, %v2054
        %v2081 = vadd.f32 %v1855, %v2057
        %v2082 = vadd.f32 %v1856, %v2059
        %v2083 = vadd.f32 %v1857, %v2062
        %v2084 = vadd.f32 %v1858, %v2064
        %v2085 = vadd.f32 %v1859, %v2067
        %v2086 = vadd.f32 %v1860, %v2069
        %s2087 = scalar_lea.vmem %s501, 192 [#allocation2]
        %v2088 = vld [vmem:[%s2087] sm:$0xf]
        %v2089 = vld [vmem:[%s2087 + $0x4] sm:$0xf]
        %v2090 = vld [vmem:[%s2087 + $0x8] sm:$0x1]
        %v2091 = vld [vmem:[%s2087 + $0xc] sm:$0xf]
        %v2092 = vld [vmem:[%s2087 + $0x10] sm:$0xf]
        %v2093 = vld [vmem:[%s2087 + $0x14] sm:$0x1]
        %v2094 = vld [vmem:[%s2087 + $0x18] sm:$0xf]
        %v2095 = vld [vmem:[%s2087 + $0x1c] sm:$0xf]
        %v2096 = vld [vmem:[%s2087 + $0x20] sm:$0x1]
        %v2097 = vld [vmem:[%s2087 + $0x24] sm:$0xf]
        %v2098 = vld [vmem:[%s2087 + $0x28] sm:$0xf]
        %v2099 = vld [vmem:[%s2087 + $0x2c] sm:$0x1]
        %v2100 = vld [vmem:[%s2087 + $0x30] sm:$0xf]
        %v2101 = vld [vmem:[%s2087 + $0x34] sm:$0xf]
        %v2102 = vld [vmem:[%s2087 + $0x38] sm:$0x1]
        %v2103 = vld [vmem:[%s2087 + $0x3c] sm:$0xf]
        %v2104 = vld [vmem:[%s2087 + $0x40] sm:$0xf]
        %v2105 = vld [vmem:[%s2087 + $0x44] sm:$0x1]
        %v2106 = vld [vmem:[%s2087 + $0x48] sm:$0xf]
        %v2107 = vld [vmem:[%s2087 + $0x4c] sm:$0xf]
        %v2108 = vld [vmem:[%s2087 + $0x50] sm:$0x1]
        %v2109 = vld [vmem:[%s2087 + $0x54] sm:$0xf]
        %v2110 = vld [vmem:[%s2087 + $0x58] sm:$0xf]
        %v2111 = vld [vmem:[%s2087 + $0x5c] sm:$0x1]
        %s2112 = scalar_lea.vmem %s1, 384
        %v2113 = vld [vmem:[%s2112] sm:$0xf]
        %v2114 = vld [vmem:[%s2112 + $0x4] sm:$0xf]
        %v2115 = vld [vmem:[%s2112 + $0x8] sm:$0xf]
        %v2116 = vld [vmem:[%s2112 + $0xc] sm:$0xf]
        %v2117 = vld [vmem:[%s2112 + $0x10] sm:$0xf]
        %v2118 = vld [vmem:[%s2112 + $0x14] sm:$0xf]
        %v2119 = vld [vmem:[%s2112 + $0x18] sm:$0xf]
        %v2120 = vld [vmem:[%s2112 + $0x1c] sm:$0xf]
        %v2121 = vld [vmem:[%s2112 + $0x20] sm:$0xf]
        %v2122 = vld [vmem:[%s2112 + $0x24] sm:$0xf]
        %v2123 = vld [vmem:[%s2112 + $0x28] sm:$0xf]
        %v2124 = vld [vmem:[%s2112 + $0x2c] sm:$0xf]
        %v2125 = vld [vmem:[%s2112 + $0x30] sm:$0xf]
        %v2126 = vld [vmem:[%s2112 + $0x34] sm:$0xf]
        %v2127 = vld [vmem:[%s2112 + $0x38] sm:$0xf]
        %v2128 = vld [vmem:[%s2112 + $0x3c] sm:$0xf]
        %v2145 = vunpack.c.l.b16 %v2088
        %v2146 = vunpack.c.l.b16 %v2089
        %v2147 = vunpack.c.l.b16 %v2091
        %v2148 = vunpack.c.l.b16 %v2092
        %v2149 = vunpack.c.l.b16 %v2094
        %v2150 = vunpack.c.l.b16 %v2095
        %v2151 = vunpack.c.l.b16 %v2097
        %v2152 = vunpack.c.l.b16 %v2098
        %v2153 = vunpack.c.l.b16 %v2100
        %v2154 = vunpack.c.l.b16 %v2101
        %v2155 = vunpack.c.l.b16 %v2103
        %v2156 = vunpack.c.l.b16 %v2104
        %v2157 = vunpack.c.l.b16 %v2106
        %v2158 = vunpack.c.l.b16 %v2107
        %v2159 = vunpack.c.l.b16 %v2109
        %v2160 = vunpack.c.l.b16 %v2110
        %v2161 = vpack.c.b16 %v2146, %v2145
        %v2162 = vpack.c.b16 %v2148, %v2147
        %v2163 = vpack.c.b16 %v2150, %v2149
        %v2164 = vpack.c.b16 %v2152, %v2151
        %v2165 = vpack.c.b16 %v2154, %v2153
        %v2166 = vpack.c.b16 %v2156, %v2155
        %v2167 = vpack.c.b16 %v2158, %v2157
        %v2168 = vpack.c.b16 %v2160, %v2159
        %v2193 = vunpack.c.l.b16 %v2113
        %v2194 = vunpack.c.l.b16 %v2114
        %v2195 = vunpack.c.l.b16 %v2115
        %v2196 = vunpack.c.l.b16 %v2116
        %v2197 = vunpack.c.l.b16 %v2117
        %v2198 = vunpack.c.l.b16 %v2118
        %v2199 = vunpack.c.l.b16 %v2119
        %v2200 = vunpack.c.l.b16 %v2120
        %v2201 = vunpack.c.l.b16 %v2121
        %v2202 = vunpack.c.l.b16 %v2122
        %v2203 = vunpack.c.l.b16 %v2123
        %v2204 = vunpack.c.l.b16 %v2124
        %v2205 = vunpack.c.l.b16 %v2125
        %v2206 = vunpack.c.l.b16 %v2126
        %v2207 = vunpack.c.l.b16 %v2127
        %v2208 = vunpack.c.l.b16 %v2128
        %v2209 = vpack.c.b16 %v2194, %v2193
        %v2210 = vpack.c.b16 %v2196, %v2195
        %v2211 = vpack.c.b16 %v2198, %v2197
        %v2212 = vpack.c.b16 %v2200, %v2199
        %v2213 = vpack.c.b16 %v2202, %v2201
        %v2214 = vpack.c.b16 %v2204, %v2203
        %v2215 = vpack.c.b16 %v2206, %v2205
        %v2216 = vpack.c.b16 %v2208, %v2207
        %2225 = vmatpush.bf16.msra.mxu0 %v2216
        %2226 = vmatpush.bf16.msra.mxu0 %v2215
        %2227 = vmatpush.bf16.msra.mxu0 %v2214
        %2228 = vmatpush.bf16.msra.mxu0 %v2213
        %2229 = vmatpush.bf16.msra.mxu0 %v2212
        %2230 = vmatpush.bf16.msra.mxu0 %v2211
        %2231 = vmatpush.bf16.msra.mxu0 %v2210
        %2232 = vmatpush.bf16.msra.mxu0 %v2209
        %2233 = vmatmul.bf16.gmra.mxu0 %v2161
        %v2234 = vpop.f32.mrf.mxu0
        %v2235 = vadd.f32 0.0, %v2234
        %v2236 = vpop.f32.mrf.mxu0
        %v2237 = vadd.f32 0.0, %v2236
        %2238 = vmatmul.bf16.gmra.mxu0 %v2162
        %v2239 = vpop.f32.mrf.mxu0
        %v2240 = vadd.f32 0.0, %v2239
        %v2241 = vpop.f32.mrf.mxu0
        %v2242 = vadd.f32 0.0, %v2241
        %2243 = vmatmul.bf16.gmra.mxu0 %v2163
        %v2244 = vpop.f32.mrf.mxu0
        %v2245 = vadd.f32 0.0, %v2244
        %v2246 = vpop.f32.mrf.mxu0
        %v2247 = vadd.f32 0.0, %v2246
        %2248 = vmatmul.bf16.gmra.mxu0 %v2164
        %v2249 = vpop.f32.mrf.mxu0
        %v2250 = vadd.f32 0.0, %v2249
        %v2251 = vpop.f32.mrf.mxu0
        %v2252 = vadd.f32 0.0, %v2251
        %2253 = vmatmul.bf16.gmra.mxu0 %v2165
        %v2254 = vpop.f32.mrf.mxu0
        %v2255 = vadd.f32 0.0, %v2254
        %v2256 = vpop.f32.mrf.mxu0
        %v2257 = vadd.f32 0.0, %v2256
        %2258 = vmatmul.bf16.gmra.mxu0 %v2166
        %v2259 = vpop.f32.mrf.mxu0
        %v2260 = vadd.f32 0.0, %v2259
        %v2261 = vpop.f32.mrf.mxu0
        %v2262 = vadd.f32 0.0, %v2261
        %2263 = vmatmul.bf16.gmra.mxu0 %v2167
        %v2264 = vpop.f32.mrf.mxu0
        %v2265 = vadd.f32 0.0, %v2264
        %v2266 = vpop.f32.mrf.mxu0
        %v2267 = vadd.f32 0.0, %v2266
        %2268 = vmatmul.bf16.gmra.mxu0 %v2168
        %v2269 = vpop.f32.mrf.mxu0
        %v2270 = vadd.f32 0.0, %v2269
        %v2271 = vpop.f32.mrf.mxu0
        %v2272 = vadd.f32 0.0, %v2271
        %2273 = vdwg.mxu0
        %v2274 = vadd.f32 %v2071, %v2235
        %v2275 = vadd.f32 %v2072, %v2237
        %v2276 = vadd.f32 %v2073, %v2240
        %v2277 = vadd.f32 %v2074, %v2242
        %v2278 = vadd.f32 %v2075, %v2245
        %v2279 = vadd.f32 %v2076, %v2247
        %v2280 = vadd.f32 %v2077, %v2250
        %v2281 = vadd.f32 %v2078, %v2252
        %v2282 = vadd.f32 %v2079, %v2255
        %v2283 = vadd.f32 %v2080, %v2257
        %v2284 = vadd.f32 %v2081, %v2260
        %v2285 = vadd.f32 %v2082, %v2262
        %v2286 = vadd.f32 %v2083, %v2265
        %v2287 = vadd.f32 %v2084, %v2267
        %v2288 = vadd.f32 %v2085, %v2270
        %v2289 = vadd.f32 %v2086, %v2272
        %v2291 = vshrl.u32 %v2088, 16
        %v2293 = vrot.slane %v2291, 4
        %v2294 = vshll.u32 %v2088, 16
        %v2296 = vrot.slane %v2294, 5
        %v2297 = vor.u32 %v2293, %v2296
        %v2298 = vrot.slane %v2297, 4
        %v2300 = vshll.u32 %v2089, 16
        %v2302 = vrot.slane %v2300, 5
        %v2303 = vsel %vm591, %v2298, %v2302
        %v2304 = vshrl.u32 %v2089, 16
        %v2306 = vrot.slane %v2304, 4
        %v2307 = vor.u32 %v2306, %v2302
        %v2308 = vrot.slane %v2307, 4
        %v2310 = vshll.u32 %v2090, 16
        %v2312 = vrot.slane %v2310, 5
        %v2313 = vsel %vm591, %v2308, %v2312
        %v2315 = vshrl.u32 %v2091, 16
        %v2317 = vrot.slane %v2315, 4
        %v2318 = vshll.u32 %v2091, 16
        %v2320 = vrot.slane %v2318, 5
        %v2321 = vor.u32 %v2317, %v2320
        %v2322 = vrot.slane %v2321, 4
        %v2324 = vshll.u32 %v2092, 16
        %v2326 = vrot.slane %v2324, 5
        %v2327 = vsel %vm591, %v2322, %v2326
        %v2328 = vshrl.u32 %v2092, 16
        %v2330 = vrot.slane %v2328, 4
        %v2331 = vor.u32 %v2330, %v2326
        %v2332 = vrot.slane %v2331, 4
        %v2334 = vshll.u32 %v2093, 16
        %v2336 = vrot.slane %v2334, 5
        %v2337 = vsel %vm591, %v2332, %v2336
        %v2339 = vshrl.u32 %v2094, 16
        %v2341 = vrot.slane %v2339, 4
        %v2342 = vshll.u32 %v2094, 16
        %v2344 = vrot.slane %v2342, 5
        %v2345 = vor.u32 %v2341, %v2344
        %v2346 = vrot.slane %v2345, 4
        %v2348 = vshll.u32 %v2095, 16
        %v2350 = vrot.slane %v2348, 5
        %v2351 = vsel %vm591, %v2346, %v2350
        %v2352 = vshrl.u32 %v2095, 16
        %v2354 = vrot.slane %v2352, 4
        %v2355 = vor.u32 %v2354, %v2350
        %v2356 = vrot.slane %v2355, 4
        %v2358 = vshll.u32 %v2096, 16
        %v2360 = vrot.slane %v2358, 5
        %v2361 = vsel %vm591, %v2356, %v2360
        %v2363 = vshrl.u32 %v2097, 16
        %v2365 = vrot.slane %v2363, 4
        %v2366 = vshll.u32 %v2097, 16
        %v2368 = vrot.slane %v2366, 5
        %v2369 = vor.u32 %v2365, %v2368
        %v2370 = vrot.slane %v2369, 4
        %v2372 = vshll.u32 %v2098, 16
        %v2374 = vrot.slane %v2372, 5
        %v2375 = vsel %vm591, %v2370, %v2374
        %v2376 = vshrl.u32 %v2098, 16
        %v2378 = vrot.slane %v2376, 4
        %v2379 = vor.u32 %v2378, %v2374
        %v2380 = vrot.slane %v2379, 4
        %v2382 = vshll.u32 %v2099, 16
        %v2384 = vrot.slane %v2382, 5
        %v2385 = vsel %vm591, %v2380, %v2384
        %v2387 = vshrl.u32 %v2100, 16
        %v2389 = vrot.slane %v2387, 4
        %v2390 = vshll.u32 %v2100, 16
        %v2392 = vrot.slane %v2390, 5
        %v2393 = vor.u32 %v2389, %v2392
        %v2394 = vrot.slane %v2393, 4
        %v2396 = vshll.u32 %v2101, 16
        %v2398 = vrot.slane %v2396, 5
        %v2399 = vsel %vm591, %v2394, %v2398
        %v2400 = vshrl.u32 %v2101, 16
        %v2402 = vrot.slane %v2400, 4
        %v2403 = vor.u32 %v2402, %v2398
        %v2404 = vrot.slane %v2403, 4
        %v2406 = vshll.u32 %v2102, 16
        %v2408 = vrot.slane %v2406, 5
        %v2409 = vsel %vm591, %v2404, %v2408
        %v2411 = vshrl.u32 %v2103, 16
        %v2413 = vrot.slane %v2411, 4
        %v2414 = vshll.u32 %v2103, 16
        %v2416 = vrot.slane %v2414, 5
        %v2417 = vor.u32 %v2413, %v2416
        %v2418 = vrot.slane %v2417, 4
        %v2420 = vshll.u32 %v2104, 16
        %v2422 = vrot.slane %v2420, 5
        %v2423 = vsel %vm591, %v2418, %v2422
        %v2424 = vshrl.u32 %v2104, 16
        %v2426 = vrot.slane %v2424, 4
        %v2427 = vor.u32 %v2426, %v2422
        %v2428 = vrot.slane %v2427, 4
        %v2430 = vshll.u32 %v2105, 16
        %v2432 = vrot.slane %v2430, 5
        %v2433 = vsel %vm591, %v2428, %v2432
        %v2435 = vshrl.u32 %v2106, 16
        %v2437 = vrot.slane %v2435, 4
        %v2438 = vshll.u32 %v2106, 16
        %v2440 = vrot.slane %v2438, 5
        %v2441 = vor.u32 %v2437, %v2440
        %v2442 = vrot.slane %v2441, 4
        %v2444 = vshll.u32 %v2107, 16
        %v2446 = vrot.slane %v2444, 5
        %v2447 = vsel %vm591, %v2442, %v2446
        %v2448 = vshrl.u32 %v2107, 16
        %v2450 = vrot.slane %v2448, 4
        %v2451 = vor.u32 %v2450, %v2446
        %v2452 = vrot.slane %v2451, 4
        %v2454 = vshll.u32 %v2108, 16
        %v2456 = vrot.slane %v2454, 5
        %v2457 = vsel %vm591, %v2452, %v2456
        %v2459 = vshrl.u32 %v2109, 16
        %v2461 = vrot.slane %v2459, 4
        %v2462 = vshll.u32 %v2109, 16
        %v2464 = vrot.slane %v2462, 5
        %v2465 = vor.u32 %v2461, %v2464
        %v2466 = vrot.slane %v2465, 4
        %v2468 = vshll.u32 %v2110, 16
        %v2470 = vrot.slane %v2468, 5
        %v2471 = vsel %vm591, %v2466, %v2470
        %v2472 = vshrl.u32 %v2110, 16
        %v2474 = vrot.slane %v2472, 4
        %v2475 = vor.u32 %v2474, %v2470
        %v2476 = vrot.slane %v2475, 4
        %v2478 = vshll.u32 %v2111, 16
        %v2480 = vrot.slane %v2478, 5
        %v2481 = vsel %vm591, %v2476, %v2480
        %s2482 = scalar_lea.vmem %s1, 448
        %v2483 = vld [vmem:[%s2482] sm:$0xf]
        %v2484 = vld [vmem:[%s2482 + $0x4] sm:$0xf]
        %v2485 = vld [vmem:[%s2482 + $0x8] sm:$0xf]
        %v2486 = vld [vmem:[%s2482 + $0xc] sm:$0xf]
        %v2487 = vld [vmem:[%s2482 + $0x10] sm:$0xf]
        %v2488 = vld [vmem:[%s2482 + $0x14] sm:$0xf]
        %v2489 = vld [vmem:[%s2482 + $0x18] sm:$0xf]
        %v2490 = vld [vmem:[%s2482 + $0x1c] sm:$0xf]
        %v2491 = vld [vmem:[%s2482 + $0x20] sm:$0xf]
        %v2492 = vld [vmem:[%s2482 + $0x24] sm:$0xf]
        %v2493 = vld [vmem:[%s2482 + $0x28] sm:$0xf]
        %v2494 = vld [vmem:[%s2482 + $0x2c] sm:$0xf]
        %v2495 = vld [vmem:[%s2482 + $0x30] sm:$0xf]
        %v2496 = vld [vmem:[%s2482 + $0x34] sm:$0xf]
        %v2497 = vld [vmem:[%s2482 + $0x38] sm:$0xf]
        %v2498 = vld [vmem:[%s2482 + $0x3c] sm:$0xf]
        %v2499 = vunpack.c.l.b16 %v2303
        %v2500 = vunpack.c.l.b16 %v2313
        %v2501 = vunpack.c.l.b16 %v2327
        %v2502 = vunpack.c.l.b16 %v2337
        %v2503 = vunpack.c.l.b16 %v2351
        %v2504 = vunpack.c.l.b16 %v2361
        %v2505 = vunpack.c.l.b16 %v2375
        %v2506 = vunpack.c.l.b16 %v2385
        %v2507 = vunpack.c.l.b16 %v2399
        %v2508 = vunpack.c.l.b16 %v2409
        %v2509 = vunpack.c.l.b16 %v2423
        %v2510 = vunpack.c.l.b16 %v2433
        %v2511 = vunpack.c.l.b16 %v2447
        %v2512 = vunpack.c.l.b16 %v2457
        %v2513 = vunpack.c.l.b16 %v2471
        %v2514 = vunpack.c.l.b16 %v2481
        %v2515 = vpack.c.b16 %v2500, %v2499
        %v2516 = vpack.c.b16 %v2502, %v2501
        %v2517 = vpack.c.b16 %v2504, %v2503
        %v2518 = vpack.c.b16 %v2506, %v2505
        %v2519 = vpack.c.b16 %v2508, %v2507
        %v2520 = vpack.c.b16 %v2510, %v2509
        %v2521 = vpack.c.b16 %v2512, %v2511
        %v2522 = vpack.c.b16 %v2514, %v2513
        %v2547 = vunpack.c.l.b16 %v2483
        %v2548 = vunpack.c.l.b16 %v2484
        %v2549 = vunpack.c.l.b16 %v2485
        %v2550 = vunpack.c.l.b16 %v2486
        %v2551 = vunpack.c.l.b16 %v2487
        %v2552 = vunpack.c.l.b16 %v2488
        %v2553 = vunpack.c.l.b16 %v2489
        %v2554 = vunpack.c.l.b16 %v2490
        %v2555 = vunpack.c.l.b16 %v2491
        %v2556 = vunpack.c.l.b16 %v2492
        %v2557 = vunpack.c.l.b16 %v2493
        %v2558 = vunpack.c.l.b16 %v2494
        %v2559 = vunpack.c.l.b16 %v2495
        %v2560 = vunpack.c.l.b16 %v2496
        %v2561 = vunpack.c.l.b16 %v2497
        %v2562 = vunpack.c.l.b16 %v2498
        %v2563 = vpack.c.b16 %v2548, %v2547
        %v2564 = vpack.c.b16 %v2550, %v2549
        %v2565 = vpack.c.b16 %v2552, %v2551
        %v2566 = vpack.c.b16 %v2554, %v2553
        %v2567 = vpack.c.b16 %v2556, %v2555
        %v2568 = vpack.c.b16 %v2558, %v2557
        %v2569 = vpack.c.b16 %v2560, %v2559
        %v2570 = vpack.c.b16 %v2562, %v2561
        %2579 = vmatpush.bf16.msra.mxu0 %v2570
        %2580 = vmatpush.bf16.msra.mxu0 %v2569
        %2581 = vmatpush.bf16.msra.mxu0 %v2568
        %2582 = vmatpush.bf16.msra.mxu0 %v2567
        %2583 = vmatpush.bf16.msra.mxu0 %v2566
        %2584 = vmatpush.bf16.msra.mxu0 %v2565
        %2585 = vmatpush.bf16.msra.mxu0 %v2564
        %2586 = vmatpush.bf16.msra.mxu0 %v2563
        %2587 = vmatmul.bf16.gmra.mxu0 %v2515
        %v2588 = vpop.f32.mrf.mxu0
        %v2589 = vadd.f32 0.0, %v2588
        %v2590 = vpop.f32.mrf.mxu0
        %v2591 = vadd.f32 0.0, %v2590
        %2592 = vmatmul.bf16.gmra.mxu0 %v2516
        %v2593 = vpop.f32.mrf.mxu0
        %v2594 = vadd.f32 0.0, %v2593
        %v2595 = vpop.f32.mrf.mxu0
        %v2596 = vadd.f32 0.0, %v2595
        %2597 = vmatmul.bf16.gmra.mxu0 %v2517
        %v2598 = vpop.f32.mrf.mxu0
        %v2599 = vadd.f32 0.0, %v2598
        %v2600 = vpop.f32.mrf.mxu0
        %v2601 = vadd.f32 0.0, %v2600
        %2602 = vmatmul.bf16.gmra.mxu0 %v2518
        %v2603 = vpop.f32.mrf.mxu0
        %v2604 = vadd.f32 0.0, %v2603
        %v2605 = vpop.f32.mrf.mxu0
        %v2606 = vadd.f32 0.0, %v2605
        %2607 = vmatmul.bf16.gmra.mxu0 %v2519
        %v2608 = vpop.f32.mrf.mxu0
        %v2609 = vadd.f32 0.0, %v2608
        %v2610 = vpop.f32.mrf.mxu0
        %v2611 = vadd.f32 0.0, %v2610
        %2612 = vmatmul.bf16.gmra.mxu0 %v2520
        %v2613 = vpop.f32.mrf.mxu0
        %v2614 = vadd.f32 0.0, %v2613
        %v2615 = vpop.f32.mrf.mxu0
        %v2616 = vadd.f32 0.0, %v2615
        %2617 = vmatmul.bf16.gmra.mxu0 %v2521
        %v2618 = vpop.f32.mrf.mxu0
        %v2619 = vadd.f32 0.0, %v2618
        %v2620 = vpop.f32.mrf.mxu0
        %v2621 = vadd.f32 0.0, %v2620
        %2622 = vmatmul.bf16.gmra.mxu0 %v2522
        %v2623 = vpop.f32.mrf.mxu0
        %v2624 = vadd.f32 0.0, %v2623
        %v2625 = vpop.f32.mrf.mxu0
        %v2626 = vadd.f32 0.0, %v2625
        %2627 = vdwg.mxu0
        %v2628 = vadd.f32 %v2274, %v2589
        %v2629 = vadd.f32 %v2275, %v2591
        %v2630 = vadd.f32 %v2276, %v2594
        %v2631 = vadd.f32 %v2277, %v2596
        %v2632 = vadd.f32 %v2278, %v2599
        %v2633 = vadd.f32 %v2279, %v2601
        %v2634 = vadd.f32 %v2280, %v2604
        %v2635 = vadd.f32 %v2281, %v2606
        %v2636 = vadd.f32 %v2282, %v2609
        %v2637 = vadd.f32 %v2283, %v2611
        %v2638 = vadd.f32 %v2284, %v2614
        %v2639 = vadd.f32 %v2285, %v2616
        %v2640 = vadd.f32 %v2286, %v2619
        %v2641 = vadd.f32 %v2287, %v2621
        %v2642 = vadd.f32 %v2288, %v2624
        %v2643 = vadd.f32 %v2289, %v2626
        %v2652 = vrot.slane %v2088, 5
        %v2653 = vrot.slane %v2652, 4
        %v2654 = vrot.slane %v2089, 5
        %v2655 = vsel %vm1085, %v2653, %v2654
        %v2656 = vrot.slane %v2654, 4
        %v2657 = vrot.slane %v2090, 5
        %v2658 = vsel %vm1085, %v2656, %v2657
        %v2659 = vrot.slane %v2091, 5
        %v2660 = vrot.slane %v2659, 4
        %v2661 = vrot.slane %v2092, 5
        %v2662 = vsel %vm1085, %v2660, %v2661
        %v2663 = vrot.slane %v2661, 4
        %v2664 = vrot.slane %v2093, 5
        %v2665 = vsel %vm1085, %v2663, %v2664
        %v2666 = vrot.slane %v2094, 5
        %v2667 = vrot.slane %v2666, 4
        %v2668 = vrot.slane %v2095, 5
        %v2669 = vsel %vm1085, %v2667, %v2668
        %v2670 = vrot.slane %v2668, 4
        %v2671 = vrot.slane %v2096, 5
        %v2672 = vsel %vm1085, %v2670, %v2671
        %v2673 = vrot.slane %v2097, 5
        %v2674 = vrot.slane %v2673, 4
        %v2675 = vrot.slane %v2098, 5
        %v2676 = vsel %vm1085, %v2674, %v2675
        %v2677 = vrot.slane %v2675, 4
        %v2678 = vrot.slane %v2099, 5
        %v2679 = vsel %vm1085, %v2677, %v2678
        %v2680 = vrot.slane %v2100, 5
        %v2681 = vrot.slane %v2680, 4
        %v2682 = vrot.slane %v2101, 5
        %v2683 = vsel %vm1085, %v2681, %v2682
        %v2684 = vrot.slane %v2682, 4
        %v2685 = vrot.slane %v2102, 5
        %v2686 = vsel %vm1085, %v2684, %v2685
        %v2687 = vrot.slane %v2103, 5
        %v2688 = vrot.slane %v2687, 4
        %v2689 = vrot.slane %v2104, 5
        %v2690 = vsel %vm1085, %v2688, %v2689
        %v2691 = vrot.slane %v2689, 4
        %v2692 = vrot.slane %v2105, 5
        %v2693 = vsel %vm1085, %v2691, %v2692
        %v2694 = vrot.slane %v2106, 5
        %v2695 = vrot.slane %v2694, 4
        %v2696 = vrot.slane %v2107, 5
        %v2697 = vsel %vm1085, %v2695, %v2696
        %v2698 = vrot.slane %v2696, 4
        %v2699 = vrot.slane %v2108, 5
        %v2700 = vsel %vm1085, %v2698, %v2699
        %v2701 = vrot.slane %v2109, 5
        %v2702 = vrot.slane %v2701, 4
        %v2703 = vrot.slane %v2110, 5
        %v2704 = vsel %vm1085, %v2702, %v2703
        %v2705 = vrot.slane %v2703, 4
        %v2706 = vrot.slane %v2111, 5
        %v2707 = vsel %vm1085, %v2705, %v2706
        %s2708 = scalar_lea.vmem %s1, 512
        %v2709 = vld [vmem:[%s2708] sm:$0xf]
        %v2710 = vld [vmem:[%s2708 + $0x4] sm:$0xf]
        %v2711 = vld [vmem:[%s2708 + $0x8] sm:$0xf]
        %v2712 = vld [vmem:[%s2708 + $0xc] sm:$0xf]
        %v2713 = vld [vmem:[%s2708 + $0x10] sm:$0xf]
        %v2714 = vld [vmem:[%s2708 + $0x14] sm:$0xf]
        %v2715 = vld [vmem:[%s2708 + $0x18] sm:$0xf]
        %v2716 = vld [vmem:[%s2708 + $0x1c] sm:$0xf]
        %v2717 = vld [vmem:[%s2708 + $0x20] sm:$0xf]
        %v2718 = vld [vmem:[%s2708 + $0x24] sm:$0xf]
        %v2719 = vld [vmem:[%s2708 + $0x28] sm:$0xf]
        %v2720 = vld [vmem:[%s2708 + $0x2c] sm:$0xf]
        %v2721 = vld [vmem:[%s2708 + $0x30] sm:$0xf]
        %v2722 = vld [vmem:[%s2708 + $0x34] sm:$0xf]
        %v2723 = vld [vmem:[%s2708 + $0x38] sm:$0xf]
        %v2724 = vld [vmem:[%s2708 + $0x3c] sm:$0xf]
        %v2725 = vunpack.c.l.b16 %v2655
        %v2726 = vunpack.c.l.b16 %v2658
        %v2727 = vunpack.c.l.b16 %v2662
        %v2728 = vunpack.c.l.b16 %v2665
        %v2729 = vunpack.c.l.b16 %v2669
        %v2730 = vunpack.c.l.b16 %v2672
        %v2731 = vunpack.c.l.b16 %v2676
        %v2732 = vunpack.c.l.b16 %v2679
        %v2733 = vunpack.c.l.b16 %v2683
        %v2734 = vunpack.c.l.b16 %v2686
        %v2735 = vunpack.c.l.b16 %v2690
        %v2736 = vunpack.c.l.b16 %v2693
        %v2737 = vunpack.c.l.b16 %v2697
        %v2738 = vunpack.c.l.b16 %v2700
        %v2739 = vunpack.c.l.b16 %v2704
        %v2740 = vunpack.c.l.b16 %v2707
        %v2741 = vpack.c.b16 %v2726, %v2725
        %v2742 = vpack.c.b16 %v2728, %v2727
        %v2743 = vpack.c.b16 %v2730, %v2729
        %v2744 = vpack.c.b16 %v2732, %v2731
        %v2745 = vpack.c.b16 %v2734, %v2733
        %v2746 = vpack.c.b16 %v2736, %v2735
        %v2747 = vpack.c.b16 %v2738, %v2737
        %v2748 = vpack.c.b16 %v2740, %v2739
        %v2773 = vunpack.c.l.b16 %v2709
        %v2774 = vunpack.c.l.b16 %v2710
        %v2775 = vunpack.c.l.b16 %v2711
        %v2776 = vunpack.c.l.b16 %v2712
        %v2777 = vunpack.c.l.b16 %v2713
        %v2778 = vunpack.c.l.b16 %v2714
        %v2779 = vunpack.c.l.b16 %v2715
        %v2780 = vunpack.c.l.b16 %v2716
        %v2781 = vunpack.c.l.b16 %v2717
        %v2782 = vunpack.c.l.b16 %v2718
        %v2783 = vunpack.c.l.b16 %v2719
        %v2784 = vunpack.c.l.b16 %v2720
        %v2785 = vunpack.c.l.b16 %v2721
        %v2786 = vunpack.c.l.b16 %v2722
        %v2787 = vunpack.c.l.b16 %v2723
        %v2788 = vunpack.c.l.b16 %v2724
        %v2789 = vpack.c.b16 %v2774, %v2773
        %v2790 = vpack.c.b16 %v2776, %v2775
        %v2791 = vpack.c.b16 %v2778, %v2777
        %v2792 = vpack.c.b16 %v2780, %v2779
        %v2793 = vpack.c.b16 %v2782, %v2781
        %v2794 = vpack.c.b16 %v2784, %v2783
        %v2795 = vpack.c.b16 %v2786, %v2785
        %v2796 = vpack.c.b16 %v2788, %v2787
        %2805 = vmatpush.bf16.msra.mxu0 %v2796
        %2806 = vmatpush.bf16.msra.mxu0 %v2795
        %2807 = vmatpush.bf16.msra.mxu0 %v2794
        %2808 = vmatpush.bf16.msra.mxu0 %v2793
        %2809 = vmatpush.bf16.msra.mxu0 %v2792
        %2810 = vmatpush.bf16.msra.mxu0 %v2791
        %2811 = vmatpush.bf16.msra.mxu0 %v2790
        %2812 = vmatpush.bf16.msra.mxu0 %v2789
        %2813 = vmatmul.bf16.gmra.mxu0 %v2741
        %v2814 = vpop.f32.mrf.mxu0
        %v2815 = vadd.f32 0.0, %v2814
        %v2816 = vpop.f32.mrf.mxu0
        %v2817 = vadd.f32 0.0, %v2816
        %2818 = vmatmul.bf16.gmra.mxu0 %v2742
        %v2819 = vpop.f32.mrf.mxu0
        %v2820 = vadd.f32 0.0, %v2819
        %v2821 = vpop.f32.mrf.mxu0
        %v2822 = vadd.f32 0.0, %v2821
        %2823 = vmatmul.bf16.gmra.mxu0 %v2743
        %v2824 = vpop.f32.mrf.mxu0
        %v2825 = vadd.f32 0.0, %v2824
        %v2826 = vpop.f32.mrf.mxu0
        %v2827 = vadd.f32 0.0, %v2826
        %2828 = vmatmul.bf16.gmra.mxu0 %v2744
        %v2829 = vpop.f32.mrf.mxu0
        %v2830 = vadd.f32 0.0, %v2829
        %v2831 = vpop.f32.mrf.mxu0
        %v2832 = vadd.f32 0.0, %v2831
        %2833 = vmatmul.bf16.gmra.mxu0 %v2745
        %v2834 = vpop.f32.mrf.mxu0
        %v2835 = vadd.f32 0.0, %v2834
        %v2836 = vpop.f32.mrf.mxu0
        %v2837 = vadd.f32 0.0, %v2836
        %2838 = vmatmul.bf16.gmra.mxu0 %v2746
        %v2839 = vpop.f32.mrf.mxu0
        %v2840 = vadd.f32 0.0, %v2839
        %v2841 = vpop.f32.mrf.mxu0
        %v2842 = vadd.f32 0.0, %v2841
        %2843 = vmatmul.bf16.gmra.mxu0 %v2747
        %v2844 = vpop.f32.mrf.mxu0
        %v2845 = vadd.f32 0.0, %v2844
        %v2846 = vpop.f32.mrf.mxu0
        %v2847 = vadd.f32 0.0, %v2846
        %2848 = vmatmul.bf16.gmra.mxu0 %v2748
        %v2849 = vpop.f32.mrf.mxu0
        %v2850 = vadd.f32 0.0, %v2849
        %v2851 = vpop.f32.mrf.mxu0
        %v2852 = vadd.f32 0.0, %v2851
        %2853 = vdwg.mxu0
        %v2854 = vadd.f32 %v2628, %v2815
        %v2855 = vadd.f32 %v2629, %v2817
        %v2856 = vadd.f32 %v2630, %v2820
        %v2857 = vadd.f32 %v2631, %v2822
        %v2858 = vadd.f32 %v2632, %v2825
        %v2859 = vadd.f32 %v2633, %v2827
        %v2860 = vadd.f32 %v2634, %v2830
        %v2861 = vadd.f32 %v2635, %v2832
        %v2862 = vadd.f32 %v2636, %v2835
        %v2863 = vadd.f32 %v2637, %v2837
        %v2864 = vadd.f32 %v2638, %v2840
        %v2865 = vadd.f32 %v2639, %v2842
        %v2866 = vadd.f32 %v2640, %v2845
        %v2867 = vadd.f32 %v2641, %v2847
        %v2868 = vadd.f32 %v2642, %v2850
        %v2869 = vadd.f32 %v2643, %v2852
        %2870 = vst [vmem:[%s537] sm:$0xff] %v2854
        %2871 = vst [vmem:[%s537 + $0x8] sm:$0xff] %v2855
        %2872 = vst [vmem:[%s537 + $0x10] sm:$0xff] %v2856
        %2873 = vst [vmem:[%s537 + $0x18] sm:$0xff] %v2857
        %2874 = vst [vmem:[%s537 + $0x20] sm:$0xff] %v2858
        %2875 = vst [vmem:[%s537 + $0x28] sm:$0xff] %v2859
        %2876 = vst [vmem:[%s537 + $0x30] sm:$0xff] %v2860
        %2877 = vst [vmem:[%s537 + $0x38] sm:$0xff] %v2861
        %2878 = vst [vmem:[%s537 + $0x40] sm:$0xff] %v2862
        %2879 = vst [vmem:[%s537 + $0x48] sm:$0xff] %v2863
        %2880 = vst [vmem:[%s537 + $0x50] sm:$0xff] %v2864
        %2881 = vst [vmem:[%s537 + $0x58] sm:$0xff] %v2865
        %2882 = vst [vmem:[%s537 + $0x60] sm:$0xff] %v2866
        %2883 = vst [vmem:[%s537 + $0x68] sm:$0xff] %v2867
        %2884 = vst [vmem:[%s537 + $0x70] sm:$0xff] %v2868
        %2885 = vst [vmem:[%s537 + $0x78] sm:$0xff] %v2869
        %v2886 = vadd.f32 %v2854, %v2855
        %v2887 = vadd.f32 %v2886, %v2856
        %v2888 = vadd.f32 %v2887, %v2857
        %v2889 = vadd.f32 %v2888, %v2858
        %v2890 = vadd.f32 %v2889, %v2859
        %v2891 = vadd.f32 %v2890, %v2860
        %v2892 = vadd.f32 %v2891, %v2861
        %v2893 = vadd.f32 %v2892, %v2862
        %v2894 = vadd.f32 %v2893, %v2863
        %v2895 = vadd.f32 %v2894, %v2864
        %v2896 = vadd.f32 %v2895, %v2865
        %v2897 = vadd.f32 %v2896, %v2866
        %v2898 = vadd.f32 %v2897, %v2867
        %v2899 = vadd.f32 %v2898, %v2868
        %v2900 = vadd.f32 %v2899, %v2869
        %v2901 = vrot.slane %v2900, 4
        %v2902 = vadd.f32 %v2900, %v2901
        %v2903 = vrot.slane %v2902, 2
        %v2904 = vadd.f32 %v2902, %v2903
        %v2905 = vrot.slane %v2904, 1
        %v2906 = vadd.f32 %v2904, %v2905
        %v2907 = vmul.f32 %v2854, %v2854
        %v2908 = vmul.f32 %v2855, %v2855
        %v2909 = vmul.f32 %v2856, %v2856
        %v2910 = vmul.f32 %v2857, %v2857
        %v2911 = vmul.f32 %v2858, %v2858
        %v2912 = vmul.f32 %v2859, %v2859
        %v2913 = vmul.f32 %v2860, %v2860
        %v2914 = vmul.f32 %v2861, %v2861
        %v2915 = vmul.f32 %v2862, %v2862
        %v2916 = vmul.f32 %v2863, %v2863
        %v2917 = vmul.f32 %v2864, %v2864
        %v2918 = vmul.f32 %v2865, %v2865
        %v2919 = vmul.f32 %v2866, %v2866
        %v2920 = vmul.f32 %v2867, %v2867
        %v2921 = vmul.f32 %v2868, %v2868
        %v2922 = vmul.f32 %v2869, %v2869
        %v2923 = vadd.f32 %v2907, %v2908
        %v2924 = vadd.f32 %v2923, %v2909
        %v2925 = vadd.f32 %v2924, %v2910
        %v2926 = vadd.f32 %v2925, %v2911
        %v2927 = vadd.f32 %v2926, %v2912
        %v2928 = vadd.f32 %v2927, %v2913
        %v2929 = vadd.f32 %v2928, %v2914
        %v2930 = vadd.f32 %v2929, %v2915
        %v2931 = vadd.f32 %v2930, %v2916
        %v2932 = vadd.f32 %v2931, %v2917
        %v2933 = vadd.f32 %v2932, %v2918
        %v2934 = vadd.f32 %v2933, %v2919
        %v2935 = vadd.f32 %v2934, %v2920
        %v2936 = vadd.f32 %v2935, %v2921
        %v2937 = vadd.f32 %v2936, %v2922
        %v2938 = vrot.slane %v2937, 4
        %v2939 = vadd.f32 %v2937, %v2938
        %v2940 = vrot.slane %v2939, 2
        %v2941 = vadd.f32 %v2939, %v2940
        %v2942 = vrot.slane %v2941, 1
        %v2943 = vadd.f32 %v2941, %v2942
        %vm2944 = vcmask 1040384
        %v2945 = vsel %vm2944, %v2906, %v2943
        %2946 = vst [vmem:[%s546] sm:$0x3] %v2945
        %s2947 = smul.u32 %s19, 2
        %s2948 = sadd.s32 %s2947, %s20
        %s2949 = smul.u32 16, %s2948
        %p2950 = scmp.lt.s32.totalorder %s2949, 63
        %s2951 = scalar_select %p2950, %s2949, 63
        %s2952 = smul.addr %s2951, 8
        %s2953 = scalar_lea.vmem %s2, %s2952
        %s2954 = smul.u32 %s19, 2
        %s2955 = sadd.s32 %s2954, %s20
        %p2956 = scmp.lt.s32.totalorder %s2955, 3
        %s2957 = scalar_select %p2956, %s2955, 3
        %s2958 = smul.addr %s2957, 2
        %s2959 = scalar_lea.vmem %s3, %s2958
        // Predicated region
        $region70: #{resblock_forward.4} parent=64 // pred_check
          %p2960 = pneg %p98
        $region71: #{resblock_forward.4} parent=64 // pred_check_branch
          %2962 = sbr.rel (%p2960) target = $region73
        $region72: #{resblock_forward.4} parent=64 // pred_region
          %s2963 = smul.u32 %s19, 2
          %s2964 = sadd.s32 %s2963, %s20
          %s2965 = smul.u32 16, %s2964
        $region73: #{resblock_forward.4} parent=64 // pred_fallthru
          _
        // Predicated region
        $region74: #{resblock_forward.4} parent=64 // pred_check
          %p2966 = pneg %p128
        $region75: #{resblock_forward.4} parent=64 // pred_check_branch
          %2968 = sbr.rel (%p2966) target = $region77
        $region76: #{resblock_forward.4} parent=64 // pred_region
          %s2969 = smul.u32 %s19, 2
          %s2970 = sadd.s32 %s2969, %s20
        $region77: #{resblock_forward.4} parent=64 // pred_fallthru
          _
      $region65: #{resblock_forward.4} parent=5 // pred_fallthru
        _
      %p2971 = scmp.le.s32.totalorder 2, %s10
      // Predicated region
      $region78: #{resblock_forward.4} parent=5 // pred_check
        %p2972 = pneg %p2971
      $region79: #{resblock_forward.4} parent=5 // pred_check_branch
        %2974 = sbr.rel (%p2972) target = $region81
      $region80: #{resblock_forward.4} parent=5 // pred_region
        %s2975 = ssub.s32 %s10, 2
        // Predicated region
        $region82: #{resblock_forward.4} parent=80 // pred_check
          %p2976 = pneg %p104
        $region83: #{resblock_forward.4} parent=80 // pred_check_branch
          %2978 = sbr.rel (%p2976) target = $region85
        $region84: #{resblock_forward.4} parent=80 // pred_region
          %s2979 = smul.u32 %s21, 2
          %s2980 = sadd.s32 %s2979, %s22
          %s2981 = smul.u32 16, %s2980
          %p2982 = scmp.lt.s32.totalorder %s2981, 63
          %s2983 = scalar_select %p2982, %s2981, 63
          %s2984 = smul.addr %s2983, 8
          %s2985 = scalar_lea.vmem %s2, %s2984
        $region85: #{resblock_forward.4} parent=80 // pred_fallthru
          _
        // Predicated region
        $region86: #{resblock_forward.4} parent=80 // pred_check
          %p2986 = pneg %p134
        $region87: #{resblock_forward.4} parent=80 // pred_check_branch
          %2988 = sbr.rel (%p2986) target = $region89
        $region88: #{resblock_forward.4} parent=80 // pred_region
          %s2989 = smul.u32 %s21, 2
          %s2990 = sadd.s32 %s2989, %s22
          %p2991 = scmp.lt.s32.totalorder %s2990, 3
          %s2992 = scalar_select %p2991, %s2990, 3
          %s2993 = smul.addr %s2992, 2
          %s2994 = scalar_lea.vmem %s3, %s2993
        $region89: #{resblock_forward.4} parent=80 // pred_fallthru
          _
      $region81: #{resblock_forward.4} parent=5 // pred_fallthru
        _
    $region6: #{resblock_forward.4} parent=1 // loop_footer
      %s14 = sadd.s32 1, %s10
    $region7: #{resblock_forward.4} parent=1 // loop_footer_branch
      %9 = sbr.rel target = $region3
    $region8: #{resblock_forward.4} parent=1 // loop_exit
      _

</llo_original>
